<compile_context>
chip_gen: v5e
topology: v5e:2x2
jax: 0.10.0
libtpu: 0.0.40
codegen_flags: <defaults>
</compile_context>

<pallas_src>
import functools
import math

import jax
import jax.numpy as jnp
import numpy as np
from jax.experimental import pallas as pl
from jax.experimental.pallas import tpu as pltpu

LN_EPS = 1e-5
NEG_INF = -1e30


def _vmem_limit_bytes():
    try:
        cap = pltpu.get_tpu_info().vmem_capacity_bytes
    except Exception:
        cap = 64 * 1024 * 1024
    return int(min(cap * 0.8, 100 * 1024 * 1024))


# ---------------------------------------------------------------------------
# in-kernel helpers
# ---------------------------------------------------------------------------
def _layernorm(x, g, b):
    mu = jnp.mean(x, axis=-1, keepdims=True)
    var = jnp.mean((x - mu) ** 2, axis=-1, keepdims=True)
    return (x - mu) * jax.lax.rsqrt(var + LN_EPS) * g + b


def _swap01(x):
    """(A, B, C) -> (B, A, C); lane-layout-aware relayout when available."""
    if hasattr(pltpu, "einshape"):
        return pltpu.einshape("abc->bac", x)
    return jnp.swapaxes(x, 0, 1)


def _attn_core(q, k, v, bias, n_head):
    """PyTorch-style MHA core on projected q/k/v (eval, no dropout).

    q: (Tq, D)   k, v: (Tk, D)   bias: (H, Tq, Tk) additive (-1e30 = masked) or None
    Returns (Tq, D) = heads concatenated back along the lane axis.
    """
    tq, d = q.shape
    tk = k.shape[0]
    hd = d // n_head
    scale = jnp.float32(1.0 / math.sqrt(hd))

    qh = _swap01((q * scale).reshape(tq, n_head, hd))   # (H, Tq, hd)
    kh = _swap01(k.reshape(tk, n_head, hd))              # (H, Tk, hd)
    vh = _swap01(v.reshape(tk, n_head, hd))              # (H, Tk, hd)

    s = jnp.einsum('hqd,hkd->hqk', qh, kh, preferred_element_type=jnp.float32)
    if bias is not None:
        s = s + bias
    s = s - jnp.max(s, axis=-1, keepdims=True)
    p = jnp.exp(s)
    p = p / jnp.sum(p, axis=-1, keepdims=True)           # exact div: f32 parity
    o = jnp.einsum('hqk,hkd->hqd', p, vh, preferred_element_type=jnp.float32)
    return _swap01(o).reshape(tq, d)                     # (Tq, D)


# ---------------------------------------------------------------------------
# fused decoder-stack + generator kernel
# ---------------------------------------------------------------------------
def decoder_kernel(tgt_ref, mem_ref, qpos_ref, pad_ref,
                   sa_qk_w, sa_v_w, sa_o_w, ca_q_w, ca_kv_w, ca_o_w, l1_w, l2_w,
                   b2d, b1d, bff,
                   gen_vd, gen_w1, gen_w2, gen_w3, gen_b3,
                   out_ref, x_scratch, bias_scratch, *, n_head):
    layer = pl.program_id(1)
    BB, T, D = tgt_ref.shape
    S = mem_ref.shape[1]
    H = n_head
    N = BB * T

    # ---- once per batch block: load embeddings, build (causal + pad) bias ----
    @pl.when(layer == 0)
    def _():
        x_scratch[...] = tgt_ref[...].reshape(N, D)
        row = jax.lax.broadcasted_iota(jnp.int32, (T, T), 0)
        col = jax.lax.broadcasted_iota(jnp.int32, (T, T), 1)
        causal = jnp.where(col > row, jnp.float32(NEG_INF), jnp.float32(0.0))   # (T, T)
        pad = pad_ref[...].reshape(BB * H, 1, T)                                # key-axis bias
        bias_scratch[...] = pad + causal[None, :, :]                            # (BB*H, T, T)

    x = x_scratch[...]                        # (N, D) running activations (VMEM-resident)
    qpos = qpos_ref[...]                      # (T, D)
    qpos_n = qpos if BB == 1 else jnp.tile(qpos, (BB, 1))
    bias_all = bias_scratch[...]              # (BB*H, T, T)

    # ---- unpack packed per-layer vectors ----
    vec = b1d[0]                              # (11, D)
    b2 = b2d[0]                               # (2, 2D)
    sa_qk_b, ca_kv_b = b2[0:1, :], b2[1:2, :]
    sa_v_b, sa_o_b = vec[0:1], vec[1:2]
    ca_q_b, ca_o_b = vec[2:3], vec[3:4]
    l2_b = vec[4:5]
    n1_g, n1_b = vec[5:6], vec[6:7]
    n2_g, n2_b = vec[7:8], vec[8:9]
    n3_g, n3_b = vec[9:10], vec[10:11]
    l1_b = bff[0]                             # (1, FF)

    # ---- self attention: q = k = x + query_pos (fused q|k proj), v = x ----
    xp = x + qpos_n
    qk = jnp.dot(xp, sa_qk_w[0], preferred_element_type=jnp.float32) + sa_qk_b
    v = jnp.dot(x, sa_v_w[0], preferred_element_type=jnp.float32) + sa_v_b
    q_all, k_all = qk[:, :D], qk[:, D:]
    outs = []
    for b in range(BB):
        sl = slice(b * T, (b + 1) * T)
        outs.append(_attn_core(q_all[sl], k_all[sl], v[sl],
                               bias_all[b * H:(b + 1) * H], n_head))
    o = outs[0] if BB == 1 else jnp.concatenate(outs, axis=0)       # (N, D)
    sa = jnp.dot(o, sa_o_w[0], preferred_element_type=jnp.float32) + sa_o_b
    x = _layernorm(x + sa, n1_g, n1_b)

    # ---- cross attention: q = x + query_pos, k = v = memory (no mask) ----
    q = jnp.dot(x + qpos_n, ca_q_w[0], preferred_element_type=jnp.float32) + ca_q_b
    mem = mem_ref[...].reshape(BB * S, D)
    kv = jnp.dot(mem, ca_kv_w[0], preferred_element_type=jnp.float32) + ca_kv_b
    k_all, v_all = kv[:, :D], kv[:, D:]
    outs = []
    for b in range(BB):
        sq = slice(b * T, (b + 1) * T)
        sk = slice(b * S, (b + 1) * S)
        outs.append(_attn_core(q[sq], k_all[sk], v_all[sk], None, n_head))
    o = outs[0] if BB == 1 else jnp.concatenate(outs, axis=0)
    ca = jnp.dot(o, ca_o_w[0], preferred_element_type=jnp.float32) + ca_o_b
    x = _layernorm(x + ca, n2_g, n2_b)

    # ---- feed forward (relu) ----
    h = jnp.maximum(jnp.dot(x, l1_w[0], preferred_element_type=jnp.float32) + l1_b, 0.0)
    f = jnp.dot(h, l2_w[0], preferred_element_type=jnp.float32) + l2_b
    x = _layernorm(x + f, n3_g, n3_b)

    x_scratch[...] = x

    # ---- fused generator epilogue: final LayerNorm + 3-layer MLP ----
    @pl.when(layer == pl.num_programs(1) - 1)
    def _():
        g = gen_vd[...]                         # (4, D): ng, nb, b1, b2
        xf = _layernorm(x, g[0:1], g[1:2])
        h1 = jnp.maximum(jnp.dot(xf, gen_w1[...], preferred_element_type=jnp.float32)
                         + g[2:3], 0.0)
        h2 = jnp.maximum(jnp.dot(h1, gen_w2[...], preferred_element_type=jnp.float32)
                         + g[3:4], 0.0)
        logits = jnp.dot(h2, gen_w3[...], preferred_element_type=jnp.float32) + gen_b3[...]
        out_ref[...] = logits.reshape(out_ref.shape)     # lane-dense (BB, T, Cpad)


LAYER_ORDER = ['sa_qk_w', 'sa_v_w', 'sa_o_w', 'ca_q_w', 'ca_kv_w', 'ca_o_w',
               'l1_w', 'l2_w', 'b2d', 'b1d', 'bff']
GEN_ORDER = ['vd', 'w1', 'w2', 'w3', 'b3']


def run_decoder(tgt, mem, qpos, pad_bias, layer_w, gen_w, n_head, num_batch_blocks=1):
    B, T, D = tgt.shape
    L = layer_w['sa_qk_w'].shape[0]
    NB = num_batch_blocks
    assert B % NB == 0
    BB = B // NB
    H = n_head
    Cpad = gen_w['w3'].shape[1]

    layer_args = [layer_w[k] for k in LAYER_ORDER]
    gen_args = [gen_w[k] for k in GEN_ORDER]

    def bspec(shape):                        # block along batch only
        nd = len(shape)
        return pl.BlockSpec((BB,) + tuple(shape[1:]),
                            lambda nb, l, _n=nd: (nb,) + (0,) * (_n - 1))

    def lspec(shape):                        # block along layer
        nd = len(shape)
        return pl.BlockSpec((1,) + tuple(shape[1:]),
                            lambda nb, l, _n=nd: (l,) + (0,) * (_n - 1))

    def cspec(shape):                        # constant (fetched once)
        nd = len(shape)
        return pl.BlockSpec(tuple(shape), lambda nb, l, _n=nd: (0,) * _n)

    in_specs = ([bspec(tgt.shape), bspec(mem.shape), cspec(qpos.shape), bspec(pad_bias.shape)]
                + [lspec(a.shape) for a in layer_args]
                + [cspec(a.shape) for a in gen_args])

    return pl.pallas_call(
        functools.partial(decoder_kernel, n_head=H),
        out_shape=jax.ShapeDtypeStruct((B, T, Cpad), jnp.float32),
        grid=(NB, L),
        in_specs=in_specs,
        out_specs=pl.BlockSpec((BB, T, Cpad), lambda nb, l: (nb, 0, 0)),
        scratch_shapes=[pltpu.VMEM((BB * T, D), jnp.float32),
                        pltpu.VMEM((BB * H, T, T), jnp.float32)],
        compiler_params=pltpu.CompilerParams(
            dimension_semantics=("parallel", "arbitrary"),
            vmem_limit_bytes=_vmem_limit_bytes()),
    )(tgt, mem, qpos, pad_bias, *layer_args, *gen_args)


# ---------------------------------------------------------------------------
# plain-JAX glue (embedding gather, pad bias, positional encoding, params)
# ---------------------------------------------------------------------------
def sinusoidal_pe(max_len, d_model):
    pos = np.arange(max_len)[:, None].astype(np.float64)
    i = np.arange(0, d_model, 2)[None, :].astype(np.float64)
    angle = pos / np.power(10000.0, i / d_model)
    pe = np.zeros((max_len, d_model), np.float32)
    pe[:, 0::2] = np.sin(angle)
    pe[:, 1::2] = np.cos(angle)
    return jnp.asarray(pe)


def make_pad_bias(labels, pad_id, n_head):
    """Additive pad bias, (B, H, T).  Reproduces Decoder._create_mask's
    .repeat(H,1,1) feeding of MHA's (B*H, T, T) layout: head h of batch b uses
    base[(b*H + h) % B]."""
    B, T = labels.shape
    pad = labels == pad_id
    pad = pad.at[:, 0].set(False)                               # pad_mask[:, 0] = False
    rows = jnp.where(pad, NEG_INF, 0.0).astype(jnp.float32)     # (B, T)
    idx = jnp.arange(B * n_head) % B
    return rows[idx].reshape(B, n_head, T)


def init_layer_params(key, d, ff):
    ks = jax.random.split(key, 6)
    w = lambda k, o, i: jax.random.normal(k, (o, i), jnp.float32) * 0.02
    return dict(
        sa_in_w=w(ks[0], 3 * d, d), sa_in_b=jnp.zeros((3 * d,), jnp.float32),
        sa_out_w=w(ks[1], d, d), sa_out_b=jnp.zeros((d,), jnp.float32),
        ca_in_w=w(ks[2], 3 * d, d), ca_in_b=jnp.zeros((3 * d,), jnp.float32),
        ca_out_w=w(ks[3], d, d), ca_out_b=jnp.zeros((d,), jnp.float32),
        l1_w=w(ks[4], ff, d), l1_b=jnp.zeros((ff,), jnp.float32),
        l2_w=w(ks[5], d, ff), l2_b=jnp.zeros((d,), jnp.float32),
        n1_g=jnp.ones((d,), jnp.float32), n1_b=jnp.zeros((d,), jnp.float32),
        n2_g=jnp.ones((d,), jnp.float32), n2_b=jnp.zeros((d,), jnp.float32),
        n3_g=jnp.ones((d,), jnp.float32), n3_b=jnp.zeros((d,), jnp.float32),
    )


def init_decoder_params(key, num_class, d, ff, num_layers, pad_id):
    """Parameters in PyTorch layout ((out, in) weights), like the nn.Module state dict."""
    keys = jax.random.split(key, num_layers + 5)
    embed = jax.random.normal(keys[0], (num_class, d), jnp.float32) * 0.02
    embed = embed.at[pad_id].set(0.0)                           # padding_idx behaviour
    layers = [init_layer_params(keys[1 + i], d, ff) for i in range(num_layers)]
    w = lambda k, o, i: jax.random.normal(k, (o, i), jnp.float32) * 0.02
    gen = dict(
        ng=jnp.ones((d,), jnp.float32), nb=jnp.zeros((d,), jnp.float32),
        w1=w(keys[-3], d, d), b1=jnp.zeros((d,), jnp.float32),
        w2=w(keys[-2], d, d), b2=jnp.zeros((d,), jnp.float32),
        w3=w(keys[-1], num_class, d), b3=jnp.zeros((num_class,), jnp.float32),
    )
    return dict(embed=embed, layers=layers, gen=gen)


def prepare_params(raw, d, n_head):
    """Re-layout for the kernel: stack layers, pre-transpose every weight, fuse the
    q|k and k|v in-projections, pack all small per-layer vectors into b2d/b1d/bff,
    pack the generator vectors, and pad the generator output dim up to 128 lanes."""
    layers = raw['layers']
    stack = lambda name: jnp.stack([lp[name] for lp in layers], axis=0)
    t = lambda w: jnp.transpose(w, (0, 2, 1))                   # (L, out, in) -> (L, in, out)

    sa_in_wT = t(stack('sa_in_w'))                              # (L, D, 3D)  [q|k|v]
    ca_in_wT = t(stack('ca_in_w'))
    sa_in_b = stack('sa_in_b')                                  # (L, 3D)
    ca_in_b = stack('ca_in_b')

    b2d = jnp.stack([sa_in_b[:, :2 * d], ca_in_b[:, d:]], axis=1)          # (L, 2, 2D)
    b1d = jnp.stack([sa_in_b[:, 2 * d:], stack('sa_out_b'),
                     ca_in_b[:, :d], stack('ca_out_b'), stack('l2_b'),
                     stack('n1_g'), stack('n1_b'),
                     stack('n2_g'), stack('n2_b'),
                     stack('n3_g'), stack('n3_b')], axis=1)                # (L, 11, D)
    bff = stack('l1_b')[:, None, :]                                        # (L, 1, FF)

    layer_w = dict(
        sa_qk_w=sa_in_wT[:, :, :2 * d], sa_v_w=sa_in_wT[:, :, 2 * d:],
        sa_o_w=t(stack('sa_out_w')),
        ca_q_w=ca_in_wT[:, :, :d], ca_kv_w=ca_in_wT[:, :, d:],
        ca_o_w=t(stack('ca_out_w')),
        l1_w=t(stack('l1_w')), l2_w=t(stack('l2_w')),
        b2d=b2d, b1d=b1d, bff=bff,
    )

    gen = raw['gen']
    c = gen['w3'].shape[0]
    c_pad = ((c + 127) // 128) * 128
    w3_p = jnp.zeros((d, c_pad), jnp.float32).at[:, :c].set(gen['w3'].T)
    b3_p = jnp.zeros((1, c_pad), jnp.float32).at[0, :c].set(gen['b3'])
    gen_w = dict(
        vd=jnp.stack([gen['ng'], gen['nb'], gen['b1'], gen['b2']], axis=0),  # (4, D)
        w1=gen['w1'].T, w2=gen['w2'].T, w3=w3_p, b3=b3_p,
    )
    return dict(embed=raw['embed'], layer_w=layer_w, gen=gen_w, num_class=c)


@functools.partial(jax.jit,
                   static_argnames=('pad_id', 'n_head', 'num_class', 'num_batch_blocks'))
def decoder_forward(src_bsd, labels, embed, layer_w, gen_w, *, pad_id, n_head,
                    num_class, num_batch_blocks=1):
    """src_bsd: (B, S, D) memory; labels: (B, T) int32. Returns (T, B, num_class)."""
    B, T = labels.shape
    D = src_bsd.shape[-1]

    tgt = jnp.take(embed, labels, axis=0)                       # (B, T, D)  Embedder
    qpos = sinusoidal_pe(T, D)                                  # PositionalEncoder -> query_pos
    pad_bias = make_pad_bias(labels, pad_id, n_head)            # (B, H, T) additive

    out = run_decoder(tgt, src_bsd, qpos, pad_bias, layer_w, gen_w, n_head,
                      num_batch_blocks=num_batch_blocks)        # (B, T, Cpad)
    out = out[:, :, :num_class]
    return jnp.transpose(out, (1, 0, 2))                        # (T, B, num_class)


# ---------------------------------------------------------------------------
if __name__ == "__main__":
    # small, decoder-consistent shapes
    B, T, S = 2, 8, 16
    D, FF, H = 32, 64, 4
    NUM_CLASS, PAD_ID, NUM_LAYERS = 12, 0, 2

    key = jax.random.PRNGKey(0)
    k_params, k_src, k_lab = jax.random.split(key, 3)

    raw = init_decoder_params(k_params, NUM_CLASS, D, FF, NUM_LAYERS, PAD_ID)
    packed = prepare_params(raw, D, H)

    src = jax.random.normal(k_src, (B, S, D), jnp.float32)       # memory, (B, S, D)
    labels = jax.random.randint(k_lab, (B, T), 0, NUM_CLASS)
    labels = labels.at[:, -1].set(PAD_ID)                        # exercise the pad mask

    out = decoder_forward(src, labels, packed['embed'], packed['layer_w'], packed['gen'],
                          pad_id=PAD_ID, n_head=H, num_class=packed['num_class'],
                          num_batch_blocks=1)                    # use 2 on dual-TC v7x
    out = jax.block_until_ready(out)
    assert out.shape == (T, B, NUM_CLASS)
    assert bool(jnp.all(jnp.isfinite(out)))
    print("KERNEL_OK")
</pallas_src>

<mosaic_0001>
module attributes {stable_mosaic.version = 11 : i64} {
  func.func @decoder_kernel(%arg0: i32, %arg1: i32, %arg2: memref<2x8x32xf32, #tpu.memory_space<vmem>>, %arg3: memref<2x16x32xf32, #tpu.memory_space<vmem>>, %arg4: memref<8x32xf32, #tpu.memory_space<vmem>>, %arg5: memref<2x4x8xf32, #tpu.memory_space<vmem>>, %arg6: memref<1x32x64xf32, #tpu.memory_space<vmem>>, %arg7: memref<1x32x32xf32, #tpu.memory_space<vmem>>, %arg8: memref<1x32x32xf32, #tpu.memory_space<vmem>>, %arg9: memref<1x32x32xf32, #tpu.memory_space<vmem>>, %arg10: memref<1x32x64xf32, #tpu.memory_space<vmem>>, %arg11: memref<1x32x32xf32, #tpu.memory_space<vmem>>, %arg12: memref<1x32x64xf32, #tpu.memory_space<vmem>>, %arg13: memref<1x64x32xf32, #tpu.memory_space<vmem>>, %arg14: memref<1x2x64xf32, #tpu.memory_space<vmem>>, %arg15: memref<1x11x32xf32, #tpu.memory_space<vmem>>, %arg16: memref<1x1x64xf32, #tpu.memory_space<vmem>>, %arg17: memref<4x32xf32, #tpu.memory_space<vmem>>, %arg18: memref<32x32xf32, #tpu.memory_space<vmem>>, %arg19: memref<32x32xf32, #tpu.memory_space<vmem>>, %arg20: memref<32x128xf32, #tpu.memory_space<vmem>>, %arg21: memref<1x128xf32, #tpu.memory_space<vmem>>, %arg22: memref<2x8x128xf32, #tpu.memory_space<vmem>>, %arg23: memref<16x32xf32, #tpu.memory_space<vmem>>, %arg24: memref<8x8x8xf32, #tpu.memory_space<vmem>>) attributes {dimension_semantics = [#tpu.dimension_semantics<parallel>, #tpu.dimension_semantics<arbitrary>], iteration_bounds = array<i64: 1, 2>, scalar_prefetch = 0 : i64, scratch_operands = 2 : i64, tpu.core_type = #tpu.core_type<tc>, window_params = [{transform_indices = @transform_0, window_bounds = array<i64: 2, 8, 32>}, {transform_indices = @transform_1, window_bounds = array<i64: 2, 16, 32>}, {pipeline_mode = #tpu.pipeline_mode<synchronous>, transform_indices = @transform_2, window_bounds = array<i64: 8, 32>}, {transform_indices = @transform_3, window_bounds = array<i64: 2, 4, 8>}, {transform_indices = @transform_4, window_bounds = array<i64: 1, 32, 64>}, {transform_indices = @transform_5, window_bounds = array<i64: 1, 32, 32>}, {transform_indices = @transform_6, window_bounds = array<i64: 1, 32, 32>}, {transform_indices = @transform_7, window_bounds = array<i64: 1, 32, 32>}, {transform_indices = @transform_8, window_bounds = array<i64: 1, 32, 64>}, {transform_indices = @transform_9, window_bounds = array<i64: 1, 32, 32>}, {transform_indices = @transform_10, window_bounds = array<i64: 1, 32, 64>}, {transform_indices = @transform_11, window_bounds = array<i64: 1, 64, 32>}, {transform_indices = @transform_12, window_bounds = array<i64: 1, 2, 64>}, {transform_indices = @transform_13, window_bounds = array<i64: 1, 11, 32>}, {transform_indices = @transform_14, window_bounds = array<i64: 1, 1, 64>}, {pipeline_mode = #tpu.pipeline_mode<synchronous>, transform_indices = @transform_15, window_bounds = array<i64: 4, 32>}, {pipeline_mode = #tpu.pipeline_mode<synchronous>, transform_indices = @transform_16, window_bounds = array<i64: 32, 32>}, {pipeline_mode = #tpu.pipeline_mode<synchronous>, transform_indices = @transform_17, window_bounds = array<i64: 32, 32>}, {pipeline_mode = #tpu.pipeline_mode<synchronous>, transform_indices = @transform_18, window_bounds = array<i64: 32, 128>}, {pipeline_mode = #tpu.pipeline_mode<synchronous>, transform_indices = @transform_19, window_bounds = array<i64: 1, 128>}, {transform_indices = @transform_20, window_bounds = array<i64: 2, 8, 128>}]} {
    %c0_i32 = arith.constant 0 : i32
    %0 = arith.cmpi eq, %arg1, %c0_i32 : i32
    %1 = arith.extui %0 : i1 to i32
    %c0_i32_0 = arith.constant 0 : i32
    %2 = arith.cmpi ne, %1, %c0_i32_0 : i32
    scf.if %2 {
      %c0_89 = arith.constant 0 : index
      %c0_90 = arith.constant 0 : index
      %c0_91 = arith.constant 0 : index
      %251 = vector.load %arg2[%c0_89, %c0_90, %c0_91] : memref<2x8x32xf32, #tpu.memory_space<vmem>>, vector<2x8x32xf32>
      %252 = vector.shape_cast %251 : vector<2x8x32xf32> to vector<16x32xf32>
      %c0_92 = arith.constant 0 : index
      %c0_93 = arith.constant 0 : index
      %253 = vector.load %arg23[%c0_92, %c0_93] : memref<16x32xf32, #tpu.memory_space<vmem>>, vector<16x32xf32>
      tpu.vector_store %arg23[%c0_92, %c0_93], %252 {strides = array<i32>} : memref<16x32xf32, #tpu.memory_space<vmem>>, vector<16x32xf32>,
      %254 = tpu.iota {dimensions = array<i32: 0>} : vector<8x8xi32>
      %255 = tpu.iota {dimensions = array<i32: 1>} : vector<8x8xi32>
      %256 = arith.cmpi sgt, %255, %254 : vector<8x8xi32>
      %cst_94 = arith.constant -1.000000e+30 : f32
      %cst_95 = arith.constant 0.000000e+00 : f32
      %257 = vector.broadcast %cst_94 : f32 to vector<8x8xf32>
      %258 = vector.broadcast %cst_95 : f32 to vector<8x8xf32>
      %259 = arith.select %256, %257, %258 : vector<8x8xi1>, vector<8x8xf32>
      %c0_96 = arith.constant 0 : index
      %c0_97 = arith.constant 0 : index
      %c0_98 = arith.constant 0 : index
      %260 = vector.load %arg5[%c0_96, %c0_97, %c0_98] : memref<2x4x8xf32, #tpu.memory_space<vmem>>, vector<2x4x8xf32>
      %261 = vector.shape_cast %260 : vector<2x4x8xf32> to vector<8x1x8xf32>
      %262 = vector.shape_cast %259 : vector<8x8xf32> to vector<1x8x8xf32>
      %263 = vector.broadcast %261 : vector<8x1x8xf32> to vector<8x8x8xf32>
      %264 = vector.broadcast %262 : vector<1x8x8xf32> to vector<8x8x8xf32>
      %265 = arith.addf %263, %264 : vector<8x8x8xf32>
      %c0_99 = arith.constant 0 : index
      %c0_100 = arith.constant 0 : index
      %c0_101 = arith.constant 0 : index
      %266 = vector.load %arg24[%c0_99, %c0_100, %c0_101] : memref<8x8x8xf32, #tpu.memory_space<vmem>>, vector<8x8x8xf32>
      tpu.vector_store %arg24[%c0_99, %c0_100, %c0_101], %265 {strides = array<i32>} : memref<8x8x8xf32, #tpu.memory_space<vmem>>, vector<8x8x8xf32>,
    } else {
    }
    %c0 = arith.constant 0 : index
    %c0_1 = arith.constant 0 : index
    %3 = vector.load %arg23[%c0, %c0_1] : memref<16x32xf32, #tpu.memory_space<vmem>>, vector<16x32xf32>
    %c0_2 = arith.constant 0 : index
    %c0_3 = arith.constant 0 : index
    %4 = vector.load %arg4[%c0_2, %c0_3] : memref<8x32xf32, #tpu.memory_space<vmem>>, vector<8x32xf32>
    %5 = tpu.concatenate %4, %4 in 0 : vector<8x32xf32>, vector<8x32xf32> -> vector<16x32xf32>
    %c0_4 = arith.constant 0 : index
    %c0_5 = arith.constant 0 : index
    %c0_6 = arith.constant 0 : index
    %6 = vector.load %arg24[%c0_4, %c0_5, %c0_6] : memref<8x8x8xf32, #tpu.memory_space<vmem>>, vector<8x8x8xf32>
    %c0_7 = arith.constant 0 : index
    %c0_8 = arith.constant 0 : index
    %c0_9 = arith.constant 0 : index
    %7 = vector.load %arg15[%c0_7, %c0_8, %c0_9] : memref<1x11x32xf32, #tpu.memory_space<vmem>>, vector<1x11x32xf32>
    %8 = vector.shape_cast %7 : vector<1x11x32xf32> to vector<11x32xf32>
    %c0_10 = arith.constant 0 : index
    %c0_11 = arith.constant 0 : index
    %c0_12 = arith.constant 0 : index
    %9 = vector.load %arg14[%c0_10, %c0_11, %c0_12] : memref<1x2x64xf32, #tpu.memory_space<vmem>>, vector<1x2x64xf32>
    %10 = vector.shape_cast %9 : vector<1x2x64xf32> to vector<2x64xf32>
    %11 = vector.extract_strided_slice %10 {offsets = [0, 0], sizes = [1, 64], strides = [1, 1]} : vector<2x64xf32> to vector<1x64xf32>
    %12 = vector.extract_strided_slice %10 {offsets = [1, 0], sizes = [1, 64], strides = [1, 1]} : vector<2x64xf32> to vector<1x64xf32>
    %13 = vector.extract_strided_slice %8 {offsets = [0, 0], sizes = [1, 32], strides = [1, 1]} : vector<11x32xf32> to vector<1x32xf32>
    %14 = vector.extract_strided_slice %8 {offsets = [1, 0], sizes = [1, 32], strides = [1, 1]} : vector<11x32xf32> to vector<1x32xf32>
    %15 = vector.extract_strided_slice %8 {offsets = [2, 0], sizes = [1, 32], strides = [1, 1]} : vector<11x32xf32> to vector<1x32xf32>
    %16 = vector.extract_strided_slice %8 {offsets = [3, 0], sizes = [1, 32], strides = [1, 1]} : vector<11x32xf32> to vector<1x32xf32>
    %17 = vector.extract_strided_slice %8 {offsets = [4, 0], sizes = [1, 32], strides = [1, 1]} : vector<11x32xf32> to vector<1x32xf32>
    %18 = vector.extract_strided_slice %8 {offsets = [5, 0], sizes = [1, 32], strides = [1, 1]} : vector<11x32xf32> to vector<1x32xf32>
    %19 = vector.extract_strided_slice %8 {offsets = [6, 0], sizes = [1, 32], strides = [1, 1]} : vector<11x32xf32> to vector<1x32xf32>
    %20 = vector.extract_strided_slice %8 {offsets = [7, 0], sizes = [1, 32], strides = [1, 1]} : vector<11x32xf32> to vector<1x32xf32>
    %21 = vector.extract_strided_slice %8 {offsets = [8, 0], sizes = [1, 32], strides = [1, 1]} : vector<11x32xf32> to vector<1x32xf32>
    %22 = vector.extract_strided_slice %8 {offsets = [9, 0], sizes = [1, 32], strides = [1, 1]} : vector<11x32xf32> to vector<1x32xf32>
    %23 = vector.extract_strided_slice %8 {offsets = [10, 0], sizes = [1, 32], strides = [1, 1]} : vector<11x32xf32> to vector<1x32xf32>
    %c0_13 = arith.constant 0 : index
    %c0_14 = arith.constant 0 : index
    %c0_15 = arith.constant 0 : index
    %24 = vector.load %arg16[%c0_13, %c0_14, %c0_15] : memref<1x1x64xf32, #tpu.memory_space<vmem>>, vector<1x1x64xf32>
    %25 = vector.shape_cast %24 : vector<1x1x64xf32> to vector<1x64xf32>
    %26 = arith.addf %3, %5 : vector<16x32xf32>
    %c0_16 = arith.constant 0 : index
    %c0_17 = arith.constant 0 : index
    %c0_18 = arith.constant 0 : index
    %27 = vector.load %arg6[%c0_16, %c0_17, %c0_18] : memref<1x32x64xf32, #tpu.memory_space<vmem>>, vector<1x32x64xf32>
    %28 = vector.shape_cast %27 : vector<1x32x64xf32> to vector<32x64xf32>
    %cst = arith.constant dense<0.000000e+00> : vector<16x64xf32>
    %29 = tpu.matmul %26, %28, %cst {dimension_numbers = #tpu.dot_dimension_numbers<[1], [0], [0], [1], [0, 0, 1, 1], [], []>} : vector<16x32xf32>, vector<32x64xf32>, vector<16x64xf32> -> vector<16x64xf32>
    %30 = vector.broadcast %11 : vector<1x64xf32> to vector<16x64xf32>
    %31 = arith.addf %29, %30 : vector<16x64xf32>
    %c0_19 = arith.constant 0 : index
    %c0_20 = arith.constant 0 : index
    %c0_21 = arith.constant 0 : index
    %32 = vector.load %arg7[%c0_19, %c0_20, %c0_21] : memref<1x32x32xf32, #tpu.memory_space<vmem>>, vector<1x32x32xf32>
    %33 = vector.shape_cast %32 : vector<1x32x32xf32> to vector<32x32xf32>
    %cst_22 = arith.constant dense<0.000000e+00> : vector<16x32xf32>
    %34 = tpu.matmul %3, %33, %cst_22 {dimension_numbers = #tpu.dot_dimension_numbers<[1], [0], [0], [1], [0, 0, 1, 1], [], []>} : vector<16x32xf32>, vector<32x32xf32>, vector<16x32xf32> -> vector<16x32xf32>
    %35 = vector.broadcast %13 : vector<1x32xf32> to vector<16x32xf32>
    %36 = arith.addf %34, %35 : vector<16x32xf32>
    %37 = vector.extract_strided_slice %31 {offsets = [0, 0], sizes = [16, 32], strides = [1, 1]} : vector<16x64xf32> to vector<16x32xf32>
    %38 = vector.extract_strided_slice %31 {offsets = [0, 32], sizes = [16, 32], strides = [1, 1]} : vector<16x64xf32> to vector<16x32xf32>
    %39 = vector.extract_strided_slice %37 {offsets = [0, 0], sizes = [8, 32], strides = [1, 1]} : vector<16x32xf32> to vector<8x32xf32>
    %40 = vector.extract_strided_slice %38 {offsets = [0, 0], sizes = [8, 32], strides = [1, 1]} : vector<16x32xf32> to vector<8x32xf32>
    %41 = vector.extract_strided_slice %36 {offsets = [0, 0], sizes = [8, 32], strides = [1, 1]} : vector<16x32xf32> to vector<8x32xf32>
    %42 = vector.extract_strided_slice %6 {offsets = [0, 0, 0], sizes = [4, 8, 8], strides = [1, 1, 1]} : vector<8x8x8xf32> to vector<4x8x8xf32>
    %cst_23 = arith.constant 0.353553385 : f32
    %43 = vector.broadcast %cst_23 : f32 to vector<8x32xf32>
    %44 = arith.mulf %39, %43 : vector<8x32xf32>
    %45 = vector.shape_cast %44 : vector<8x32xf32> to vector<8x4x8xf32>
    %46 = tpu.transpose %45, [1, 0, 2] : vector<8x4x8xf32> -> vector<4x8x8xf32>
    %47 = vector.shape_cast %40 : vector<8x32xf32> to vector<8x4x8xf32>
    %48 = tpu.transpose %47, [1, 0, 2] : vector<8x4x8xf32> -> vector<4x8x8xf32>
    %49 = vector.shape_cast %41 : vector<8x32xf32> to vector<8x4x8xf32>
    %50 = tpu.transpose %49, [1, 0, 2] : vector<8x4x8xf32> -> vector<4x8x8xf32>
    "tpu.trace_start"() <{level = 10 : i32, message = "hqd,hkd->hqk"}> : () -> ()
    %cst_24 = arith.constant dense<0.000000e+00> : vector<4x8x8xf32>
    %51 = tpu.matmul %46, %48, %cst_24 {dimension_numbers = #tpu.dot_dimension_numbers<[2], [2], [1], [1], [0, 0, 0, 1, 1, 1], [0], [0]>} : vector<4x8x8xf32>, vector<4x8x8xf32>, vector<4x8x8xf32> -> vector<4x8x8xf32>
    "tpu.trace_stop"() : () -> ()
    %52 = arith.addf %51, %42 : vector<4x8x8xf32>
    %cst_25 = arith.constant dense<0xFF800000> : vector<4x8xf32>
    %53 = vector.multi_reduction <maximumf>, %52, %cst_25 [2] : vector<4x8x8xf32> to vector<4x8xf32>
    %54 = vector.shape_cast %53 : vector<4x8xf32> to vector<4x8x1xf32>
    %55 = vector.broadcast %54 : vector<4x8x1xf32> to vector<4x8x8xf32>
    %56 = arith.subf %52, %55 : vector<4x8x8xf32>
    %57 = math.exp %56 : vector<4x8x8xf32>
    %cst_26 = arith.constant dense<0.000000e+00> : vector<4x8xf32>
    %58 = vector.multi_reduction <add>, %57, %cst_26 [2] : vector<4x8x8xf32> to vector<4x8xf32>
    %59 = vector.shape_cast %58 : vector<4x8xf32> to vector<4x8x1xf32>
    %60 = vector.broadcast %59 : vector<4x8x1xf32> to vector<4x8x8xf32>
    %61 = arith.divf %57, %60 : vector<4x8x8xf32>
    "tpu.trace_start"() <{level = 10 : i32, message = "hqk,hkd->hqd"}> : () -> ()
    %cst_27 = arith.constant dense<0.000000e+00> : vector<4x8x8xf32>
    %62 = tpu.matmul %61, %50, %cst_27 {dimension_numbers = #tpu.dot_dimension_numbers<[2], [1], [1], [2], [0, 0, 0, 1, 1, 2], [0], [0]>} : vector<4x8x8xf32>, vector<4x8x8xf32>, vector<4x8x8xf32> -> vector<4x8x8xf32>
    "tpu.trace_stop"() : () -> ()
    %63 = tpu.transpose %62, [1, 0, 2] : vector<4x8x8xf32> -> vector<8x4x8xf32>
    %64 = vector.shape_cast %63 : vector<8x4x8xf32> to vector<8x32xf32>
    %65 = vector.extract_strided_slice %37 {offsets = [8, 0], sizes = [8, 32], strides = [1, 1]} : vector<16x32xf32> to vector<8x32xf32>
    %66 = vector.extract_strided_slice %38 {offsets = [8, 0], sizes = [8, 32], strides = [1, 1]} : vector<16x32xf32> to vector<8x32xf32>
    %67 = vector.extract_strided_slice %36 {offsets = [8, 0], sizes = [8, 32], strides = [1, 1]} : vector<16x32xf32> to vector<8x32xf32>
    %68 = vector.extract_strided_slice %6 {offsets = [4, 0, 0], sizes = [4, 8, 8], strides = [1, 1, 1]} : vector<8x8x8xf32> to vector<4x8x8xf32>
    %cst_28 = arith.constant 0.353553385 : f32
    %69 = vector.broadcast %cst_28 : f32 to vector<8x32xf32>
    %70 = arith.mulf %65, %69 : vector<8x32xf32>
    %71 = vector.shape_cast %70 : vector<8x32xf32> to vector<8x4x8xf32>
    %72 = tpu.transpose %71, [1, 0, 2] : vector<8x4x8xf32> -> vector<4x8x8xf32>
    %73 = vector.shape_cast %66 : vector<8x32xf32> to vector<8x4x8xf32>
    %74 = tpu.transpose %73, [1, 0, 2] : vector<8x4x8xf32> -> vector<4x8x8xf32>
    %75 = vector.shape_cast %67 : vector<8x32xf32> to vector<8x4x8xf32>
    %76 = tpu.transpose %75, [1, 0, 2] : vector<8x4x8xf32> -> vector<4x8x8xf32>
    "tpu.trace_start"() <{level = 10 : i32, message = "hqd,hkd->hqk"}> : () -> ()
    %cst_29 = arith.constant dense<0.000000e+00> : vector<4x8x8xf32>
    %77 = tpu.matmul %72, %74, %cst_29 {dimension_numbers = #tpu.dot_dimension_numbers<[2], [2], [1], [1], [0, 0, 0, 1, 1, 1], [0], [0]>} : vector<4x8x8xf32>, vector<4x8x8xf32>, vector<4x8x8xf32> -> vector<4x8x8xf32>
    "tpu.trace_stop"() : () -> ()
    %78 = arith.addf %77, %68 : vector<4x8x8xf32>
    %cst_30 = arith.constant dense<0xFF800000> : vector<4x8xf32>
    %79 = vector.multi_reduction <maximumf>, %78, %cst_30 [2] : vector<4x8x8xf32> to vector<4x8xf32>
    %80 = vector.shape_cast %79 : vector<4x8xf32> to vector<4x8x1xf32>
    %81 = vector.broadcast %80 : vector<4x8x1xf32> to vector<4x8x8xf32>
    %82 = arith.subf %78, %81 : vector<4x8x8xf32>
    %83 = math.exp %82 : vector<4x8x8xf32>
    %cst_31 = arith.constant dense<0.000000e+00> : vector<4x8xf32>
    %84 = vector.multi_reduction <add>, %83, %cst_31 [2] : vector<4x8x8xf32> to vector<4x8xf32>
    %85 = vector.shape_cast %84 : vector<4x8xf32> to vector<4x8x1xf32>
    %86 = vector.broadcast %85 : vector<4x8x1xf32> to vector<4x8x8xf32>
    %87 = arith.divf %83, %86 : vector<4x8x8xf32>
    "tpu.trace_start"() <{level = 10 : i32, message = "hqk,hkd->hqd"}> : () -> ()
    %cst_32 = arith.constant dense<0.000000e+00> : vector<4x8x8xf32>
    %88 = tpu.matmul %87, %76, %cst_32 {dimension_numbers = #tpu.dot_dimension_numbers<[2], [1], [1], [2], [0, 0, 0, 1, 1, 2], [0], [0]>} : vector<4x8x8xf32>, vector<4x8x8xf32>, vector<4x8x8xf32> -> vector<4x8x8xf32>
    "tpu.trace_stop"() : () -> ()
    %89 = tpu.transpose %88, [1, 0, 2] : vector<4x8x8xf32> -> vector<8x4x8xf32>
    %90 = vector.shape_cast %89 : vector<8x4x8xf32> to vector<8x32xf32>
    %91 = tpu.concatenate %64, %90 in 0 : vector<8x32xf32>, vector<8x32xf32> -> vector<16x32xf32>
    %c0_33 = arith.constant 0 : index
    %c0_34 = arith.constant 0 : index
    %c0_35 = arith.constant 0 : index
    %92 = vector.load %arg8[%c0_33, %c0_34, %c0_35] : memref<1x32x32xf32, #tpu.memory_space<vmem>>, vector<1x32x32xf32>
    %93 = vector.shape_cast %92 : vector<1x32x32xf32> to vector<32x32xf32>
    %cst_36 = arith.constant dense<0.000000e+00> : vector<16x32xf32>
    %94 = tpu.matmul %91, %93, %cst_36 {dimension_numbers = #tpu.dot_dimension_numbers<[1], [0], [0], [1], [0, 0, 1, 1], [], []>} : vector<16x32xf32>, vector<32x32xf32>, vector<16x32xf32> -> vector<16x32xf32>
    %95 = vector.broadcast %14 : vector<1x32xf32> to vector<16x32xf32>
    %96 = arith.addf %94, %95 : vector<16x32xf32>
    %97 = arith.addf %3, %96 : vector<16x32xf32>
    %cst_37 = arith.constant dense<0.000000e+00> : vector<16xf32>
    %98 = vector.multi_reduction <add>, %97, %cst_37 [1] : vector<16x32xf32> to vector<16xf32>
    %99 = vector.shape_cast %98 : vector<16xf32> to vector<16x1xf32>
    %cst_38 = arith.constant 3.200000e+01 : f32
    %100 = vector.broadcast %cst_38 : f32 to vector<16x1xf32>
    %101 = arith.divf %99, %100 : vector<16x1xf32>
    %102 = vector.broadcast %101 : vector<16x1xf32> to vector<16x32xf32>
    %103 = arith.subf %97, %102 : vector<16x32xf32>
    %104 = arith.mulf %103, %103 : vector<16x32xf32>
    %cst_39 = arith.constant dense<0.000000e+00> : vector<16xf32>
    %105 = vector.multi_reduction <add>, %104, %cst_39 [1] : vector<16x32xf32> to vector<16xf32>
    %106 = vector.shape_cast %105 : vector<16xf32> to vector<16x1xf32>
    %cst_40 = arith.constant 3.200000e+01 : f32
    %107 = vector.broadcast %cst_40 : f32 to vector<16x1xf32>
    %108 = arith.divf %106, %107 : vector<16x1xf32>
    %109 = vector.broadcast %101 : vector<16x1xf32> to vector<16x32xf32>
    %110 = arith.subf %97, %109 : vector<16x32xf32>
    %cst_41 = arith.constant 9.99999974E-6 : f32
    %111 = vector.broadcast %cst_41 : f32 to vector<16x1xf32>
    %112 = arith.addf %108, %111 : vector<16x1xf32>
    %113 = math.rsqrt %112 : vector<16x1xf32>
    %114 = vector.broadcast %113 : vector<16x1xf32> to vector<16x32xf32>
    %115 = arith.mulf %110, %114 : vector<16x32xf32>
    %116 = vector.broadcast %18 : vector<1x32xf32> to vector<16x32xf32>
    %117 = arith.mulf %115, %116 : vector<16x32xf32>
    %118 = vector.broadcast %19 : vector<1x32xf32> to vector<16x32xf32>
    %119 = arith.addf %117, %118 : vector<16x32xf32>
    %120 = arith.addf %119, %5 : vector<16x32xf32>
    %c0_42 = arith.constant 0 : index
    %c0_43 = arith.constant 0 : index
    %c0_44 = arith.constant 0 : index
    %121 = vector.load %arg9[%c0_42, %c0_43, %c0_44] : memref<1x32x32xf32, #tpu.memory_space<vmem>>, vector<1x32x32xf32>
    %122 = vector.shape_cast %121 : vector<1x32x32xf32> to vector<32x32xf32>
    %cst_45 = arith.constant dense<0.000000e+00> : vector<16x32xf32>
    %123 = tpu.matmul %120, %122, %cst_45 {dimension_numbers = #tpu.dot_dimension_numbers<[1], [0], [0], [1], [0, 0, 1, 1], [], []>} : vector<16x32xf32>, vector<32x32xf32>, vector<16x32xf32> -> vector<16x32xf32>
    %124 = vector.broadcast %15 : vector<1x32xf32> to vector<16x32xf32>
    %125 = arith.addf %123, %124 : vector<16x32xf32>
    %c0_46 = arith.constant 0 : index
    %c0_47 = arith.constant 0 : index
    %c0_48 = arith.constant 0 : index
    %126 = vector.load %arg3[%c0_46, %c0_47, %c0_48] : memref<2x16x32xf32, #tpu.memory_space<vmem>>, vector<2x16x32xf32>
    %127 = vector.shape_cast %126 : vector<2x16x32xf32> to vector<32x32xf32>
    %c0_49 = arith.constant 0 : index
    %c0_50 = arith.constant 0 : index
    %c0_51 = arith.constant 0 : index
    %128 = vector.load %arg10[%c0_49, %c0_50, %c0_51] : memref<1x32x64xf32, #tpu.memory_space<vmem>>, vector<1x32x64xf32>
    %129 = vector.shape_cast %128 : vector<1x32x64xf32> to vector<32x64xf32>
    %cst_52 = arith.constant dense<0.000000e+00> : vector<32x64xf32>
    %130 = tpu.matmul %127, %129, %cst_52 {dimension_numbers = #tpu.dot_dimension_numbers<[1], [0], [0], [1], [0, 0, 1, 1], [], []>} : vector<32x32xf32>, vector<32x64xf32>, vector<32x64xf32> -> vector<32x64xf32>
    %131 = vector.broadcast %12 : vector<1x64xf32> to vector<32x64xf32>
    %132 = arith.addf %130, %131 : vector<32x64xf32>
    %133 = vector.extract_strided_slice %132 {offsets = [0, 0], sizes = [32, 32], strides = [1, 1]} : vector<32x64xf32> to vector<32x32xf32>
    %134 = vector.extract_strided_slice %132 {offsets = [0, 32], sizes = [32, 32], strides = [1, 1]} : vector<32x64xf32> to vector<32x32xf32>
    %135 = vector.extract_strided_slice %125 {offsets = [0, 0], sizes = [8, 32], strides = [1, 1]} : vector<16x32xf32> to vector<8x32xf32>
    %136 = vector.extract_strided_slice %133 {offsets = [0, 0], sizes = [16, 32], strides = [1, 1]} : vector<32x32xf32> to vector<16x32xf32>
    %137 = vector.extract_strided_slice %134 {offsets = [0, 0], sizes = [16, 32], strides = [1, 1]} : vector<32x32xf32> to vector<16x32xf32>
    %cst_53 = arith.constant 0.353553385 : f32
    %138 = vector.broadcast %cst_53 : f32 to vector<8x32xf32>
    %139 = arith.mulf %135, %138 : vector<8x32xf32>
    %140 = vector.shape_cast %139 : vector<8x32xf32> to vector<8x4x8xf32>
    %141 = tpu.transpose %140, [1, 0, 2] : vector<8x4x8xf32> -> vector<4x8x8xf32>
    %142 = vector.shape_cast %136 : vector<16x32xf32> to vector<16x4x8xf32>
    %143 = tpu.transpose %142, [1, 0, 2] : vector<16x4x8xf32> -> vector<4x16x8xf32>
    %144 = vector.shape_cast %137 : vector<16x32xf32> to vector<16x4x8xf32>
    %145 = tpu.transpose %144, [1, 0, 2] : vector<16x4x8xf32> -> vector<4x16x8xf32>
    "tpu.trace_start"() <{level = 10 : i32, message = "hqd,hkd->hqk"}> : () -> ()
    %cst_54 = arith.constant dense<0.000000e+00> : vector<4x8x16xf32>
    %146 = tpu.matmul %141, %143, %cst_54 {dimension_numbers = #tpu.dot_dimension_numbers<[2], [2], [1], [1], [0, 0, 0, 1, 1, 1], [0], [0]>} : vector<4x8x8xf32>, vector<4x16x8xf32>, vector<4x8x16xf32> -> vector<4x8x16xf32>
    "tpu.trace_stop"() : () -> ()
    %cst_55 = arith.constant dense<0xFF800000> : vector<4x8xf32>
    %147 = vector.multi_reduction <maximumf>, %146, %cst_55 [2] : vector<4x8x16xf32> to vector<4x8xf32>
    %148 = vector.shape_cast %147 : vector<4x8xf32> to vector<4x8x1xf32>
    %149 = vector.broadcast %148 : vector<4x8x1xf32> to vector<4x8x16xf32>
    %150 = arith.subf %146, %149 : vector<4x8x16xf32>
    %151 = math.exp %150 : vector<4x8x16xf32>
    %cst_56 = arith.constant dense<0.000000e+00> : vector<4x8xf32>
    %152 = vector.multi_reduction <add>, %151, %cst_56 [2] : vector<4x8x16xf32> to vector<4x8xf32>
    %153 = vector.shape_cast %152 : vector<4x8xf32> to vector<4x8x1xf32>
    %154 = vector.broadcast %153 : vector<4x8x1xf32> to vector<4x8x16xf32>
    %155 = arith.divf %151, %154 : vector<4x8x16xf32>
    "tpu.trace_start"() <{level = 10 : i32, message = "hqk,hkd->hqd"}> : () -> ()
    %cst_57 = arith.constant dense<0.000000e+00> : vector<4x8x8xf32>
    %156 = tpu.matmul %155, %145, %cst_57 {dimension_numbers = #tpu.dot_dimension_numbers<[2], [1], [1], [2], [0, 0, 0, 1, 1, 2], [0], [0]>} : vector<4x8x16xf32>, vector<4x16x8xf32>, vector<4x8x8xf32> -> vector<4x8x8xf32>
    "tpu.trace_stop"() : () -> ()
    %157 = tpu.transpose %156, [1, 0, 2] : vector<4x8x8xf32> -> vector<8x4x8xf32>
    %158 = vector.shape_cast %157 : vector<8x4x8xf32> to vector<8x32xf32>
    %159 = vector.extract_strided_slice %125 {offsets = [8, 0], sizes = [8, 32], strides = [1, 1]} : vector<16x32xf32> to vector<8x32xf32>
    %160 = vector.extract_strided_slice %133 {offsets = [16, 0], sizes = [16, 32], strides = [1, 1]} : vector<32x32xf32> to vector<16x32xf32>
    %161 = vector.extract_strided_slice %134 {offsets = [16, 0], sizes = [16, 32], strides = [1, 1]} : vector<32x32xf32> to vector<16x32xf32>
    %cst_58 = arith.constant 0.353553385 : f32
    %162 = vector.broadcast %cst_58 : f32 to vector<8x32xf32>
    %163 = arith.mulf %159, %162 : vector<8x32xf32>
    %164 = vector.shape_cast %163 : vector<8x32xf32> to vector<8x4x8xf32>
    %165 = tpu.transpose %164, [1, 0, 2] : vector<8x4x8xf32> -> vector<4x8x8xf32>
    %166 = vector.shape_cast %160 : vector<16x32xf32> to vector<16x4x8xf32>
    %167 = tpu.transpose %166, [1, 0, 2] : vector<16x4x8xf32> -> vector<4x16x8xf32>
    %168 = vector.shape_cast %161 : vector<16x32xf32> to vector<16x4x8xf32>
    %169 = tpu.transpose %168, [1, 0, 2] : vector<16x4x8xf32> -> vector<4x16x8xf32>
    "tpu.trace_start"() <{level = 10 : i32, message = "hqd,hkd->hqk"}> : () -> ()
    %cst_59 = arith.constant dense<0.000000e+00> : vector<4x8x16xf32>
    %170 = tpu.matmul %165, %167, %cst_59 {dimension_numbers = #tpu.dot_dimension_numbers<[2], [2], [1], [1], [0, 0, 0, 1, 1, 1], [0], [0]>} : vector<4x8x8xf32>, vector<4x16x8xf32>, vector<4x8x16xf32> -> vector<4x8x16xf32>
    "tpu.trace_stop"() : () -> ()
    %cst_60 = arith.constant dense<0xFF800000> : vector<4x8xf32>
    %171 = vector.multi_reduction <maximumf>, %170, %cst_60 [2] : vector<4x8x16xf32> to vector<4x8xf32>
    %172 = vector.shape_cast %171 : vector<4x8xf32> to vector<4x8x1xf32>
    %173 = vector.broadcast %172 : vector<4x8x1xf32> to vector<4x8x16xf32>
    %174 = arith.subf %170, %173 : vector<4x8x16xf32>
    %175 = math.exp %174 : vector<4x8x16xf32>
    %cst_61 = arith.constant dense<0.000000e+00> : vector<4x8xf32>
    %176 = vector.multi_reduction <add>, %175, %cst_61 [2] : vector<4x8x16xf32> to vector<4x8xf32>
    %177 = vector.shape_cast %176 : vector<4x8xf32> to vector<4x8x1xf32>
    %178 = vector.broadcast %177 : vector<4x8x1xf32> to vector<4x8x16xf32>
    %179 = arith.divf %175, %178 : vector<4x8x16xf32>
    "tpu.trace_start"() <{level = 10 : i32, message = "hqk,hkd->hqd"}> : () -> ()
    %cst_62 = arith.constant dense<0.000000e+00> : vector<4x8x8xf32>
    %180 = tpu.matmul %179, %169, %cst_62 {dimension_numbers = #tpu.dot_dimension_numbers<[2], [1], [1], [2], [0, 0, 0, 1, 1, 2], [0], [0]>} : vector<4x8x16xf32>, vector<4x16x8xf32>, vector<4x8x8xf32> -> vector<4x8x8xf32>
    "tpu.trace_stop"() : () -> ()
    %181 = tpu.transpose %180, [1, 0, 2] : vector<4x8x8xf32> -> vector<8x4x8xf32>
    %182 = vector.shape_cast %181 : vector<8x4x8xf32> to vector<8x32xf32>
    %183 = tpu.concatenate %158, %182 in 0 : vector<8x32xf32>, vector<8x32xf32> -> vector<16x32xf32>
    %c0_63 = arith.constant 0 : index
    %c0_64 = arith.constant 0 : index
    %c0_65 = arith.constant 0 : index
    %184 = vector.load %arg11[%c0_63, %c0_64, %c0_65] : memref<1x32x32xf32, #tpu.memory_space<vmem>>, vector<1x32x32xf32>
    %185 = vector.shape_cast %184 : vector<1x32x32xf32> to vector<32x32xf32>
    %cst_66 = arith.constant dense<0.000000e+00> : vector<16x32xf32>
    %186 = tpu.matmul %183, %185, %cst_66 {dimension_numbers = #tpu.dot_dimension_numbers<[1], [0], [0], [1], [0, 0, 1, 1], [], []>} : vector<16x32xf32>, vector<32x32xf32>, vector<16x32xf32> -> vector<16x32xf32>
    %187 = vector.broadcast %16 : vector<1x32xf32> to vector<16x32xf32>
    %188 = arith.addf %186, %187 : vector<16x32xf32>
    %189 = arith.addf %119, %188 : vector<16x32xf32>
    %cst_67 = arith.constant dense<0.000000e+00> : vector<16xf32>
    %190 = vector.multi_reduction <add>, %189, %cst_67 [1] : vector<16x32xf32> to vector<16xf32>
    %191 = vector.shape_cast %190 : vector<16xf32> to vector<16x1xf32>
    %cst_68 = arith.constant 3.200000e+01 : f32
    %192 = vector.broadcast %cst_68 : f32 to vector<16x1xf32>
    %193 = arith.divf %191, %192 : vector<16x1xf32>
    %194 = vector.broadcast %193 : vector<16x1xf32> to vector<16x32xf32>
    %195 = arith.subf %189, %194 : vector<16x32xf32>
    %196 = arith.mulf %195, %195 : vector<16x32xf32>
    %cst_69 = arith.constant dense<0.000000e+00> : vector<16xf32>
    %197 = vector.multi_reduction <add>, %196, %cst_69 [1] : vector<16x32xf32> to vector<16xf32>
    %198 = vector.shape_cast %197 : vector<16xf32> to vector<16x1xf32>
    %cst_70 = arith.constant 3.200000e+01 : f32
    %199 = vector.broadcast %cst_70 : f32 to vector<16x1xf32>
    %200 = arith.divf %198, %199 : vector<16x1xf32>
    %201 = vector.broadcast %193 : vector<16x1xf32> to vector<16x32xf32>
    %202 = arith.subf %189, %201 : vector<16x32xf32>
    %cst_71 = arith.constant 9.99999974E-6 : f32
    %203 = vector.broadcast %cst_71 : f32 to vector<16x1xf32>
    %204 = arith.addf %200, %203 : vector<16x1xf32>
    %205 = math.rsqrt %204 : vector<16x1xf32>
    %206 = vector.broadcast %205 : vector<16x1xf32> to vector<16x32xf32>
    %207 = arith.mulf %202, %206 : vector<16x32xf32>
    %208 = vector.broadcast %20 : vector<1x32xf32> to vector<16x32xf32>
    %209 = arith.mulf %207, %208 : vector<16x32xf32>
    %210 = vector.broadcast %21 : vector<1x32xf32> to vector<16x32xf32>
    %211 = arith.addf %209, %210 : vector<16x32xf32>
    %c0_72 = arith.constant 0 : index
    %c0_73 = arith.constant 0 : index
    %c0_74 = arith.constant 0 : index
    %212 = vector.load %arg12[%c0_72, %c0_73, %c0_74] : memref<1x32x64xf32, #tpu.memory_space<vmem>>, vector<1x32x64xf32>
    %213 = vector.shape_cast %212 : vector<1x32x64xf32> to vector<32x64xf32>
    %cst_75 = arith.constant dense<0.000000e+00> : vector<16x64xf32>
    %214 = tpu.matmul %211, %213, %cst_75 {dimension_numbers = #tpu.dot_dimension_numbers<[1], [0], [0], [1], [0, 0, 1, 1], [], []>} : vector<16x32xf32>, vector<32x64xf32>, vector<16x64xf32> -> vector<16x64xf32>
    %215 = vector.broadcast %25 : vector<1x64xf32> to vector<16x64xf32>
    %216 = arith.addf %214, %215 : vector<16x64xf32>
    %cst_76 = arith.constant 0.000000e+00 : f32
    %217 = vector.broadcast %cst_76 : f32 to vector<16x64xf32>
    %218 = arith.maximumf %216, %217 : vector<16x64xf32>
    %c0_77 = arith.constant 0 : index
    %c0_78 = arith.constant 0 : index
    %c0_79 = arith.constant 0 : index
    %219 = vector.load %arg13[%c0_77, %c0_78, %c0_79] : memref<1x64x32xf32, #tpu.memory_space<vmem>>, vector<1x64x32xf32>
    %220 = vector.shape_cast %219 : vector<1x64x32xf32> to vector<64x32xf32>
    %cst_80 = arith.constant dense<0.000000e+00> : vector<16x32xf32>
    %221 = tpu.matmul %218, %220, %cst_80 {dimension_numbers = #tpu.dot_dimension_numbers<[1], [0], [0], [1], [0, 0, 1, 1], [], []>} : vector<16x64xf32>, vector<64x32xf32>, vector<16x32xf32> -> vector<16x32xf32>
    %222 = vector.broadcast %17 : vector<1x32xf32> to vector<16x32xf32>
    %223 = arith.addf %221, %222 : vector<16x32xf32>
    %224 = arith.addf %211, %223 : vector<16x32xf32>
    %cst_81 = arith.constant dense<0.000000e+00> : vector<16xf32>
    %225 = vector.multi_reduction <add>, %224, %cst_81 [1] : vector<16x32xf32> to vector<16xf32>
    %226 = vector.shape_cast %225 : vector<16xf32> to vector<16x1xf32>
    %cst_82 = arith.constant 3.200000e+01 : f32
    %227 = vector.broadcast %cst_82 : f32 to vector<16x1xf32>
    %228 = arith.divf %226, %227 : vector<16x1xf32>
    %229 = vector.broadcast %228 : vector<16x1xf32> to vector<16x32xf32>
    %230 = arith.subf %224, %229 : vector<16x32xf32>
    %231 = arith.mulf %230, %230 : vector<16x32xf32>
    %cst_83 = arith.constant dense<0.000000e+00> : vector<16xf32>
    %232 = vector.multi_reduction <add>, %231, %cst_83 [1] : vector<16x32xf32> to vector<16xf32>
    %233 = vector.shape_cast %232 : vector<16xf32> to vector<16x1xf32>
    %cst_84 = arith.constant 3.200000e+01 : f32
    %234 = vector.broadcast %cst_84 : f32 to vector<16x1xf32>
    %235 = arith.divf %233, %234 : vector<16x1xf32>
    %236 = vector.broadcast %228 : vector<16x1xf32> to vector<16x32xf32>
    %237 = arith.subf %224, %236 : vector<16x32xf32>
    %cst_85 = arith.constant 9.99999974E-6 : f32
    %238 = vector.broadcast %cst_85 : f32 to vector<16x1xf32>
    %239 = arith.addf %235, %238 : vector<16x1xf32>
    %240 = math.rsqrt %239 : vector<16x1xf32>
    %241 = vector.broadcast %240 : vector<16x1xf32> to vector<16x32xf32>
    %242 = arith.mulf %237, %241 : vector<16x32xf32>
    %243 = vector.broadcast %22 : vector<1x32xf32> to vector<16x32xf32>
    %244 = arith.mulf %242, %243 : vector<16x32xf32>
    %245 = vector.broadcast %23 : vector<1x32xf32> to vector<16x32xf32>
    %246 = arith.addf %244, %245 : vector<16x32xf32>
    %c0_86 = arith.constant 0 : index
    %c0_87 = arith.constant 0 : index
    %247 = vector.load %arg23[%c0_86, %c0_87] : memref<16x32xf32, #tpu.memory_space<vmem>>, vector<16x32xf32>
    tpu.vector_store %arg23[%c0_86, %c0_87], %246 {strides = array<i32>} : memref<16x32xf32, #tpu.memory_space<vmem>>, vector<16x32xf32>,
    %c1_i32 = arith.constant 1 : i32
    %248 = arith.cmpi eq, %arg1, %c1_i32 : i32
    %249 = arith.extui %248 : i1 to i32
    %c0_i32_88 = arith.constant 0 : i32
    %250 = arith.cmpi ne, %249, %c0_i32_88 : i32
    scf.if %250 {
      %c0_89 = arith.constant 0 : index
      %c0_90 = arith.constant 0 : index
      %251 = vector.load %arg17[%c0_89, %c0_90] : memref<4x32xf32, #tpu.memory_space<vmem>>, vector<4x32xf32>
      %252 = vector.extract_strided_slice %251 {offsets = [0, 0], sizes = [1, 32], strides = [1, 1]} : vector<4x32xf32> to vector<1x32xf32>
      %253 = vector.extract_strided_slice %251 {offsets = [1, 0], sizes = [1, 32], strides = [1, 1]} : vector<4x32xf32> to vector<1x32xf32>
      %cst_91 = arith.constant dense<0.000000e+00> : vector<16xf32>
      %254 = vector.multi_reduction <add>, %246, %cst_91 [1] : vector<16x32xf32> to vector<16xf32>
      %255 = vector.shape_cast %254 : vector<16xf32> to vector<16x1xf32>
      %cst_92 = arith.constant 3.200000e+01 : f32
      %256 = vector.broadcast %cst_92 : f32 to vector<16x1xf32>
      %257 = arith.divf %255, %256 : vector<16x1xf32>
      %258 = vector.broadcast %257 : vector<16x1xf32> to vector<16x32xf32>
      %259 = arith.subf %246, %258 : vector<16x32xf32>
      %260 = arith.mulf %259, %259 : vector<16x32xf32>
      %cst_93 = arith.constant dense<0.000000e+00> : vector<16xf32>
      %261 = vector.multi_reduction <add>, %260, %cst_93 [1] : vector<16x32xf32> to vector<16xf32>
      %262 = vector.shape_cast %261 : vector<16xf32> to vector<16x1xf32>
      %cst_94 = arith.constant 3.200000e+01 : f32
      %263 = vector.broadcast %cst_94 : f32 to vector<16x1xf32>
      %264 = arith.divf %262, %263 : vector<16x1xf32>
      %265 = vector.broadcast %257 : vector<16x1xf32> to vector<16x32xf32>
      %266 = arith.subf %246, %265 : vector<16x32xf32>
      %cst_95 = arith.constant 9.99999974E-6 : f32
      %267 = vector.broadcast %cst_95 : f32 to vector<16x1xf32>
      %268 = arith.addf %264, %267 : vector<16x1xf32>
      %269 = math.rsqrt %268 : vector<16x1xf32>
      %270 = vector.broadcast %269 : vector<16x1xf32> to vector<16x32xf32>
      %271 = arith.mulf %266, %270 : vector<16x32xf32>
      %272 = vector.broadcast %252 : vector<1x32xf32> to vector<16x32xf32>
      %273 = arith.mulf %271, %272 : vector<16x32xf32>
      %274 = vector.broadcast %253 : vector<1x32xf32> to vector<16x32xf32>
      %275 = arith.addf %273, %274 : vector<16x32xf32>
      %c0_96 = arith.constant 0 : index
      %c0_97 = arith.constant 0 : index
      %276 = vector.load %arg18[%c0_96, %c0_97] : memref<32x32xf32, #tpu.memory_space<vmem>>, vector<32x32xf32>
      %cst_98 = arith.constant dense<0.000000e+00> : vector<16x32xf32>
      %277 = tpu.matmul %275, %276, %cst_98 {dimension_numbers = #tpu.dot_dimension_numbers<[1], [0], [0], [1], [0, 0, 1, 1], [], []>} : vector<16x32xf32>, vector<32x32xf32>, vector<16x32xf32> -> vector<16x32xf32>
      %278 = vector.extract_strided_slice %251 {offsets = [2, 0], sizes = [1, 32], strides = [1, 1]} : vector<4x32xf32> to vector<1x32xf32>
      %279 = vector.broadcast %278 : vector<1x32xf32> to vector<16x32xf32>
      %280 = arith.addf %277, %279 : vector<16x32xf32>
      %cst_99 = arith.constant 0.000000e+00 : f32
      %281 = vector.broadcast %cst_99 : f32 to vector<16x32xf32>
      %282 = arith.maximumf %280, %281 : vector<16x32xf32>
      %c0_100 = arith.constant 0 : index
      %c0_101 = arith.constant 0 : index
      %283 = vector.load %arg19[%c0_100, %c0_101] : memref<32x32xf32, #tpu.memory_space<vmem>>, vector<32x32xf32>
      %cst_102 = arith.constant dense<0.000000e+00> : vector<16x32xf32>
      %284 = tpu.matmul %282, %283, %cst_102 {dimension_numbers = #tpu.dot_dimension_numbers<[1], [0], [0], [1], [0, 0, 1, 1], [], []>} : vector<16x32xf32>, vector<32x32xf32>, vector<16x32xf32> -> vector<16x32xf32>
      %285 = vector.extract_strided_slice %251 {offsets = [3, 0], sizes = [1, 32], strides = [1, 1]} : vector<4x32xf32> to vector<1x32xf32>
      %286 = vector.broadcast %285 : vector<1x32xf32> to vector<16x32xf32>
      %287 = arith.addf %284, %286 : vector<16x32xf32>
      %cst_103 = arith.constant 0.000000e+00 : f32
      %288 = vector.broadcast %cst_103 : f32 to vector<16x32xf32>
      %289 = arith.maximumf %287, %288 : vector<16x32xf32>
      %c0_104 = arith.constant 0 : index
      %c0_105 = arith.constant 0 : index
      %290 = vector.load %arg20[%c0_104, %c0_105] : memref<32x128xf32, #tpu.memory_space<vmem>>, vector<32x128xf32>
      %cst_106 = arith.constant dense<0.000000e+00> : vector<16x128xf32>
      %291 = tpu.matmul %289, %290, %cst_106 {dimension_numbers = #tpu.dot_dimension_numbers<[1], [0], [0], [1], [0, 0, 1, 1], [], []>} : vector<16x32xf32>, vector<32x128xf32>, vector<16x128xf32> -> vector<16x128xf32>
      %c0_107 = arith.constant 0 : index
      %c0_108 = arith.constant 0 : index
      %292 = vector.load %arg21[%c0_107, %c0_108] : memref<1x128xf32, #tpu.memory_space<vmem>>, vector<1x128xf32>
      %293 = vector.broadcast %292 : vector<1x128xf32> to vector<16x128xf32>
      %294 = arith.addf %291, %293 : vector<16x128xf32>
      %295 = vector.shape_cast %294 : vector<16x128xf32> to vector<2x8x128xf32>
      %c0_109 = arith.constant 0 : index
      %c0_110 = arith.constant 0 : index
      %c0_111 = arith.constant 0 : index
      %296 = vector.load %arg22[%c0_109, %c0_110, %c0_111] : memref<2x8x128xf32, #tpu.memory_space<vmem>>, vector<2x8x128xf32>
      tpu.vector_store %arg22[%c0_109, %c0_110, %c0_111], %295 {strides = array<i32>} : memref<2x8x128xf32, #tpu.memory_space<vmem>>, vector<2x8x128xf32>,
    } else {
    }
    return
  }
  func.func @transform_0(%arg0: i32, %arg1: i32) -> (i32, i32, i32) {
    %c0_i32 = arith.constant 0 : i32
    %c0_i32_0 = arith.constant 0 : i32
    %c0_i32_1 = arith.constant 0 : i32
    return %arg0, %c0_i32, %c0_i32_0 : i32, i32, i32
  }
  func.func @transform_1(%arg0: i32, %arg1: i32) -> (i32, i32, i32) {
    %c0_i32 = arith.constant 0 : i32
    %c0_i32_0 = arith.constant 0 : i32
    %c0_i32_1 = arith.constant 0 : i32
    return %arg0, %c0_i32, %c0_i32_0 : i32, i32, i32
  }
  func.func @transform_2(%arg0: i32, %arg1: i32) -> (i32, i32) {
    %c0_i32 = arith.constant 0 : i32
    %c0_i32_0 = arith.constant 0 : i32
    %c0_i32_1 = arith.constant 0 : i32
    return %c0_i32, %c0_i32_0 : i32, i32
  }
  func.func @transform_3(%arg0: i32, %arg1: i32) -> (i32, i32, i32) {
    %c0_i32 = arith.constant 0 : i32
    %c0_i32_0 = arith.constant 0 : i32
    %c0_i32_1 = arith.constant 0 : i32
    return %arg0, %c0_i32, %c0_i32_0 : i32, i32, i32
  }
  func.func @transform_4(%arg0: i32, %arg1: i32) -> (i32, i32, i32) {
    %c0_i32 = arith.constant 0 : i32
    %c0_i32_0 = arith.constant 0 : i32
    %c0_i32_1 = arith.constant 0 : i32
    return %arg1, %c0_i32, %c0_i32_0 : i32, i32, i32
  }
  func.func @transform_5(%arg0: i32, %arg1: i32) -> (i32, i32, i32) {
    %c0_i32 = arith.constant 0 : i32
    %c0_i32_0 = arith.constant 0 : i32
    %c0_i32_1 = arith.constant 0 : i32
    return %arg1, %c0_i32, %c0_i32_0 : i32, i32, i32
  }
  func.func @transform_6(%arg0: i32, %arg1: i32) -> (i32, i32, i32) {
    %c0_i32 = arith.constant 0 : i32
    %c0_i32_0 = arith.constant 0 : i32
    %c0_i32_1 = arith.constant 0 : i32
    return %arg1, %c0_i32, %c0_i32_0 : i32, i32, i32
  }
  func.func @transform_7(%arg0: i32, %arg1: i32) -> (i32, i32, i32) {
    %c0_i32 = arith.constant 0 : i32
    %c0_i32_0 = arith.constant 0 : i32
    %c0_i32_1 = arith.constant 0 : i32
    return %arg1, %c0_i32, %c0_i32_0 : i32, i32, i32
  }
  func.func @transform_8(%arg0: i32, %arg1: i32) -> (i32, i32, i32) {
    %c0_i32 = arith.constant 0 : i32
    %c0_i32_0 = arith.constant 0 : i32
    %c0_i32_1 = arith.constant 0 : i32
    return %arg1, %c0_i32, %c0_i32_0 : i32, i32, i32
  }
  func.func @transform_9(%arg0: i32, %arg1: i32) -> (i32, i32, i32) {
    %c0_i32 = arith.constant 0 : i32
    %c0_i32_0 = arith.constant 0 : i32
    %c0_i32_1 = arith.constant 0 : i32
    return %arg1, %c0_i32, %c0_i32_0 : i32, i32, i32
  }
  func.func @transform_10(%arg0: i32, %arg1: i32) -> (i32, i32, i32) {
    %c0_i32 = arith.constant 0 : i32
    %c0_i32_0 = arith.constant 0 : i32
    %c0_i32_1 = arith.constant 0 : i32
    return %arg1, %c0_i32, %c0_i32_0 : i32, i32, i32
  }
  func.func @transform_11(%arg0: i32, %arg1: i32) -> (i32, i32, i32) {
    %c0_i32 = arith.constant 0 : i32
    %c0_i32_0 = arith.constant 0 : i32
    %c0_i32_1 = arith.constant 0 : i32
    return %arg1, %c0_i32, %c0_i32_0 : i32, i32, i32
  }
  func.func @transform_12(%arg0: i32, %arg1: i32) -> (i32, i32, i32) {
    %c0_i32 = arith.constant 0 : i32
    %c0_i32_0 = arith.constant 0 : i32
    %c0_i32_1 = arith.constant 0 : i32
    return %arg1, %c0_i32, %c0_i32_0 : i32, i32, i32
  }
  func.func @transform_13(%arg0: i32, %arg1: i32) -> (i32, i32, i32) {
    %c0_i32 = arith.constant 0 : i32
    %c0_i32_0 = arith.constant 0 : i32
    %c0_i32_1 = arith.constant 0 : i32
    return %arg1, %c0_i32, %c0_i32_0 : i32, i32, i32
  }
  func.func @transform_14(%arg0: i32, %arg1: i32) -> (i32, i32, i32) {
    %c0_i32 = arith.constant 0 : i32
    %c0_i32_0 = arith.constant 0 : i32
    %c0_i32_1 = arith.constant 0 : i32
    return %arg1, %c0_i32, %c0_i32_0 : i32, i32, i32
  }
  func.func @transform_15(%arg0: i32, %arg1: i32) -> (i32, i32) {
    %c0_i32 = arith.constant 0 : i32
    %c0_i32_0 = arith.constant 0 : i32
    %c0_i32_1 = arith.constant 0 : i32
    return %c0_i32, %c0_i32_0 : i32, i32
  }
  func.func @transform_16(%arg0: i32, %arg1: i32) -> (i32, i32) {
    %c0_i32 = arith.constant 0 : i32
    %c0_i32_0 = arith.constant 0 : i32
    %c0_i32_1 = arith.constant 0 : i32
    return %c0_i32, %c0_i32_0 : i32, i32
  }
  func.func @transform_17(%arg0: i32, %arg1: i32) -> (i32, i32) {
    %c0_i32 = arith.constant 0 : i32
    %c0_i32_0 = arith.constant 0 : i32
    %c0_i32_1 = arith.constant 0 : i32
    return %c0_i32, %c0_i32_0 : i32, i32
  }
  func.func @transform_18(%arg0: i32, %arg1: i32) -> (i32, i32) {
    %c0_i32 = arith.constant 0 : i32
    %c0_i32_0 = arith.constant 0 : i32
    %c0_i32_1 = arith.constant 0 : i32
    return %c0_i32, %c0_i32_0 : i32, i32
  }
  func.func @transform_19(%arg0: i32, %arg1: i32) -> (i32, i32) {
    %c0_i32 = arith.constant 0 : i32
    %c0_i32_0 = arith.constant 0 : i32
    %c0_i32_1 = arith.constant 0 : i32
    return %c0_i32, %c0_i32_0 : i32, i32
  }
  func.func @transform_20(%arg0: i32, %arg1: i32) -> (i32, i32, i32) {
    %c0_i32 = arith.constant 0 : i32
    %c0_i32_0 = arith.constant 0 : i32
    %c0_i32_1 = arith.constant 0 : i32
    return %arg0, %c0_i32, %c0_i32_0 : i32, i32, i32
  }
}

</mosaic_0001>

<llo_original>
// kernel: decoder_forward.1
$region0: #{decoder_forward.1}
  #allocation0 [shape = 'u32[]', space=smem, size = 0x4, offset = 0x4, fixed_abs, tag = 'smem constant byte address 0x4 - core index']
  #allocation1 [shape = 'u32[72,128]{1,0:T(1,128)}', space=vmem, size = 0x9000, scoped, tag = 'internal scratch']
  #allocation2 [shape = 'f32[16,32]{1,0:T(8,128)}', space=vmem, size = 0x2000, scoped, tag = 'scratch operand']
  #allocation3 [shape = 'f32[8,8,8]{2,1,0:T(8,128)}', space=vmem, size = 0x8000, scoped, tag = 'scratch operand']
  %s0 = inlined_call_operand.vmem [shape: f32[2,8,32], index: 0, kind: input, shape index: {}]
  %s1 = inlined_call_operand.hbm [shape: f32[2,16,32], index: 1, kind: input, shape index: {}]
  %s2 = inlined_call_operand.vmem [shape: f32[8,32], index: 2, kind: input, shape index: {}]
  %s3 = inlined_call_operand.vmem [shape: f32[2,4,8], index: 3, kind: input, shape index: {}]
  %s4 = inlined_call_operand.vmem [shape: f32[2,32,64], index: 4, kind: input, shape index: {}]
  %s5 = inlined_call_operand.vmem [shape: f32[2,32,32], index: 5, kind: input, shape index: {}]
  %s6 = inlined_call_operand.vmem [shape: f32[2,32,32], index: 6, kind: input, shape index: {}]
  %s7 = inlined_call_operand.vmem [shape: f32[2,32,32], index: 7, kind: input, shape index: {}]
  %s8 = inlined_call_operand.vmem [shape: f32[2,32,64], index: 8, kind: input, shape index: {}]
  %s9 = inlined_call_operand.vmem [shape: f32[2,32,32], index: 9, kind: input, shape index: {}]
  %s10 = inlined_call_operand.vmem [shape: f32[2,32,64], index: 10, kind: input, shape index: {}]
  %s11 = inlined_call_operand.vmem [shape: f32[2,64,32], index: 11, kind: input, shape index: {}]
  %s12 = inlined_call_operand.vmem [shape: f32[2,2,64], index: 12, kind: input, shape index: {}]
  %s13 = inlined_call_operand.vmem [shape: f32[2,11,32], index: 13, kind: input, shape index: {}]
  %s14 = inlined_call_operand.hbm [shape: f32[2,1,64], index: 14, kind: input, shape index: {}]
  %s15 = inlined_call_operand.hbm [shape: f32[4,32], index: 15, kind: input, shape index: {}]
  %s16 = inlined_call_operand.hbm [shape: f32[32,32], index: 16, kind: input, shape index: {}]
  %s17 = inlined_call_operand.hbm [shape: f32[32,32], index: 17, kind: input, shape index: {}]
  %s18 = inlined_call_operand.hbm [shape: f32[32,128], index: 18, kind: input, shape index: {}]
  %s19 = inlined_call_operand.vmem [shape: f32[1,128], index: 19, kind: input, shape index: {}]
  %s20 = inlined_call_operand.vmem [shape: f32[2,8,128], index: 20, kind: output, shape index: {}]
  %s21 = sld [smem:[#allocation0]]
  $region145: #{decoder_forward.1} parent=0
    _
  %s23 = ssub.s32 1, %s21
  %s24 = scalar_select 0, %s23, %s21
  $region1: #{decoder_forward.1} parent=0
    #allocation4 [shape = 'u8[16384]{0}', space=vmem, size = 0x4000, scoped, tag = 'input window, operand 1, single buffered']
    #allocation5 [shape = 's32[2]{0}', space=sflag, size = 0x8, scoped, tag = 'scoped memory for decoder_forward.1']
    #allocation6 [shape = 'u8[1024]{0}', space=vmem, size = 0x400, scoped, tag = 'input window, operand 14']
    #allocation7 [shape = 's32[2]{0}', space=sflag, size = 0x8, scoped, tag = 'scoped memory for decoder_forward.1']
    #allocation8 [shape = 'u8[2048]{0}', space=vmem, size = 0x800, scoped, tag = 'input window, operand 15, single buffered']
    #allocation9 [shape = 'u8[16384]{0}', space=vmem, size = 0x4000, scoped, tag = 'input window, operand 16, single buffered']
    #allocation10 [shape = 's32[1]{0}', space=sflag, size = 0x4, scoped, tag = 'scoped memory for decoder_forward.1']
    #allocation11 [shape = 'u8[16384]{0}', space=vmem, size = 0x4000, scoped, tag = 'input window, operand 17, single buffered']
    #allocation12 [shape = 'u8[16384]{0}', space=vmem, size = 0x4000, scoped, tag = 'input window, operand 18, single buffered']
    #allocation13 [shape = 's32[1]{0}', space=sflag, size = 0x4, scoped, tag = 'scoped memory for decoder_forward.1']
    %25 = vsyncpa [#allocation5], 0
    %26 = vsyncpa [#allocation7], 0
    %s27 = scalar_lea.sflag [#allocation7], 1
    %28 = vsyncpa %s27, 0
    %29 = vsyncpa [#allocation10], 0
    %30 = vsyncpa [#allocation13], 0
    loop: start=0, step=1, limit=4
    $region2: #{decoder_forward.1} parent=1 // loop_pre_header
      _
    $region3: #{decoder_forward.1} parent=1 // loop_header
      %s32 = sphi 0, %s36
      %p33 = scmp.ge.s32.totalorder %s32, 4
      %s39 = sphi 0, %s51
      %s40 = sphi 0, %s47
      %s41 = sphi 0, %s39
      %s42 = sphi 0, %s40
      %s43 = sphi 0, %s41
      %s44 = sphi 0, %s42
      %s54 = sphi 0, %s56
      %s57 = sphi 0, %s54
      %s58 = sphi 0, %s57
      %s74 = sphi 0, %s58
      %s80 = sphi 0, %s82
      %s83 = sphi 0, %s80
      %s84 = sphi 0, %s83
      %s100 = sphi 0, %s84
      %s104 = sphi 0, %s104
      %s106 = sphi 0, %s104
      %s107 = sphi 0, %s106
      %s121 = sphi 0, %s107
      %s127 = sphi 0, %s129
      %s130 = sphi 0, %s127
      %s131 = sphi 0, %s130
      %s147 = sphi 0, %s131
      %s153 = sphi 0, %s155
      %s156 = sphi 0, %s153
      %s157 = sphi 0, %s156
      %s173 = sphi 0, %s157
      %s179 = sphi 0, %s181
      %s182 = sphi 0, %s179
      %s183 = sphi 0, %s182
      %s199 = sphi 0, %s183
      %s205 = sphi 0, %s207
      %s208 = sphi 0, %s205
      %s209 = sphi 0, %s208
      %s225 = sphi 0, %s209
      %s231 = sphi 0, %s233
      %s234 = sphi 0, %s231
      %s235 = sphi 0, %s234
      %s251 = sphi 0, %s235
      %s257 = sphi 0, %s259
      %s260 = sphi 0, %s257
      %s261 = sphi 0, %s260
      %s277 = sphi 0, %s261
      %s283 = sphi 0, %s285
      %s286 = sphi 0, %s283
      %s287 = sphi 0, %s286
      %s303 = sphi 0, %s287
      %s309 = sphi 0, %s311
      %s312 = sphi 0, %s309
      %s313 = sphi 0, %s312
      %s329 = sphi 0, %s313
      %s335 = sphi 0, %s337
      %s338 = sphi 0, %s335
      %s339 = sphi 0, %s338
      %s355 = sphi 0, %s339
      %s361 = sphi 0, %s363
      %s364 = sphi 0, %s361
      %s365 = sphi 0, %s364
      %s381 = sphi 0, %s365
      %s387 = sphi 0, %s389
      %s390 = sphi 0, %s387
      %s391 = sphi 0, %s390
      %s407 = sphi 0, %s391
      %s413 = sphi 0, %s415
      %s416 = sphi 0, %s413
      %s417 = sphi 0, %s416
      %s433 = sphi 0, %s417
      %s437 = sphi 0, %s437
      %s439 = sphi 0, %s437
      %s440 = sphi 0, %s439
      %s454 = sphi 0, %s440
      %s458 = sphi 0, %s458
      %s460 = sphi 0, %s458
      %s461 = sphi 0, %s460
      %s475 = sphi 0, %s461
      %s479 = sphi 0, %s479
      %s481 = sphi 0, %s479
      %s482 = sphi 0, %s481
      %s496 = sphi 0, %s482
      %s500 = sphi 0, %s500
      %s502 = sphi 0, %s500
      %s503 = sphi 0, %s502
      %s517 = sphi 0, %s503
      %s521 = sphi 0, %s521
      %s523 = sphi 0, %s521
      %s524 = sphi 0, %s523
      %s538 = sphi 0, %s524
      %s544 = sphi 0, %s546
      %s547 = sphi 0, %s544
      %s548 = sphi 0, %s547
      %s564 = sphi 0, %s548
    $region4: #{decoder_forward.1} parent=1 // loop_header_branch
      %35 = sbr.rel (%p33) target = $region8
    $region5: #{decoder_forward.1} parent=1 // loop_body
      %s37 = ssub.s32 %s32, 1
      %s38 = ssub.s32 %s32, 2
      %s45 = sadd.s32 1, %s40
      %p46 = scmp.ge.s32.totalorder %s45, 2
      %s47 = scalar_select %p46, 0, %s45
      %s48 = sadd.s32 1, %s39
      %s49 = scalar_select %p46, %s48, %s39
      %p50 = scmp.ge.s32.totalorder %s49, 1
      %s51 = scalar_select %p50, 0, %s49
      %s52 = ssub.s32 %s39, %s51
      %p53 = scmp.eq.s32.totalorder %s52, 0
      %s55 = sadd.s32 %s54, 1
      %s56 = scalar_select %p53, %s54, %s55
      %p59 = pneg %p53
      %p60 = scmp.eq.s32.totalorder %s32, 1
      %p61 = por %p59, %p60
      %p62 = scmp.ne.s32.totalorder %s54, %s57
      %p63 = scmp.eq.s32.totalorder %s32, 0
      %p64 = por %p62, %p63
      %p65 = scmp.ne.s32.totalorder %s54, %s57
      %p66 = scmp.eq.s32.totalorder %s37, 1
      %p67 = por %p65, %p66
      %p68 = scmp.ne.s32.totalorder %s57, %s58
      %p69 = scmp.eq.s32.totalorder %s37, 0
      %p70 = por %p68, %p69
      %p71 = scmp.ne.s32.totalorder %s57, %s58
      %p72 = scmp.eq.s32.totalorder %s38, 1
      %p73 = por %p71, %p72
      %p75 = scmp.ne.s32.totalorder %s58, %s74
      %p76 = scmp.eq.s32.totalorder %s38, 0
      %p77 = por %p75, %p76
      %s78 = ssub.s32 %s39, %s51
      %p79 = scmp.eq.s32.totalorder %s78, 0
      %s81 = sadd.s32 %s80, 1
      %s82 = scalar_select %p79, %s80, %s81
      %p85 = pneg %p79
      %p86 = scmp.eq.s32.totalorder %s32, 1
      %p87 = por %p85, %p86
      %p88 = scmp.ne.s32.totalorder %s80, %s83
      %p89 = scmp.eq.s32.totalorder %s32, 0
      %p90 = por %p88, %p89
      %p91 = scmp.ne.s32.totalorder %s80, %s83
      %p92 = scmp.eq.s32.totalorder %s37, 1
      %p93 = por %p91, %p92
      %p94 = scmp.ne.s32.totalorder %s83, %s84
      %p95 = scmp.eq.s32.totalorder %s37, 0
      %p96 = por %p94, %p95
      %p97 = scmp.ne.s32.totalorder %s83, %s84
      %p98 = scmp.eq.s32.totalorder %s38, 1
      %p99 = por %p97, %p98
      %p101 = scmp.ne.s32.totalorder %s84, %s100
      %p102 = scmp.eq.s32.totalorder %s38, 0
      %p103 = por %p101, %p102
      %s105 = sadd.s32 %s104, 1
      %p108 = scmp.eq.s32.totalorder %s32, 1
      %p109 = scmp.ne.s32.totalorder %s104, %s106
      %p110 = scmp.eq.s32.totalorder %s32, 0
      %p111 = por %p109, %p110
      %p112 = scmp.ne.s32.totalorder %s104, %s106
      %p113 = scmp.eq.s32.totalorder %s37, 1
      %p114 = por %p112, %p113
      %p115 = scmp.ne.s32.totalorder %s106, %s107
      %p116 = scmp.eq.s32.totalorder %s37, 0
      %p117 = por %p115, %p116
      %p118 = scmp.ne.s32.totalorder %s106, %s107
      %p119 = scmp.eq.s32.totalorder %s38, 1
      %p120 = por %p118, %p119
      %p122 = scmp.ne.s32.totalorder %s107, %s121
      %p123 = scmp.eq.s32.totalorder %s38, 0
      %p124 = por %p122, %p123
      %s125 = ssub.s32 %s39, %s51
      %p126 = scmp.eq.s32.totalorder %s125, 0
      %s128 = sadd.s32 %s127, 1
      %s129 = scalar_select %p126, %s127, %s128
      %p132 = pneg %p126
      %p133 = scmp.eq.s32.totalorder %s32, 1
      %p134 = por %p132, %p133
      %p135 = scmp.ne.s32.totalorder %s127, %s130
      %p136 = scmp.eq.s32.totalorder %s32, 0
      %p137 = por %p135, %p136
      %p138 = scmp.ne.s32.totalorder %s127, %s130
      %p139 = scmp.eq.s32.totalorder %s37, 1
      %p140 = por %p138, %p139
      %p141 = scmp.ne.s32.totalorder %s130, %s131
      %p142 = scmp.eq.s32.totalorder %s37, 0
      %p143 = por %p141, %p142
      %p144 = scmp.ne.s32.totalorder %s130, %s131
      %p145 = scmp.eq.s32.totalorder %s38, 1
      %p146 = por %p144, %p145
      %p148 = scmp.ne.s32.totalorder %s131, %s147
      %p149 = scmp.eq.s32.totalorder %s38, 0
      %p150 = por %p148, %p149
      %s151 = ssub.s32 %s40, %s47
      %p152 = scmp.eq.s32.totalorder %s151, 0
      %s154 = sadd.s32 %s153, 1
      %s155 = scalar_select %p152, %s153, %s154
      %p158 = pneg %p152
      %p159 = scmp.eq.s32.totalorder %s32, 1
      %p160 = por %p158, %p159
      %p161 = scmp.ne.s32.totalorder %s153, %s156
      %p162 = scmp.eq.s32.totalorder %s32, 0
      %p163 = por %p161, %p162
      %p164 = scmp.ne.s32.totalorder %s153, %s156
      %p165 = scmp.eq.s32.totalorder %s37, 1
      %p166 = por %p164, %p165
      %p167 = scmp.ne.s32.totalorder %s156, %s157
      %p168 = scmp.eq.s32.totalorder %s37, 0
      %p169 = por %p167, %p168
      %p170 = scmp.ne.s32.totalorder %s156, %s157
      %p171 = scmp.eq.s32.totalorder %s38, 1
      %p172 = por %p170, %p171
      %p174 = scmp.ne.s32.totalorder %s157, %s173
      %p175 = scmp.eq.s32.totalorder %s38, 0
      %p176 = por %p174, %p175
      %s177 = ssub.s32 %s40, %s47
      %p178 = scmp.eq.s32.totalorder %s177, 0
      %s180 = sadd.s32 %s179, 1
      %s181 = scalar_select %p178, %s179, %s180
      %p184 = pneg %p178
      %p185 = scmp.eq.s32.totalorder %s32, 1
      %p186 = por %p184, %p185
      %p187 = scmp.ne.s32.totalorder %s179, %s182
      %p188 = scmp.eq.s32.totalorder %s32, 0
      %p189 = por %p187, %p188
      %p190 = scmp.ne.s32.totalorder %s179, %s182
      %p191 = scmp.eq.s32.totalorder %s37, 1
      %p192 = por %p190, %p191
      %p193 = scmp.ne.s32.totalorder %s182, %s183
      %p194 = scmp.eq.s32.totalorder %s37, 0
      %p195 = por %p193, %p194
      %p196 = scmp.ne.s32.totalorder %s182, %s183
      %p197 = scmp.eq.s32.totalorder %s38, 1
      %p198 = por %p196, %p197
      %p200 = scmp.ne.s32.totalorder %s183, %s199
      %p201 = scmp.eq.s32.totalorder %s38, 0
      %p202 = por %p200, %p201
      %s203 = ssub.s32 %s40, %s47
      %p204 = scmp.eq.s32.totalorder %s203, 0
      %s206 = sadd.s32 %s205, 1
      %s207 = scalar_select %p204, %s205, %s206
      %p210 = pneg %p204
      %p211 = scmp.eq.s32.totalorder %s32, 1
      %p212 = por %p210, %p211
      %p213 = scmp.ne.s32.totalorder %s205, %s208
      %p214 = scmp.eq.s32.totalorder %s32, 0
      %p215 = por %p213, %p214
      %p216 = scmp.ne.s32.totalorder %s205, %s208
      %p217 = scmp.eq.s32.totalorder %s37, 1
      %p218 = por %p216, %p217
      %p219 = scmp.ne.s32.totalorder %s208, %s209
      %p220 = scmp.eq.s32.totalorder %s37, 0
      %p221 = por %p219, %p220
      %p222 = scmp.ne.s32.totalorder %s208, %s209
      %p223 = scmp.eq.s32.totalorder %s38, 1
      %p224 = por %p222, %p223
      %p226 = scmp.ne.s32.totalorder %s209, %s225
      %p227 = scmp.eq.s32.totalorder %s38, 0
      %p228 = por %p226, %p227
      %s229 = ssub.s32 %s40, %s47
      %p230 = scmp.eq.s32.totalorder %s229, 0
      %s232 = sadd.s32 %s231, 1
      %s233 = scalar_select %p230, %s231, %s232
      %p236 = pneg %p230
      %p237 = scmp.eq.s32.totalorder %s32, 1
      %p238 = por %p236, %p237
      %p239 = scmp.ne.s32.totalorder %s231, %s234
      %p240 = scmp.eq.s32.totalorder %s32, 0
      %p241 = por %p239, %p240
      %p242 = scmp.ne.s32.totalorder %s231, %s234
      %p243 = scmp.eq.s32.totalorder %s37, 1
      %p244 = por %p242, %p243
      %p245 = scmp.ne.s32.totalorder %s234, %s235
      %p246 = scmp.eq.s32.totalorder %s37, 0
      %p247 = por %p245, %p246
      %p248 = scmp.ne.s32.totalorder %s234, %s235
      %p249 = scmp.eq.s32.totalorder %s38, 1
      %p250 = por %p248, %p249
      %p252 = scmp.ne.s32.totalorder %s235, %s251
      %p253 = scmp.eq.s32.totalorder %s38, 0
      %p254 = por %p252, %p253
      %s255 = ssub.s32 %s40, %s47
      %p256 = scmp.eq.s32.totalorder %s255, 0
      %s258 = sadd.s32 %s257, 1
      %s259 = scalar_select %p256, %s257, %s258
      %p262 = pneg %p256
      %p263 = scmp.eq.s32.totalorder %s32, 1
      %p264 = por %p262, %p263
      %p265 = scmp.ne.s32.totalorder %s257, %s260
      %p266 = scmp.eq.s32.totalorder %s32, 0
      %p267 = por %p265, %p266
      %p268 = scmp.ne.s32.totalorder %s257, %s260
      %p269 = scmp.eq.s32.totalorder %s37, 1
      %p270 = por %p268, %p269
      %p271 = scmp.ne.s32.totalorder %s260, %s261
      %p272 = scmp.eq.s32.totalorder %s37, 0
      %p273 = por %p271, %p272
      %p274 = scmp.ne.s32.totalorder %s260, %s261
      %p275 = scmp.eq.s32.totalorder %s38, 1
      %p276 = por %p274, %p275
      %p278 = scmp.ne.s32.totalorder %s261, %s277
      %p279 = scmp.eq.s32.totalorder %s38, 0
      %p280 = por %p278, %p279
      %s281 = ssub.s32 %s40, %s47
      %p282 = scmp.eq.s32.totalorder %s281, 0
      %s284 = sadd.s32 %s283, 1
      %s285 = scalar_select %p282, %s283, %s284
      %p288 = pneg %p282
      %p289 = scmp.eq.s32.totalorder %s32, 1
      %p290 = por %p288, %p289
      %p291 = scmp.ne.s32.totalorder %s283, %s286
      %p292 = scmp.eq.s32.totalorder %s32, 0
      %p293 = por %p291, %p292
      %p294 = scmp.ne.s32.totalorder %s283, %s286
      %p295 = scmp.eq.s32.totalorder %s37, 1
      %p296 = por %p294, %p295
      %p297 = scmp.ne.s32.totalorder %s286, %s287
      %p298 = scmp.eq.s32.totalorder %s37, 0
      %p299 = por %p297, %p298
      %p300 = scmp.ne.s32.totalorder %s286, %s287
      %p301 = scmp.eq.s32.totalorder %s38, 1
      %p302 = por %p300, %p301
      %p304 = scmp.ne.s32.totalorder %s287, %s303
      %p305 = scmp.eq.s32.totalorder %s38, 0
      %p306 = por %p304, %p305
      %s307 = ssub.s32 %s40, %s47
      %p308 = scmp.eq.s32.totalorder %s307, 0
      %s310 = sadd.s32 %s309, 1
      %s311 = scalar_select %p308, %s309, %s310
      %p314 = pneg %p308
      %p315 = scmp.eq.s32.totalorder %s32, 1
      %p316 = por %p314, %p315
      %p317 = scmp.ne.s32.totalorder %s309, %s312
      %p318 = scmp.eq.s32.totalorder %s32, 0
      %p319 = por %p317, %p318
      %p320 = scmp.ne.s32.totalorder %s309, %s312
      %p321 = scmp.eq.s32.totalorder %s37, 1
      %p322 = por %p320, %p321
      %p323 = scmp.ne.s32.totalorder %s312, %s313
      %p324 = scmp.eq.s32.totalorder %s37, 0
      %p325 = por %p323, %p324
      %p326 = scmp.ne.s32.totalorder %s312, %s313
      %p327 = scmp.eq.s32.totalorder %s38, 1
      %p328 = por %p326, %p327
      %p330 = scmp.ne.s32.totalorder %s313, %s329
      %p331 = scmp.eq.s32.totalorder %s38, 0
      %p332 = por %p330, %p331
      %s333 = ssub.s32 %s40, %s47
      %p334 = scmp.eq.s32.totalorder %s333, 0
      %s336 = sadd.s32 %s335, 1
      %s337 = scalar_select %p334, %s335, %s336
      %p340 = pneg %p334
      %p341 = scmp.eq.s32.totalorder %s32, 1
      %p342 = por %p340, %p341
      %p343 = scmp.ne.s32.totalorder %s335, %s338
      %p344 = scmp.eq.s32.totalorder %s32, 0
      %p345 = por %p343, %p344
      %p346 = scmp.ne.s32.totalorder %s335, %s338
      %p347 = scmp.eq.s32.totalorder %s37, 1
      %p348 = por %p346, %p347
      %p349 = scmp.ne.s32.totalorder %s338, %s339
      %p350 = scmp.eq.s32.totalorder %s37, 0
      %p351 = por %p349, %p350
      %p352 = scmp.ne.s32.totalorder %s338, %s339
      %p353 = scmp.eq.s32.totalorder %s38, 1
      %p354 = por %p352, %p353
      %p356 = scmp.ne.s32.totalorder %s339, %s355
      %p357 = scmp.eq.s32.totalorder %s38, 0
      %p358 = por %p356, %p357
      %s359 = ssub.s32 %s40, %s47
      %p360 = scmp.eq.s32.totalorder %s359, 0
      %s362 = sadd.s32 %s361, 1
      %s363 = scalar_select %p360, %s361, %s362
      %p366 = pneg %p360
      %p367 = scmp.eq.s32.totalorder %s32, 1
      %p368 = por %p366, %p367
      %p369 = scmp.ne.s32.totalorder %s361, %s364
      %p370 = scmp.eq.s32.totalorder %s32, 0
      %p371 = por %p369, %p370
      %p372 = scmp.ne.s32.totalorder %s361, %s364
      %p373 = scmp.eq.s32.totalorder %s37, 1
      %p374 = por %p372, %p373
      %p375 = scmp.ne.s32.totalorder %s364, %s365
      %p376 = scmp.eq.s32.totalorder %s37, 0
      %p377 = por %p375, %p376
      %p378 = scmp.ne.s32.totalorder %s364, %s365
      %p379 = scmp.eq.s32.totalorder %s38, 1
      %p380 = por %p378, %p379
      %p382 = scmp.ne.s32.totalorder %s365, %s381
      %p383 = scmp.eq.s32.totalorder %s38, 0
      %p384 = por %p382, %p383
      %s385 = ssub.s32 %s40, %s47
      %p386 = scmp.eq.s32.totalorder %s385, 0
      %s388 = sadd.s32 %s387, 1
      %s389 = scalar_select %p386, %s387, %s388
      %p392 = pneg %p386
      %p393 = scmp.eq.s32.totalorder %s32, 1
      %p394 = por %p392, %p393
      %p395 = scmp.ne.s32.totalorder %s387, %s390
      %p396 = scmp.eq.s32.totalorder %s32, 0
      %p397 = por %p395, %p396
      %p398 = scmp.ne.s32.totalorder %s387, %s390
      %p399 = scmp.eq.s32.totalorder %s37, 1
      %p400 = por %p398, %p399
      %p401 = scmp.ne.s32.totalorder %s390, %s391
      %p402 = scmp.eq.s32.totalorder %s37, 0
      %p403 = por %p401, %p402
      %p404 = scmp.ne.s32.totalorder %s390, %s391
      %p405 = scmp.eq.s32.totalorder %s38, 1
      %p406 = por %p404, %p405
      %p408 = scmp.ne.s32.totalorder %s391, %s407
      %p409 = scmp.eq.s32.totalorder %s38, 0
      %p410 = por %p408, %p409
      %s411 = ssub.s32 %s40, %s47
      %p412 = scmp.eq.s32.totalorder %s411, 0
      %s414 = sadd.s32 %s413, 1
      %s415 = scalar_select %p412, %s413, %s414
      %p418 = pneg %p412
      %p419 = scmp.eq.s32.totalorder %s32, 1
      %p420 = por %p418, %p419
      %p421 = scmp.ne.s32.totalorder %s413, %s416
      %p422 = scmp.eq.s32.totalorder %s32, 0
      %p423 = por %p421, %p422
      %p424 = scmp.ne.s32.totalorder %s413, %s416
      %p425 = scmp.eq.s32.totalorder %s37, 1
      %p426 = por %p424, %p425
      %p427 = scmp.ne.s32.totalorder %s416, %s417
      %p428 = scmp.eq.s32.totalorder %s37, 0
      %p429 = por %p427, %p428
      %p430 = scmp.ne.s32.totalorder %s416, %s417
      %p431 = scmp.eq.s32.totalorder %s38, 1
      %p432 = por %p430, %p431
      %p434 = scmp.ne.s32.totalorder %s417, %s433
      %p435 = scmp.eq.s32.totalorder %s38, 0
      %p436 = por %p434, %p435
      %s438 = sadd.s32 %s437, 1
      %p441 = scmp.eq.s32.totalorder %s32, 1
      %p442 = scmp.ne.s32.totalorder %s437, %s439
      %p443 = scmp.eq.s32.totalorder %s32, 0
      %p444 = por %p442, %p443
      %p445 = scmp.ne.s32.totalorder %s437, %s439
      %p446 = scmp.eq.s32.totalorder %s37, 1
      %p447 = por %p445, %p446
      %p448 = scmp.ne.s32.totalorder %s439, %s440
      %p449 = scmp.eq.s32.totalorder %s37, 0
      %p450 = por %p448, %p449
      %p451 = scmp.ne.s32.totalorder %s439, %s440
      %p452 = scmp.eq.s32.totalorder %s38, 1
      %p453 = por %p451, %p452
      %p455 = scmp.ne.s32.totalorder %s440, %s454
      %p456 = scmp.eq.s32.totalorder %s38, 0
      %p457 = por %p455, %p456
      %s459 = sadd.s32 %s458, 1
      %p462 = scmp.eq.s32.totalorder %s32, 1
      %p463 = scmp.ne.s32.totalorder %s458, %s460
      %p464 = scmp.eq.s32.totalorder %s32, 0
      %p465 = por %p463, %p464
      %p466 = scmp.ne.s32.totalorder %s458, %s460
      %p467 = scmp.eq.s32.totalorder %s37, 1
      %p468 = por %p466, %p467
      %p469 = scmp.ne.s32.totalorder %s460, %s461
      %p470 = scmp.eq.s32.totalorder %s37, 0
      %p471 = por %p469, %p470
      %p472 = scmp.ne.s32.totalorder %s460, %s461
      %p473 = scmp.eq.s32.totalorder %s38, 1
      %p474 = por %p472, %p473
      %p476 = scmp.ne.s32.totalorder %s461, %s475
      %p477 = scmp.eq.s32.totalorder %s38, 0
      %p478 = por %p476, %p477
      %s480 = sadd.s32 %s479, 1
      %p483 = scmp.eq.s32.totalorder %s32, 1
      %p484 = scmp.ne.s32.totalorder %s479, %s481
      %p485 = scmp.eq.s32.totalorder %s32, 0
      %p486 = por %p484, %p485
      %p487 = scmp.ne.s32.totalorder %s479, %s481
      %p488 = scmp.eq.s32.totalorder %s37, 1
      %p489 = por %p487, %p488
      %p490 = scmp.ne.s32.totalorder %s481, %s482
      %p491 = scmp.eq.s32.totalorder %s37, 0
      %p492 = por %p490, %p491
      %p493 = scmp.ne.s32.totalorder %s481, %s482
      %p494 = scmp.eq.s32.totalorder %s38, 1
      %p495 = por %p493, %p494
      %p497 = scmp.ne.s32.totalorder %s482, %s496
      %p498 = scmp.eq.s32.totalorder %s38, 0
      %p499 = por %p497, %p498
      %s501 = sadd.s32 %s500, 1
      %p504 = scmp.eq.s32.totalorder %s32, 1
      %p505 = scmp.ne.s32.totalorder %s500, %s502
      %p506 = scmp.eq.s32.totalorder %s32, 0
      %p507 = por %p505, %p506
      %p508 = scmp.ne.s32.totalorder %s500, %s502
      %p509 = scmp.eq.s32.totalorder %s37, 1
      %p510 = por %p508, %p509
      %p511 = scmp.ne.s32.totalorder %s502, %s503
      %p512 = scmp.eq.s32.totalorder %s37, 0
      %p513 = por %p511, %p512
      %p514 = scmp.ne.s32.totalorder %s502, %s503
      %p515 = scmp.eq.s32.totalorder %s38, 1
      %p516 = por %p514, %p515
      %p518 = scmp.ne.s32.totalorder %s503, %s517
      %p519 = scmp.eq.s32.totalorder %s38, 0
      %p520 = por %p518, %p519
      %s522 = sadd.s32 %s521, 1
      %p525 = scmp.eq.s32.totalorder %s32, 1
      %p526 = scmp.ne.s32.totalorder %s521, %s523
      %p527 = scmp.eq.s32.totalorder %s32, 0
      %p528 = por %p526, %p527
      %p529 = scmp.ne.s32.totalorder %s521, %s523
      %p530 = scmp.eq.s32.totalorder %s37, 1
      %p531 = por %p529, %p530
      %p532 = scmp.ne.s32.totalorder %s523, %s524
      %p533 = scmp.eq.s32.totalorder %s37, 0
      %p534 = por %p532, %p533
      %p535 = scmp.ne.s32.totalorder %s523, %s524
      %p536 = scmp.eq.s32.totalorder %s38, 1
      %p537 = por %p535, %p536
      %p539 = scmp.ne.s32.totalorder %s524, %s538
      %p540 = scmp.eq.s32.totalorder %s38, 0
      %p541 = por %p539, %p540
      %s542 = ssub.s32 %s39, %s51
      %p543 = scmp.eq.s32.totalorder %s542, 0
      %s545 = sadd.s32 %s544, 1
      %s546 = scalar_select %p543, %s544, %s545
      %p549 = pneg %p543
      %p550 = scmp.eq.s32.totalorder %s32, 1
      %p551 = por %p549, %p550
      %p552 = scmp.ne.s32.totalorder %s544, %s547
      %p553 = scmp.eq.s32.totalorder %s32, 0
      %p554 = por %p552, %p553
      %p555 = scmp.ne.s32.totalorder %s544, %s547
      %p556 = scmp.eq.s32.totalorder %s37, 1
      %p557 = por %p555, %p556
      %p558 = scmp.ne.s32.totalorder %s547, %s548
      %p559 = scmp.eq.s32.totalorder %s37, 0
      %p560 = por %p558, %p559
      %p561 = scmp.ne.s32.totalorder %s547, %s548
      %p562 = scmp.eq.s32.totalorder %s38, 1
      %p563 = por %p561, %p562
      %p565 = scmp.ne.s32.totalorder %s548, %s564
      %p566 = scmp.eq.s32.totalorder %s38, 0
      %p567 = por %p565, %p566
      %p568 = scmp.le.s32.totalorder 1, %s32
      %p569 = scmp.lt.s32.totalorder %s32, 3
      %p570 = pnand %p568, %p569
      %p571 = pneg %p570
      // Predicated region
      $region9: #{decoder_forward.1} parent=5 // pred_check
        _
      $region10: #{decoder_forward.1} parent=5 // pred_check_branch
        %573 = sbr.rel (%p570) target = $region12
      $region11: #{decoder_forward.1} parent=5 // pred_region
        %s574 = ssub.s32 %s32, 1
        // Predicated region
        $region13: #{decoder_forward.1} parent=11 // pred_check
          %p575 = pneg %p70
        $region14: #{decoder_forward.1} parent=11 // pred_check_branch
          %577 = sbr.rel (%p575) target = $region16
        $region15: #{decoder_forward.1} parent=11 // pred_region
          %s578 = smul.u32 2, %s41
          %p579 = scmp.lt.s32.totalorder %s578, 1
          %s580 = scalar_select %p579, %s578, 1
          %s581 = smul.addr %s580, 8
          %s582 = scalar_lea.vmem %s0, %s581
          %s583 = smul.u32 2, %s41
        $region16: #{decoder_forward.1} parent=11 // pred_fallthru
          _
        // Predicated region
        $region17: #{decoder_forward.1} parent=11 // pred_check
          %p584 = pneg %p96
        $region18: #{decoder_forward.1} parent=11 // pred_check_branch
          %586 = sbr.rel (%p584) target = $region20
        $region19: #{decoder_forward.1} parent=11 // pred_region
          %s587 = smul.u32 2, %s41
          %589 = vsyncadd [#allocation5], 0
          %s590 = smul.addr %s587, 2
          %s591 = smul.addr %s590, 8
          %s592 = scalar_lea.hbm %s1, %s591
          %s593 = sshll.u32 %s592, 4
          %s594 = int_to_ptr.hbm [resolvable:$true] %s593
          %s595 = sshll.u32 [#allocation4], 4
          %s596 = int_to_ptr.vmem [resolvable:$true] %s595
          %601 = dma.hbm_to_vmem [thread:$0]  %s594, 512, %s596, [#allocation5], 128, 128, 8
        $region20: #{decoder_forward.1} parent=11 // pred_fallthru
          _
        // Predicated region
        $region21: #{decoder_forward.1} parent=11 // pred_check
          %p602 = pneg %p117
        $region22: #{decoder_forward.1} parent=11 // pred_check_branch
          %604 = sbr.rel (%p602) target = $region24
        $region23: #{decoder_forward.1} parent=11 // pred_region
          _
        $region24: #{decoder_forward.1} parent=11 // pred_fallthru
          _
        // Predicated region
        $region25: #{decoder_forward.1} parent=11 // pred_check
          %p605 = pneg %p143
        $region26: #{decoder_forward.1} parent=11 // pred_check_branch
          %607 = sbr.rel (%p605) target = $region28
        $region27: #{decoder_forward.1} parent=11 // pred_region
          %s608 = smul.u32 2, %s41
          %p609 = scmp.lt.s32.totalorder %s608, 1
          %s610 = scalar_select %p609, %s608, 1
          %s611 = smul.addr %s610, 4
          %s612 = scalar_lea.vmem %s3, %s611
          %s613 = smul.u32 2, %s41
        $region28: #{decoder_forward.1} parent=11 // pred_fallthru
          _
        // Predicated region
        $region29: #{decoder_forward.1} parent=11 // pred_check
          %p614 = pneg %p450
        $region30: #{decoder_forward.1} parent=11 // pred_check_branch
          %616 = sbr.rel (%p614) target = $region32
        $region31: #{decoder_forward.1} parent=11 // pred_region
          %618 = vsyncadd [#allocation7], 0
          %s620 = sshll.u32 %s15, 4
          %s621 = int_to_ptr.hbm [resolvable:$true] %s620
          %s622 = sshll.u32 [#allocation8], 4
          %s623 = int_to_ptr.vmem [resolvable:$true] %s622
          %625 = dma.hbm_to_vmem [thread:$0]  %s621, 64, %s623, [#allocation7]
        $region32: #{decoder_forward.1} parent=11 // pred_fallthru
          _
        // Predicated region
        $region33: #{decoder_forward.1} parent=11 // pred_check
          %p626 = pneg %p471
        $region34: #{decoder_forward.1} parent=11 // pred_check_branch
          %628 = sbr.rel (%p626) target = $region36
        $region35: #{decoder_forward.1} parent=11 // pred_region
          %630 = vsyncadd [#allocation10], 0
          %s631 = sshll.u32 %s16, 4
          %s632 = int_to_ptr.hbm [resolvable:$true] %s631
          %s633 = sshll.u32 [#allocation9], 4
          %s634 = int_to_ptr.vmem [resolvable:$true] %s633
          %639 = dma.hbm_to_vmem [thread:$0]  %s632, 512, %s634, [#allocation10], 128, 128, 8
        $region36: #{decoder_forward.1} parent=11 // pred_fallthru
          _
        // Predicated region
        $region37: #{decoder_forward.1} parent=11 // pred_check
          %p640 = pneg %p492
        $region38: #{decoder_forward.1} parent=11 // pred_check_branch
          %642 = sbr.rel (%p640) target = $region40
        $region39: #{decoder_forward.1} parent=11 // pred_region
          %644 = vsyncadd [#allocation10], 0
          %s645 = sshll.u32 %s17, 4
          %s646 = int_to_ptr.hbm [resolvable:$true] %s645
          %s647 = sshll.u32 [#allocation11], 4
          %s648 = int_to_ptr.vmem [resolvable:$true] %s647
          %653 = dma.hbm_to_vmem [thread:$0]  %s646, 512, %s648, [#allocation10], 128, 128, 8
        $region40: #{decoder_forward.1} parent=11 // pred_fallthru
          _
        // Predicated region
        $region41: #{decoder_forward.1} parent=11 // pred_check
          %p654 = pneg %p513
        $region42: #{decoder_forward.1} parent=11 // pred_check_branch
          %656 = sbr.rel (%p654) target = $region44
        $region43: #{decoder_forward.1} parent=11 // pred_region
          %658 = vsyncadd [#allocation13], 0
          %s659 = sshll.u32 %s18, 4
          %s660 = int_to_ptr.hbm [resolvable:$true] %s659
          %s661 = sshll.u32 [#allocation12], 4
          %s662 = int_to_ptr.vmem [resolvable:$true] %s661
          %667 = dma.hbm_to_vmem [thread:$0]  %s660, 512, %s662, [#allocation13], 128, 128, 8
        $region44: #{decoder_forward.1} parent=11 // pred_fallthru
          _
        // Predicated region
        $region45: #{decoder_forward.1} parent=11 // pred_check
          %p668 = pneg %p534
        $region46: #{decoder_forward.1} parent=11 // pred_check_branch
          %670 = sbr.rel (%p668) target = $region48
        $region47: #{decoder_forward.1} parent=11 // pred_region
          _
        $region48: #{decoder_forward.1} parent=11 // pred_fallthru
          _
      $region12: #{decoder_forward.1} parent=5 // pred_fallthru
        _
      %p671 = scmp.lt.s32.totalorder %s32, 2
      // Predicated region
      $region49: #{decoder_forward.1} parent=5 // pred_check
        %p672 = pneg %p671
      $region50: #{decoder_forward.1} parent=5 // pred_check_branch
        %674 = sbr.rel (%p672) target = $region52
      $region51: #{decoder_forward.1} parent=5 // pred_region
        // Predicated region
        $region53: #{decoder_forward.1} parent=51 // pred_check
          %p675 = pneg %p163
        $region54: #{decoder_forward.1} parent=51 // pred_check_branch
          %677 = sbr.rel (%p675) target = $region56
        $region55: #{decoder_forward.1} parent=51 // pred_region
          %p678 = scmp.lt.s32.totalorder %s40, 1
          %s679 = scalar_select %p678, %s40, 1
          %s680 = smul.addr %s679, 4
          %s681 = smul.addr %s680, 8
          %s682 = scalar_lea.vmem %s4, %s681
        $region56: #{decoder_forward.1} parent=51 // pred_fallthru
          _
        // Predicated region
        $region57: #{decoder_forward.1} parent=51 // pred_check
          %p683 = pneg %p189
        $region58: #{decoder_forward.1} parent=51 // pred_check_branch
          %685 = sbr.rel (%p683) target = $region60
        $region59: #{decoder_forward.1} parent=51 // pred_region
          %p686 = scmp.lt.s32.totalorder %s40, 1
          %s687 = scalar_select %p686, %s40, 1
          %s688 = smul.addr %s687, 4
          %s689 = smul.addr %s688, 8
          %s690 = scalar_lea.vmem %s5, %s689
        $region60: #{decoder_forward.1} parent=51 // pred_fallthru
          _
        // Predicated region
        $region61: #{decoder_forward.1} parent=51 // pred_check
          %p691 = pneg %p215
        $region62: #{decoder_forward.1} parent=51 // pred_check_branch
          %693 = sbr.rel (%p691) target = $region64
        $region63: #{decoder_forward.1} parent=51 // pred_region
          %p694 = scmp.lt.s32.totalorder %s40, 1
          %s695 = scalar_select %p694, %s40, 1
          %s696 = smul.addr %s695, 4
          %s697 = smul.addr %s696, 8
          %s698 = scalar_lea.vmem %s6, %s697
        $region64: #{decoder_forward.1} parent=51 // pred_fallthru
          _
        // Predicated region
        $region65: #{decoder_forward.1} parent=51 // pred_check
          %p699 = pneg %p241
        $region66: #{decoder_forward.1} parent=51 // pred_check_branch
          %701 = sbr.rel (%p699) target = $region68
        $region67: #{decoder_forward.1} parent=51 // pred_region
          %p702 = scmp.lt.s32.totalorder %s40, 1
          %s703 = scalar_select %p702, %s40, 1
          %s704 = smul.addr %s703, 4
          %s705 = smul.addr %s704, 8
          %s706 = scalar_lea.vmem %s7, %s705
        $region68: #{decoder_forward.1} parent=51 // pred_fallthru
          _
        // Predicated region
        $region69: #{decoder_forward.1} parent=51 // pred_check
          %p707 = pneg %p267
        $region70: #{decoder_forward.1} parent=51 // pred_check_branch
          %709 = sbr.rel (%p707) target = $region72
        $region71: #{decoder_forward.1} parent=51 // pred_region
          %p710 = scmp.lt.s32.totalorder %s40, 1
          %s711 = scalar_select %p710, %s40, 1
          %s712 = smul.addr %s711, 4
          %s713 = smul.addr %s712, 8
          %s714 = scalar_lea.vmem %s8, %s713
        $region72: #{decoder_forward.1} parent=51 // pred_fallthru
          _
        // Predicated region
        $region73: #{decoder_forward.1} parent=51 // pred_check
          %p715 = pneg %p293
        $region74: #{decoder_forward.1} parent=51 // pred_check_branch
          %717 = sbr.rel (%p715) target = $region76
        $region75: #{decoder_forward.1} parent=51 // pred_region
          %p718 = scmp.lt.s32.totalorder %s40, 1
          %s719 = scalar_select %p718, %s40, 1
          %s720 = smul.addr %s719, 4
          %s721 = smul.addr %s720, 8
          %s722 = scalar_lea.vmem %s9, %s721
        $region76: #{decoder_forward.1} parent=51 // pred_fallthru
          _
        // Predicated region
        $region77: #{decoder_forward.1} parent=51 // pred_check
          %p723 = pneg %p319
        $region78: #{decoder_forward.1} parent=51 // pred_check_branch
          %725 = sbr.rel (%p723) target = $region80
        $region79: #{decoder_forward.1} parent=51 // pred_region
          %p726 = scmp.lt.s32.totalorder %s40, 1
          %s727 = scalar_select %p726, %s40, 1
          %s728 = smul.addr %s727, 4
          %s729 = smul.addr %s728, 8
          %s730 = scalar_lea.vmem %s10, %s729
        $region80: #{decoder_forward.1} parent=51 // pred_fallthru
          _
        // Predicated region
        $region81: #{decoder_forward.1} parent=51 // pred_check
          %p731 = pneg %p345
        $region82: #{decoder_forward.1} parent=51 // pred_check_branch
          %733 = sbr.rel (%p731) target = $region84
        $region83: #{decoder_forward.1} parent=51 // pred_region
          %p734 = scmp.lt.s32.totalorder %s40, 1
          %s735 = scalar_select %p734, %s40, 1
          %s736 = smul.addr %s735, 8
          %s737 = smul.addr %s736, 8
          %s738 = scalar_lea.vmem %s11, %s737
        $region84: #{decoder_forward.1} parent=51 // pred_fallthru
          _
        // Predicated region
        $region85: #{decoder_forward.1} parent=51 // pred_check
          %p739 = pneg %p371
        $region86: #{decoder_forward.1} parent=51 // pred_check_branch
          %741 = sbr.rel (%p739) target = $region88
        $region87: #{decoder_forward.1} parent=51 // pred_region
          %p742 = scmp.lt.s32.totalorder %s40, 1
          %s743 = scalar_select %p742, %s40, 1
          %s744 = smul.addr %s743, 2
          %s745 = scalar_lea.vmem %s12, %s744
        $region88: #{decoder_forward.1} parent=51 // pred_fallthru
          _
        // Predicated region
        $region89: #{decoder_forward.1} parent=51 // pred_check
          %p746 = pneg %p397
        $region90: #{decoder_forward.1} parent=51 // pred_check_branch
          %748 = sbr.rel (%p746) target = $region92
        $region91: #{decoder_forward.1} parent=51 // pred_region
          %p749 = scmp.lt.s32.totalorder %s40, 1
          %s750 = scalar_select %p749, %s40, 1
          %s751 = smul.addr %s750, 2
          %s752 = smul.addr %s751, 8
          %s753 = scalar_lea.vmem %s13, %s752
        $region92: #{decoder_forward.1} parent=51 // pred_fallthru
          _
        // Predicated region
        $region93: #{decoder_forward.1} parent=51 // pred_check
          %p754 = pneg %p423
        $region94: #{decoder_forward.1} parent=51 // pred_check_branch
          %756 = sbr.rel (%p754) target = $region96
        $region95: #{decoder_forward.1} parent=51 // pred_region
          %s757 = sand.u32 %s32, 1
          %s758 = scalar_lea.sflag [#allocation7], %s757
          %s759 = sand.u32 %s413, 1
          %s760 = scalar_lea.vmem [#allocation6], %s759
          %762 = vsyncadd %s758, 0
          %s763 = scalar_lea.hbm %s14, %s40
          %s765 = sshll.u32 %s763, 4
          %s766 = int_to_ptr.hbm [resolvable:$true] %s765
          %s767 = sshll.u32 %s760, 4
          %s768 = int_to_ptr.vmem [resolvable:$true] %s767
          %770 = dma.hbm_to_vmem [thread:$0]  %s766, 16, %s768, %s758
        $region96: #{decoder_forward.1} parent=51 // pred_fallthru
          _
      $region52: #{decoder_forward.1} parent=5 // pred_fallthru
        _
      %p771 = scmp.le.s32.totalorder 1, %s32
      %p772 = scmp.lt.s32.totalorder %s32, 3
      %p773 = pnand %p771, %p772
      %p774 = pneg %p773
      // Predicated region
      $region97: #{decoder_forward.1} parent=5 // pred_check
        _
      $region98: #{decoder_forward.1} parent=5 // pred_check_branch
        %776 = sbr.rel (%p773) target = $region100
      $region99: #{decoder_forward.1} parent=5 // pred_region
        %s777 = ssub.s32 %s32, 1
        // Predicated region
        $region101: #{decoder_forward.1} parent=99 // pred_check
          %p778 = pneg %p96
        $region102: #{decoder_forward.1} parent=99 // pred_check_branch
          %780 = sbr.rel (%p778) target = $region104
        $region103: #{decoder_forward.1} parent=99 // pred_region
          %782 = dma.done [#allocation5], 512
        $region104: #{decoder_forward.1} parent=99 // pred_fallthru
          _
        %s783 = sand.u32 %s37, 1
        %s784 = scalar_lea.sflag [#allocation7], %s783
        %s785 = sand.u32 %s416, 1
        %s786 = scalar_lea.vmem [#allocation6], %s785
        // Predicated region
        $region105: #{decoder_forward.1} parent=99 // pred_check
          %p787 = pneg %p429
        $region106: #{decoder_forward.1} parent=99 // pred_check_branch
          %789 = sbr.rel (%p787) target = $region108
        $region107: #{decoder_forward.1} parent=99 // pred_region
          %791 = dma.done %s784, 16
        $region108: #{decoder_forward.1} parent=99 // pred_fallthru
          _
        // Predicated region
        $region109: #{decoder_forward.1} parent=99 // pred_check
          %p792 = pneg %p450
        $region110: #{decoder_forward.1} parent=99 // pred_check_branch
          %794 = sbr.rel (%p792) target = $region112
        $region111: #{decoder_forward.1} parent=99 // pred_region
          %796 = dma.done [#allocation7], 64
        $region112: #{decoder_forward.1} parent=99 // pred_fallthru
          _
        // Predicated region
        $region113: #{decoder_forward.1} parent=99 // pred_check
          %p797 = pneg %p471
        $region114: #{decoder_forward.1} parent=99 // pred_check_branch
          %799 = sbr.rel (%p797) target = $region116
        $region115: #{decoder_forward.1} parent=99 // pred_region
          %801 = dma.done [#allocation10], 512
        $region116: #{decoder_forward.1} parent=99 // pred_fallthru
          _
        // Predicated region
        $region117: #{decoder_forward.1} parent=99 // pred_check
          %p802 = pneg %p492
        $region118: #{decoder_forward.1} parent=99 // pred_check_branch
          %804 = sbr.rel (%p802) target = $region120
        $region119: #{decoder_forward.1} parent=99 // pred_region
          %806 = dma.done [#allocation10], 512
        $region120: #{decoder_forward.1} parent=99 // pred_fallthru
          _
        // Predicated region
        $region121: #{decoder_forward.1} parent=99 // pred_check
          %p807 = pneg %p513
        $region122: #{decoder_forward.1} parent=99 // pred_check_branch
          %809 = sbr.rel (%p807) target = $region124
        $region123: #{decoder_forward.1} parent=99 // pred_region
          %811 = dma.done [#allocation13], 512
        $region124: #{decoder_forward.1} parent=99 // pred_fallthru
          _
        %s812 = smul.u32 2, %s41
        %p813 = scmp.lt.s32.totalorder %s812, 1
        %s814 = scalar_select %p813, %s812, 1
        %s815 = smul.addr %s814, 8
        %s816 = scalar_lea.vmem %s0, %s815
        %p817 = pneg %p70
        %p818 = pneg %p67
        %p819 = pneg %p96
        %p820 = pneg %p93
        %p821 = pneg %p117
        %p822 = pneg %p114
        %s823 = smul.u32 2, %s41
        %p824 = scmp.lt.s32.totalorder %s823, 1
        %s825 = scalar_select %p824, %s823, 1
        %s826 = smul.addr %s825, 4
        %s827 = scalar_lea.vmem %s3, %s826
        %p828 = pneg %p143
        %p829 = pneg %p140
        %p830 = scmp.lt.s32.totalorder %s42, 1
        %s831 = scalar_select %p830, %s42, 1
        %s832 = smul.addr %s831, 4
        %s833 = smul.addr %s832, 8
        %s834 = scalar_lea.vmem %s4, %s833
        %p835 = pneg %p169
        %p836 = pneg %p166
        %p837 = scmp.lt.s32.totalorder %s42, 1
        %s838 = scalar_select %p837, %s42, 1
        %s839 = smul.addr %s838, 4
        %s840 = smul.addr %s839, 8
        %s841 = scalar_lea.vmem %s5, %s840
        %p842 = pneg %p195
        %p843 = pneg %p192
        %p844 = scmp.lt.s32.totalorder %s42, 1
        %s845 = scalar_select %p844, %s42, 1
        %s846 = smul.addr %s845, 4
        %s847 = smul.addr %s846, 8
        %s848 = scalar_lea.vmem %s6, %s847
        %p849 = pneg %p221
        %p850 = pneg %p218
        %p851 = scmp.lt.s32.totalorder %s42, 1
        %s852 = scalar_select %p851, %s42, 1
        %s853 = smul.addr %s852, 4
        %s854 = smul.addr %s853, 8
        %s855 = scalar_lea.vmem %s7, %s854
        %p856 = pneg %p247
        %p857 = pneg %p244
        %p858 = scmp.lt.s32.totalorder %s42, 1
        %s859 = scalar_select %p858, %s42, 1
        %s860 = smul.addr %s859, 4
        %s861 = smul.addr %s860, 8
        %s862 = scalar_lea.vmem %s8, %s861
        %p863 = pneg %p273
        %p864 = pneg %p270
        %p865 = scmp.lt.s32.totalorder %s42, 1
        %s866 = scalar_select %p865, %s42, 1
        %s867 = smul.addr %s866, 4
        %s868 = smul.addr %s867, 8
        %s869 = scalar_lea.vmem %s9, %s868
        %p870 = pneg %p299
        %p871 = pneg %p296
        %p872 = scmp.lt.s32.totalorder %s42, 1
        %s873 = scalar_select %p872, %s42, 1
        %s874 = smul.addr %s873, 4
        %s875 = smul.addr %s874, 8
        %s876 = scalar_lea.vmem %s10, %s875
        %p877 = pneg %p325
        %p878 = pneg %p322
        %p879 = scmp.lt.s32.totalorder %s42, 1
        %s880 = scalar_select %p879, %s42, 1
        %s881 = smul.addr %s880, 8
        %s882 = smul.addr %s881, 8
        %s883 = scalar_lea.vmem %s11, %s882
        %p884 = pneg %p351
        %p885 = pneg %p348
        %p886 = scmp.lt.s32.totalorder %s42, 1
        %s887 = scalar_select %p886, %s42, 1
        %s888 = smul.addr %s887, 2
        %s889 = scalar_lea.vmem %s12, %s888
        %p890 = pneg %p377
        %p891 = pneg %p374
        %p892 = scmp.lt.s32.totalorder %s42, 1
        %s893 = scalar_select %p892, %s42, 1
        %s894 = smul.addr %s893, 2
        %s895 = smul.addr %s894, 8
        %s896 = scalar_lea.vmem %s13, %s895
        %p897 = pneg %p403
        %p898 = pneg %p400
        %s899 = sand.u32 %s37, 1
        %s900 = scalar_lea.sflag [#allocation7], %s899
        %s901 = sand.u32 %s416, 1
        %s902 = scalar_lea.vmem [#allocation6], %s901
        %p903 = pneg %p429
        %p904 = pneg %p426
        %p905 = pneg %p450
        %p906 = pneg %p447
        %p907 = pneg %p471
        %p908 = pneg %p468
        %p909 = pneg %p492
        %p910 = pneg %p489
        %p911 = pneg %p513
        %p912 = pneg %p510
        %p913 = pneg %p534
        %p914 = pneg %p531
        %p915 = pneg %p560
        %p916 = pneg %p557
        %s917 = smul.u32 2, %s41
        %p918 = scmp.lt.s32.totalorder %s917, 1
        %s919 = scalar_select %p918, %s917, 1
        %s920 = smul.addr %s919, 8
        %s921 = scalar_lea.vmem %s20, %s920
        %s922 = smul.u32 2, %s41
        %p923 = scmp.lt.s32.totalorder %s922, 1
        %s924 = scalar_select %p923, %s922, 1
        %s925 = smul.addr %s924, 8
        %s926 = scalar_lea.vmem %s0, %s925
        %s927 = smul.u32 2, %s41
        %s928 = smul.u32 2, %s41
        %s929 = smul.u32 2, %s41
        %p930 = scmp.lt.s32.totalorder %s929, 1
        %s931 = scalar_select %p930, %s929, 1
        %s932 = smul.addr %s931, 4
        %s933 = scalar_lea.vmem %s3, %s932
        %s934 = smul.u32 2, %s41
        %p935 = scmp.lt.s32.totalorder %s42, 1
        %s936 = scalar_select %p935, %s42, 1
        %s937 = smul.addr %s936, 4
        %s938 = smul.addr %s937, 8
        %s939 = scalar_lea.vmem %s4, %s938
        %p940 = scmp.lt.s32.totalorder %s42, 1
        %s941 = scalar_select %p940, %s42, 1
        %s942 = smul.addr %s941, 4
        %s943 = smul.addr %s942, 8
        %s944 = scalar_lea.vmem %s5, %s943
        %p945 = scmp.lt.s32.totalorder %s42, 1
        %s946 = scalar_select %p945, %s42, 1
        %s947 = smul.addr %s946, 4
        %s948 = smul.addr %s947, 8
        %s949 = scalar_lea.vmem %s6, %s948
        %p950 = scmp.lt.s32.totalorder %s42, 1
        %s951 = scalar_select %p950, %s42, 1
        %s952 = smul.addr %s951, 4
        %s953 = smul.addr %s952, 8
        %s954 = scalar_lea.vmem %s7, %s953
        %p955 = scmp.lt.s32.totalorder %s42, 1
        %s956 = scalar_select %p955, %s42, 1
        %s957 = smul.addr %s956, 4
        %s958 = smul.addr %s957, 8
        %s959 = scalar_lea.vmem %s8, %s958
        %p960 = scmp.lt.s32.totalorder %s42, 1
        %s961 = scalar_select %p960, %s42, 1
        %s962 = smul.addr %s961, 4
        %s963 = smul.addr %s962, 8
        %s964 = scalar_lea.vmem %s9, %s963
        %p965 = scmp.lt.s32.totalorder %s42, 1
        %s966 = scalar_select %p965, %s42, 1
        %s967 = smul.addr %s966, 4
        %s968 = smul.addr %s967, 8
        %s969 = scalar_lea.vmem %s10, %s968
        %p970 = scmp.lt.s32.totalorder %s42, 1
        %s971 = scalar_select %p970, %s42, 1
        %s972 = smul.addr %s971, 8
        %s973 = smul.addr %s972, 8
        %s974 = scalar_lea.vmem %s11, %s973
        %p975 = scmp.lt.s32.totalorder %s42, 1
        %s976 = scalar_select %p975, %s42, 1
        %s977 = smul.addr %s976, 2
        %s978 = scalar_lea.vmem %s12, %s977
        %p979 = scmp.lt.s32.totalorder %s42, 1
        %s980 = scalar_select %p979, %s42, 1
        %s981 = smul.addr %s980, 2
        %s982 = smul.addr %s981, 8
        %s983 = scalar_lea.vmem %s13, %s982
        %s984 = smul.u32 2, %s41
        %p985 = scmp.lt.s32.totalorder %s984, 1
        %s986 = scalar_select %p985, %s984, 1
        %s987 = smul.addr %s986, 8
        %s988 = scalar_lea.vmem %s20, %s987
        %s989 = smul.u32 2, %s41
        %p990 = scmp.eq.s32.totalorder %s42, 0
        // Predicated region
        $region125: #{decoder_forward.1} parent=99 // pred_check
          %p991 = pneg %p990
        $region126: #{decoder_forward.1} parent=99 // pred_check_branch
          %993 = sbr.rel (%p991) target = $region128
        $region127: #{decoder_forward.1} parent=99 // pred_region
          %v994 = vld [vmem:[%s926] sm:$0xff]
          %v995 = vld [vmem:[%s926 + $0x8] sm:$0xff]
          %vm996 = vcmask 261120
          %997 = vst.msk [vmem:[#allocation2] sm:$0xff] %vm996, %v994
          %998 = vst.msk [vmem:[#allocation2 + $0x8] sm:$0xff] %vm996, %v995
          %v999 = vlaneseq
          %v1000 = vshrl.u32 %v999, 7
          %v1001 = vlaneseq
          %v1002 = vand.u32 %v1001, 127
          %vm1003 = vcmp.gt.s32.totalorder %v1002, %v1000
          %v1004 = vsel %vm1003, -1e+30, 0.0
          %v1005 = vld [vmem:[%s933] sm:$0xf]
          %v1006 = vld [vmem:[%s933 + $0x4] sm:$0xf]
          %v1009 = vrot.slane %v1005, 1
          %v1010 = vrot.slane %v1005, 2
          %v1011 = vrot.slane %v1005, 3
          %v1012 = vrot.slane %v1006, 1
          %v1013 = vrot.slane %v1006, 2
          %v1014 = vrot.slane %v1006, 3
          %v1015 = vperm.slane %v1005, 0
          %v1016 = vperm.slane %v1009, 0
          %v1017 = vperm.slane %v1010, 0
          %v1018 = vperm.slane %v1011, 0
          %v1019 = vperm.slane %v1006, 0
          %v1020 = vperm.slane %v1012, 0
          %v1021 = vperm.slane %v1013, 0
          %v1022 = vperm.slane %v1014, 0
          %v1031 = vadd.f32 %v1015, %v1004
          %v1032 = vadd.f32 %v1016, %v1004
          %v1033 = vadd.f32 %v1017, %v1004
          %v1034 = vadd.f32 %v1018, %v1004
          %v1035 = vadd.f32 %v1019, %v1004
          %v1036 = vadd.f32 %v1020, %v1004
          %v1037 = vadd.f32 %v1021, %v1004
          %v1038 = vadd.f32 %v1022, %v1004
          %vm1039 = vcmask 64512
          %1040 = vst.msk [vmem:[#allocation3] sm:$0xff] %vm1039, %v1031
          %1041 = vst.msk [vmem:[#allocation3 + $0x8] sm:$0xff] %vm1039, %v1032
          %1042 = vst.msk [vmem:[#allocation3 + $0x10] sm:$0xff] %vm1039, %v1033
          %1043 = vst.msk [vmem:[#allocation3 + $0x18] sm:$0xff] %vm1039, %v1034
          %1044 = vst.msk [vmem:[#allocation3 + $0x20] sm:$0xff] %vm1039, %v1035
          %1045 = vst.msk [vmem:[#allocation3 + $0x28] sm:$0xff] %vm1039, %v1036
          %1046 = vst.msk [vmem:[#allocation3 + $0x30] sm:$0xff] %vm1039, %v1037
          %1047 = vst.msk [vmem:[#allocation3 + $0x38] sm:$0xff] %vm1039, %v1038
        $region128: #{decoder_forward.1} parent=99 // pred_fallthru
          _
        %v1048 = vld [vmem:[#allocation2] sm:$0xff]
        %v1049 = vld [vmem:[#allocation2 + $0x8] sm:$0xff]
        %v1050 = vld [vmem:[%s2] sm:$0xff]
        %v1051 = vld [vmem:[#allocation3] sm:$0xff]
        %v1052 = vld [vmem:[#allocation3 + $0x8] sm:$0xff]
        %v1053 = vld [vmem:[#allocation3 + $0x10] sm:$0xff]
        %v1054 = vld [vmem:[#allocation3 + $0x18] sm:$0xff]
        %v1055 = vld [vmem:[#allocation3 + $0x20] sm:$0xff]
        %v1056 = vld [vmem:[#allocation3 + $0x28] sm:$0xff]
        %v1057 = vld [vmem:[#allocation3 + $0x30] sm:$0xff]
        %v1058 = vld [vmem:[#allocation3 + $0x38] sm:$0xff]
        %v1059 = vld [vmem:[%s983] sm:$0xff]
        %v1060 = vld [vmem:[%s983 + $0x8] sm:$0x7]
        %v1061 = vld [vmem:[%s978] sm:$0x3]
        %v1062 = vld [vmem:[%s786] sm:$0x1]
        %v1063 = vadd.f32 %v1048, %v1050
        %v1064 = vadd.f32 %v1049, %v1050
        %v1065 = vld [vmem:[%s939] sm:$0xff]
        %v1066 = vld [vmem:[%s939 + $0x8] sm:$0xff]
        %v1067 = vld [vmem:[%s939 + $0x10] sm:$0xff]
        %v1068 = vld [vmem:[%s939 + $0x18] sm:$0xff]
        %v1069 = vperm.slane %v1061, 0
        %vm1070 = vcmask 261120
        %v1072 = vsel %vm1070, %v1063, 0
        %v1075 = vsel %vm1070, %v1064, 0
        %1077 = vmatpush.msra.mxu0 0.0
        %1078 = vmatpush.msra.mxu0 0.0
        %1079 = vmatpush.msra.mxu0 0.0
        %1080 = vmatpush.msra.mxu0 0.0
        %1081 = vmatpush.msra.mxu0 0.0
        %1082 = vmatpush.msra.mxu0 0.0
        %1083 = vmatpush.msra.mxu0 0.0
        %1084 = vmatpush.msra.mxu0 0.0
        %1085 = vmatpush.msra.mxu0 0.0
        %1086 = vmatpush.msra.mxu0 0.0
        %1087 = vmatpush.msra.mxu0 0.0
        %1088 = vmatpush.msra.mxu0 0.0
        %1089 = vmatpush.msra.mxu0 %v1068
        %1090 = vmatpush.msra.mxu0 %v1067
        %1091 = vmatpush.msra.mxu0 %v1066
        %1092 = vmatpush.msra.mxu0 %v1065
        %1093 = vmatmul.f32.gmra.mxu0 %v1072
        %v1094 = vpop.f32.mrf.mxu0
        %v1095 = vadd.f32 %v1069, %v1094
        %1096 = vmatmul.f32.gmra.mxu0 %v1075
        %v1097 = vpop.f32.mrf.mxu0
        %v1098 = vadd.f32 %v1069, %v1097
        %1099 = vdwg.mxu0
        %v1100 = vld [vmem:[%s944] sm:$0xff]
        %v1101 = vld [vmem:[%s944 + $0x8] sm:$0xff]
        %v1102 = vld [vmem:[%s944 + $0x10] sm:$0xff]
        %v1103 = vld [vmem:[%s944 + $0x18] sm:$0xff]
        %v1104 = vperm.slane %v1059, 0
        %v1106 = vsel %vm1070, %v1048, 0
        %v1109 = vsel %vm1070, %v1049, 0
        %1111 = vmatpush.msra.mxu0 0.0
        %1112 = vmatpush.msra.mxu0 0.0
        %1113 = vmatpush.msra.mxu0 0.0
        %1114 = vmatpush.msra.mxu0 0.0
        %1115 = vmatpush.msra.mxu0 0.0
        %1116 = vmatpush.msra.mxu0 0.0
        %1117 = vmatpush.msra.mxu0 0.0
        %1118 = vmatpush.msra.mxu0 0.0
        %1119 = vmatpush.msra.mxu0 0.0
        %1120 = vmatpush.msra.mxu0 0.0
        %1121 = vmatpush.msra.mxu0 0.0
        %1122 = vmatpush.msra.mxu0 0.0
        %1123 = vmatpush.msra.mxu0 %v1103
        %1124 = vmatpush.msra.mxu0 %v1102
        %1125 = vmatpush.msra.mxu0 %v1101
        %1126 = vmatpush.msra.mxu0 %v1100
        %1127 = vmatmul.f32.gmra.mxu0 %v1106
        %v1128 = vpop.f32.mrf.mxu0
        %v1129 = vadd.f32 %v1104, %v1128
        %1130 = vmatmul.f32.gmra.mxu0 %v1109
        %v1131 = vpop.f32.mrf.mxu0
        %v1132 = vadd.f32 %v1104, %v1131
        %1133 = vdwg.mxu0
        %v1134 = vmul.f32 %v1095, 0.35355338
        %1136 = vrot.lane.b32.xlu0 %v1134, 120
        %v1137 = vpop.permute.xlu0 %1136
        %1139 = vrot.lane.b32.xlu0 %v1134, 112
        %v1140 = vpop.permute.xlu0 %1139
        %1142 = vrot.lane.b32.xlu0 %v1134, 104
        %v1143 = vpop.permute.xlu0 %1142
        %v1145 = vrot.slane %v1140, 4
        %vm1146 = vcmask 1047556
        %v1147 = vsel %vm1146, %v1145, %v1134
        %v1148 = vrot.slane %v1134, 4
        %v1149 = vsel %vm1146, %v1140, %v1148
        %v1151 = vunpack.c.l.s4 1983009808
        %v1152 = vunpack.c.0.s8 %v1151
        %v1153 = vperm.slane %v1147, %v1152
        %v1155 = vunpack.c.l.s4 1983009808
        %v1156 = vunpack.c.0.s8 %v1155
        %v1157 = vperm.slane %v1149, %v1156
        %v1158 = vrot.slane %v1143, 4
        %v1159 = vsel %vm1146, %v1158, %v1137
        %v1160 = vrot.slane %v1137, 4
        %v1161 = vsel %vm1146, %v1143, %v1160
        %v1163 = vunpack.c.l.s4 1983009808
        %v1164 = vunpack.c.0.s8 %v1163
        %v1165 = vperm.slane %v1159, %v1164
        %v1167 = vunpack.c.l.s4 1983009808
        %v1168 = vunpack.c.0.s8 %v1167
        %v1169 = vperm.slane %v1161, %v1168
        %v1170 = vrot.slane %v1165, 4
        %v1171 = vsel %vm1146, %v1170, %v1153
        %v1172 = vrot.slane %v1153, 4
        %v1173 = vsel %vm1146, %v1165, %v1172
        %v1175 = vunpack.c.l.s4 1934713408
        %v1176 = vunpack.c.0.s8 %v1175
        %v1177 = vperm.slane %v1171, %v1176
        %v1179 = vunpack.c.l.s4 1934713408
        %v1180 = vunpack.c.0.s8 %v1179
        %v1181 = vperm.slane %v1173, %v1180
        %v1182 = vrot.slane %v1169, 4
        %v1183 = vsel %vm1146, %v1182, %v1157
        %v1184 = vrot.slane %v1157, 4
        %v1185 = vsel %vm1146, %v1169, %v1184
        %v1187 = vunpack.c.l.s4 1934713408
        %v1188 = vunpack.c.0.s8 %v1187
        %v1189 = vperm.slane %v1183, %v1188
        %v1191 = vunpack.c.l.s4 1934713408
        %v1192 = vunpack.c.0.s8 %v1191
        %v1193 = vperm.slane %v1185, %v1192
        %v1194 = vrot.slane %v1177, 4
        %v1195 = vsel %vm1146, 0.0, %v1194
        %v1196 = vrot.slane %v1181, 4
        %v1197 = vsel %vm1146, 0.0, %v1196
        %v1198 = vrot.slane %v1189, 4
        %v1199 = vsel %vm1146, 0.0, %v1198
        %v1200 = vrot.slane %v1193, 4
        %v1201 = vsel %vm1146, 0.0, %v1200
        %v1202 = vsel %vm1146, %v1196, %v1177
        %v1204 = vunpack.c.l.s4 1983009808
        %v1205 = vunpack.c.0.s8 %v1204
        %v1206 = vperm.slane %v1202, %v1205
        %v1207 = vrot.slane %v1197, 4
        %v1208 = vsel %vm1146, %v1207, %v1195
        %v1210 = vunpack.c.l.s4 1983009808
        %v1211 = vunpack.c.0.s8 %v1210
        %v1212 = vperm.slane %v1208, %v1211
        %v1213 = vsel %vm1146, %v1200, %v1189
        %v1215 = vunpack.c.l.s4 1983009808
        %v1216 = vunpack.c.0.s8 %v1215
        %v1217 = vperm.slane %v1213, %v1216
        %v1218 = vrot.slane %v1201, 4
        %v1219 = vsel %vm1146, %v1218, %v1199
        %v1221 = vunpack.c.l.s4 1983009808
        %v1222 = vunpack.c.0.s8 %v1221
        %v1223 = vperm.slane %v1219, %v1222
        %v1224 = vrot.slane %v1212, 4
        %v1225 = vsel %vm1146, %v1224, %v1206
        %v1226 = vrot.slane %v1206, 4
        %v1227 = vsel %vm1146, %v1212, %v1226
        %v1229 = vunpack.c.l.s4 1934713408
        %v1230 = vunpack.c.0.s8 %v1229
        %v1231 = vperm.slane %v1225, %v1230
        %v1233 = vunpack.c.l.s4 1934713408
        %v1234 = vunpack.c.0.s8 %v1233
        %v1235 = vperm.slane %v1227, %v1234
        %v1236 = vrot.slane %v1223, 4
        %v1237 = vsel %vm1146, %v1236, %v1217
        %v1238 = vrot.slane %v1217, 4
        %v1239 = vsel %vm1146, %v1223, %v1238
        %v1241 = vunpack.c.l.s4 1934713408
        %v1242 = vunpack.c.0.s8 %v1241
        %v1243 = vperm.slane %v1237, %v1242
        %v1245 = vunpack.c.l.s4 1934713408
        %v1246 = vunpack.c.0.s8 %v1245
        %v1247 = vperm.slane %v1239, %v1246
        %v1248 = vrot.slane %v1243, 4
        %v1249 = vsel %vm1146, %v1248, %v1231
        %v1250 = vrot.slane %v1231, 4
        %v1251 = vsel %vm1146, %v1243, %v1250
        %v1252 = vrot.slane %v1247, 4
        %v1253 = vsel %vm1146, %v1252, %v1235
        %v1254 = vrot.slane %v1235, 4
        %v1255 = vsel %vm1146, %v1247, %v1254
        %1257 = vrot.lane.b32.xlu0 %v1095, 120
        %v1258 = vpop.permute.xlu0 %1257
        %1259 = vrot.lane.b32.xlu0 %v1095, 112
        %v1260 = vpop.permute.xlu0 %1259
        %1261 = vrot.lane.b32.xlu0 %v1095, 104
        %v1262 = vpop.permute.xlu0 %1261
        %1263 = vrot.lane.b32.xlu0 %v1095, 96
        %v1264 = vpop.permute.xlu0 %1263
        %1265 = vrot.lane.b32.xlu0 %v1258, 96
        %v1266 = vpop.permute.xlu0 %1265
        %1267 = vrot.lane.b32.xlu0 %v1260, 96
        %v1268 = vpop.permute.xlu0 %1267
        %1269 = vrot.lane.b32.xlu0 %v1262, 96
        %v1270 = vpop.permute.xlu0 %1269
        %v1275 = vrot.slane %v1268, 4
        %v1276 = vsel %vm1146, %v1275, %v1264
        %v1277 = vrot.slane %v1264, 4
        %v1278 = vsel %vm1146, %v1268, %v1277
        %v1280 = vunpack.c.l.s4 1983009808
        %v1281 = vunpack.c.0.s8 %v1280
        %v1282 = vperm.slane %v1276, %v1281
        %v1284 = vunpack.c.l.s4 1983009808
        %v1285 = vunpack.c.0.s8 %v1284
        %v1286 = vperm.slane %v1278, %v1285
        %v1287 = vrot.slane %v1270, 4
        %v1288 = vsel %vm1146, %v1287, %v1266
        %v1289 = vrot.slane %v1266, 4
        %v1290 = vsel %vm1146, %v1270, %v1289
        %v1292 = vunpack.c.l.s4 1983009808
        %v1293 = vunpack.c.0.s8 %v1292
        %v1294 = vperm.slane %v1288, %v1293
        %v1296 = vunpack.c.l.s4 1983009808
        %v1297 = vunpack.c.0.s8 %v1296
        %v1298 = vperm.slane %v1290, %v1297
        %v1299 = vrot.slane %v1294, 4
        %v1300 = vsel %vm1146, %v1299, %v1282
        %v1301 = vrot.slane %v1282, 4
        %v1302 = vsel %vm1146, %v1294, %v1301
        %v1304 = vunpack.c.l.s4 1934713408
        %v1305 = vunpack.c.0.s8 %v1304
        %v1306 = vperm.slane %v1300, %v1305
        %v1308 = vunpack.c.l.s4 1934713408
        %v1309 = vunpack.c.0.s8 %v1308
        %v1310 = vperm.slane %v1302, %v1309
        %v1311 = vrot.slane %v1298, 4
        %v1312 = vsel %vm1146, %v1311, %v1286
        %v1313 = vrot.slane %v1286, 4
        %v1314 = vsel %vm1146, %v1298, %v1313
        %v1316 = vunpack.c.l.s4 1934713408
        %v1317 = vunpack.c.0.s8 %v1316
        %v1318 = vperm.slane %v1312, %v1317
        %v1320 = vunpack.c.l.s4 1934713408
        %v1321 = vunpack.c.0.s8 %v1320
        %v1322 = vperm.slane %v1314, %v1321
        %v1323 = vrot.slane %v1306, 4
        %v1324 = vsel %vm1146, 0.0, %v1323
        %v1325 = vrot.slane %v1310, 4
        %v1326 = vsel %vm1146, 0.0, %v1325
        %v1327 = vrot.slane %v1318, 4
        %v1328 = vsel %vm1146, 0.0, %v1327
        %v1329 = vrot.slane %v1322, 4
        %v1330 = vsel %vm1146, 0.0, %v1329
        %v1331 = vsel %vm1146, %v1325, %v1306
        %v1333 = vunpack.c.l.s4 1983009808
        %v1334 = vunpack.c.0.s8 %v1333
        %v1335 = vperm.slane %v1331, %v1334
        %v1336 = vrot.slane %v1326, 4
        %v1337 = vsel %vm1146, %v1336, %v1324
        %v1339 = vunpack.c.l.s4 1983009808
        %v1340 = vunpack.c.0.s8 %v1339
        %v1341 = vperm.slane %v1337, %v1340
        %v1342 = vsel %vm1146, %v1329, %v1318
        %v1344 = vunpack.c.l.s4 1983009808
        %v1345 = vunpack.c.0.s8 %v1344
        %v1346 = vperm.slane %v1342, %v1345
        %v1347 = vrot.slane %v1330, 4
        %v1348 = vsel %vm1146, %v1347, %v1328
        %v1350 = vunpack.c.l.s4 1983009808
        %v1351 = vunpack.c.0.s8 %v1350
        %v1352 = vperm.slane %v1348, %v1351
        %v1353 = vrot.slane %v1341, 4
        %v1354 = vsel %vm1146, %v1353, %v1335
        %v1355 = vrot.slane %v1335, 4
        %v1356 = vsel %vm1146, %v1341, %v1355
        %v1358 = vunpack.c.l.s4 1934713408
        %v1359 = vunpack.c.0.s8 %v1358
        %v1360 = vperm.slane %v1354, %v1359
        %v1362 = vunpack.c.l.s4 1934713408
        %v1363 = vunpack.c.0.s8 %v1362
        %v1364 = vperm.slane %v1356, %v1363
        %v1365 = vrot.slane %v1352, 4
        %v1366 = vsel %vm1146, %v1365, %v1346
        %v1367 = vrot.slane %v1346, 4
        %v1368 = vsel %vm1146, %v1352, %v1367
        %v1370 = vunpack.c.l.s4 1934713408
        %v1371 = vunpack.c.0.s8 %v1370
        %v1372 = vperm.slane %v1366, %v1371
        %v1374 = vunpack.c.l.s4 1934713408
        %v1375 = vunpack.c.0.s8 %v1374
        %v1376 = vperm.slane %v1368, %v1375
        %v1377 = vrot.slane %v1372, 4
        %v1378 = vsel %vm1146, %v1377, %v1360
        %v1379 = vrot.slane %v1360, 4
        %v1380 = vsel %vm1146, %v1372, %v1379
        %v1381 = vrot.slane %v1376, 4
        %v1382 = vsel %vm1146, %v1381, %v1364
        %v1383 = vrot.slane %v1364, 4
        %v1384 = vsel %vm1146, %v1376, %v1383
        %1386 = vrot.lane.b32.xlu0 %v1129, 120
        %v1387 = vpop.permute.xlu0 %1386
        %1389 = vrot.lane.b32.xlu0 %v1129, 112
        %v1390 = vpop.permute.xlu0 %1389
        %1392 = vrot.lane.b32.xlu0 %v1129, 104
        %v1393 = vpop.permute.xlu0 %1392
        %v1395 = vrot.slane %v1390, 4
        %v1396 = vsel %vm1146, %v1395, %v1129
        %v1397 = vrot.slane %v1129, 4
        %v1398 = vsel %vm1146, %v1390, %v1397
        %v1400 = vunpack.c.l.s4 1983009808
        %v1401 = vunpack.c.0.s8 %v1400
        %v1402 = vperm.slane %v1396, %v1401
        %v1404 = vunpack.c.l.s4 1983009808
        %v1405 = vunpack.c.0.s8 %v1404
        %v1406 = vperm.slane %v1398, %v1405
        %v1407 = vrot.slane %v1393, 4
        %v1408 = vsel %vm1146, %v1407, %v1387
        %v1409 = vrot.slane %v1387, 4
        %v1410 = vsel %vm1146, %v1393, %v1409
        %v1412 = vunpack.c.l.s4 1983009808
        %v1413 = vunpack.c.0.s8 %v1412
        %v1414 = vperm.slane %v1408, %v1413
        %v1416 = vunpack.c.l.s4 1983009808
        %v1417 = vunpack.c.0.s8 %v1416
        %v1418 = vperm.slane %v1410, %v1417
        %v1419 = vrot.slane %v1414, 4
        %v1420 = vsel %vm1146, %v1419, %v1402
        %v1421 = vrot.slane %v1402, 4
        %v1422 = vsel %vm1146, %v1414, %v1421
        %v1424 = vunpack.c.l.s4 1934713408
        %v1425 = vunpack.c.0.s8 %v1424
        %v1426 = vperm.slane %v1420, %v1425
        %v1428 = vunpack.c.l.s4 1934713408
        %v1429 = vunpack.c.0.s8 %v1428
        %v1430 = vperm.slane %v1422, %v1429
        %v1431 = vrot.slane %v1418, 4
        %v1432 = vsel %vm1146, %v1431, %v1406
        %v1433 = vrot.slane %v1406, 4
        %v1434 = vsel %vm1146, %v1418, %v1433
        %v1436 = vunpack.c.l.s4 1934713408
        %v1437 = vunpack.c.0.s8 %v1436
        %v1438 = vperm.slane %v1432, %v1437
        %v1440 = vunpack.c.l.s4 1934713408
        %v1441 = vunpack.c.0.s8 %v1440
        %v1442 = vperm.slane %v1434, %v1441
        %v1443 = vrot.slane %v1426, 4
        %v1444 = vsel %vm1146, 0.0, %v1443
        %v1445 = vrot.slane %v1430, 4
        %v1446 = vsel %vm1146, 0.0, %v1445
        %v1447 = vrot.slane %v1438, 4
        %v1448 = vsel %vm1146, 0.0, %v1447
        %v1449 = vrot.slane %v1442, 4
        %v1450 = vsel %vm1146, 0.0, %v1449
        %v1451 = vsel %vm1146, %v1445, %v1426
        %v1453 = vunpack.c.l.s4 1983009808
        %v1454 = vunpack.c.0.s8 %v1453
        %v1455 = vperm.slane %v1451, %v1454
        %v1456 = vrot.slane %v1446, 4
        %v1457 = vsel %vm1146, %v1456, %v1444
        %v1459 = vunpack.c.l.s4 1983009808
        %v1460 = vunpack.c.0.s8 %v1459
        %v1461 = vperm.slane %v1457, %v1460
        %v1462 = vsel %vm1146, %v1449, %v1438
        %v1464 = vunpack.c.l.s4 1983009808
        %v1465 = vunpack.c.0.s8 %v1464
        %v1466 = vperm.slane %v1462, %v1465
        %v1467 = vrot.slane %v1450, 4
        %v1468 = vsel %vm1146, %v1467, %v1448
        %v1470 = vunpack.c.l.s4 1983009808
        %v1471 = vunpack.c.0.s8 %v1470
        %v1472 = vperm.slane %v1468, %v1471
        %v1473 = vrot.slane %v1461, 4
        %v1474 = vsel %vm1146, %v1473, %v1455
        %v1475 = vrot.slane %v1455, 4
        %v1476 = vsel %vm1146, %v1461, %v1475
        %v1478 = vunpack.c.l.s4 1934713408
        %v1479 = vunpack.c.0.s8 %v1478
        %v1480 = vperm.slane %v1474, %v1479
        %v1482 = vunpack.c.l.s4 1934713408
        %v1483 = vunpack.c.0.s8 %v1482
        %v1484 = vperm.slane %v1476, %v1483
        %v1485 = vrot.slane %v1472, 4
        %v1486 = vsel %vm1146, %v1485, %v1466
        %v1487 = vrot.slane %v1466, 4
        %v1488 = vsel %vm1146, %v1472, %v1487
        %v1490 = vunpack.c.l.s4 1934713408
        %v1491 = vunpack.c.0.s8 %v1490
        %v1492 = vperm.slane %v1486, %v1491
        %v1494 = vunpack.c.l.s4 1934713408
        %v1495 = vunpack.c.0.s8 %v1494
        %v1496 = vperm.slane %v1488, %v1495
        %v1497 = vrot.slane %v1492, 4
        %v1498 = vsel %vm1146, %v1497, %v1480
        %v1499 = vrot.slane %v1480, 4
        %v1500 = vsel %vm1146, %v1492, %v1499
        %v1501 = vrot.slane %v1496, 4
        %v1502 = vsel %vm1146, %v1501, %v1484
        %v1503 = vrot.slane %v1484, 4
        %v1504 = vsel %vm1146, %v1496, %v1503
        %vm1505 = vcmask 64512
        %v1507 = vsel %vm1505, %v1249, 0
        %v1510 = vsel %vm1505, %v1378, 0
        %1512 = vmatpush.xpose.msra.mxu0 0.0
        %1513 = vmatpush.xpose.msra.mxu0 0.0
        %1514 = vmatpush.xpose.msra.mxu0 0.0
        %1515 = vmatpush.xpose.msra.mxu0 0.0
        %1516 = vmatpush.xpose.msra.mxu0 0.0
        %1517 = vmatpush.xpose.msra.mxu0 0.0
        %1518 = vmatpush.xpose.msra.mxu0 0.0
        %1519 = vmatpush.xpose.msra.mxu0 0.0
        %1520 = vmatpush.xpose.msra.mxu0 0.0
        %1521 = vmatpush.xpose.msra.mxu0 0.0
        %1522 = vmatpush.xpose.msra.mxu0 0.0
        %1523 = vmatpush.xpose.msra.mxu0 0.0
        %1524 = vmatpush.xpose.msra.mxu0 0.0
        %1525 = vmatpush.xpose.msra.mxu0 0.0
        %1526 = vmatpush.xpose.msra.mxu0 0.0
        %1527 = vmatpush.xpose.msra.mxu0 %v1510
        %1528 = vmatmul.f32.gmra.mxu0 %v1507
        %v1529 = vpop.f32.mrf.mxu0
        %v1530 = vadd.f32 %v1051, %v1529
        %1531 = vdwg.mxu0
        %v1533 = vsel %vm1505, %v1251, 0
        %v1536 = vsel %vm1505, %v1380, 0
        %1538 = vmatpush.xpose.msra.mxu0 0.0
        %1539 = vmatpush.xpose.msra.mxu0 0.0
        %1540 = vmatpush.xpose.msra.mxu0 0.0
        %1541 = vmatpush.xpose.msra.mxu0 0.0
        %1542 = vmatpush.xpose.msra.mxu0 0.0
        %1543 = vmatpush.xpose.msra.mxu0 0.0
        %1544 = vmatpush.xpose.msra.mxu0 0.0
        %1545 = vmatpush.xpose.msra.mxu0 0.0
        %1546 = vmatpush.xpose.msra.mxu0 0.0
        %1547 = vmatpush.xpose.msra.mxu0 0.0
        %1548 = vmatpush.xpose.msra.mxu0 0.0
        %1549 = vmatpush.xpose.msra.mxu0 0.0
        %1550 = vmatpush.xpose.msra.mxu0 0.0
        %1551 = vmatpush.xpose.msra.mxu0 0.0
        %1552 = vmatpush.xpose.msra.mxu0 0.0
        %1553 = vmatpush.xpose.msra.mxu0 %v1536
        %1554 = vmatmul.f32.gmra.mxu0 %v1533
        %v1555 = vpop.f32.mrf.mxu0
        %v1556 = vadd.f32 %v1052, %v1555
        %1557 = vdwg.mxu0
        %v1559 = vsel %vm1505, %v1253, 0
        %v1562 = vsel %vm1505, %v1382, 0
        %1564 = vmatpush.xpose.msra.mxu0 0.0
        %1565 = vmatpush.xpose.msra.mxu0 0.0
        %1566 = vmatpush.xpose.msra.mxu0 0.0
        %1567 = vmatpush.xpose.msra.mxu0 0.0
        %1568 = vmatpush.xpose.msra.mxu0 0.0
        %1569 = vmatpush.xpose.msra.mxu0 0.0
        %1570 = vmatpush.xpose.msra.mxu0 0.0
        %1571 = vmatpush.xpose.msra.mxu0 0.0
        %1572 = vmatpush.xpose.msra.mxu0 0.0
        %1573 = vmatpush.xpose.msra.mxu0 0.0
        %1574 = vmatpush.xpose.msra.mxu0 0.0
        %1575 = vmatpush.xpose.msra.mxu0 0.0
        %1576 = vmatpush.xpose.msra.mxu0 0.0
        %1577 = vmatpush.xpose.msra.mxu0 0.0
        %1578 = vmatpush.xpose.msra.mxu0 0.0
        %1579 = vmatpush.xpose.msra.mxu0 %v1562
        %1580 = vmatmul.f32.gmra.mxu0 %v1559
        %v1581 = vpop.f32.mrf.mxu0
        %v1582 = vadd.f32 %v1053, %v1581
        %1583 = vdwg.mxu0
        %v1585 = vsel %vm1505, %v1255, 0
        %v1588 = vsel %vm1505, %v1384, 0
        %1590 = vmatpush.xpose.msra.mxu0 0.0
        %1591 = vmatpush.xpose.msra.mxu0 0.0
        %1592 = vmatpush.xpose.msra.mxu0 0.0
        %1593 = vmatpush.xpose.msra.mxu0 0.0
        %1594 = vmatpush.xpose.msra.mxu0 0.0
        %1595 = vmatpush.xpose.msra.mxu0 0.0
        %1596 = vmatpush.xpose.msra.mxu0 0.0
        %1597 = vmatpush.xpose.msra.mxu0 0.0
        %1598 = vmatpush.xpose.msra.mxu0 0.0
        %1599 = vmatpush.xpose.msra.mxu0 0.0
        %1600 = vmatpush.xpose.msra.mxu0 0.0
        %1601 = vmatpush.xpose.msra.mxu0 0.0
        %1602 = vmatpush.xpose.msra.mxu0 0.0
        %1603 = vmatpush.xpose.msra.mxu0 0.0
        %1604 = vmatpush.xpose.msra.mxu0 0.0
        %1605 = vmatpush.xpose.msra.mxu0 %v1588
        %1606 = vmatmul.f32.gmra.mxu0 %v1585
        %v1607 = vpop.f32.mrf.mxu0
        %v1608 = vadd.f32 %v1054, %v1607
        %1609 = vdwg.mxu0
        %v1610 = vsel %vm1505, %v1530, -inf
        %1611 = vmax.xlane.f32.xlu0 %v1610
        %v1612 = vpop.xlane.xlu0 %1611
        %v1613 = vsel %vm1505, %v1556, -inf
        %1614 = vmax.xlane.f32.xlu0 %v1613
        %v1615 = vpop.xlane.xlu0 %1614
        %v1616 = vsel %vm1505, %v1582, -inf
        %1617 = vmax.xlane.f32.xlu0 %v1616
        %v1618 = vpop.xlane.xlu0 %1617
        %v1619 = vsel %vm1505, %v1608, -inf
        %1620 = vmax.xlane.f32.xlu0 %v1619
        %v1621 = vpop.xlane.xlu0 %1620
        %v1622 = vsub.f32 %v1530, %v1612
        %v1623 = vsub.f32 %v1556, %v1615
        %v1624 = vsub.f32 %v1582, %v1618
        %v1625 = vsub.f32 %v1608, %v1621
        %v1626 = vmul.f32 %v1622, 1.442695
        %v1627 = vpow.pop %v1626
        %v1628 = vmul.f32 %v1623, 1.442695
        %v1629 = vpow.pop %v1628
        %v1630 = vmul.f32 %v1624, 1.442695
        %v1631 = vpow.pop %v1630
        %v1632 = vmul.f32 %v1625, 1.442695
        %v1633 = vpow.pop %v1632
        %v1634 = vsel %vm1505, %v1627, 0.0
        %1635 = vadd.xlane.f32.xlu0 %v1634
        %v1636 = vpop.xlane.xlu0 %1635
        %v1637 = vsel %vm1505, %v1629, 0.0
        %1638 = vadd.xlane.f32.xlu0 %v1637
        %v1639 = vpop.xlane.xlu0 %1638
        %v1640 = vsel %vm1505, %v1631, 0.0
        %1641 = vadd.xlane.f32.xlu0 %v1640
        %v1642 = vpop.xlane.xlu0 %1641
        %v1643 = vsel %vm1505, %v1633, 0.0
        %1644 = vadd.xlane.f32.xlu0 %v1643
        %v1645 = vpop.xlane.xlu0 %1644
        %v1646 = vrcp.pop %v1636
        %v1647 = vmul.f32 %v1636, %v1646
        %v1648 = vsub.f32 1.0, %v1647
        %v1649 = vmul.f32 %v1646, %v1648
        %v1650 = vadd.f32 %v1646, %v1649
        %vm1651 = vweird.f32 %v1636
        %vm1652 = vweird.f32 %v1646
        %vm1653 = vmor %vm1651, %vm1652
        %v1654 = vsel %vm1653, %v1646, %v1650
        %v1655 = vand.u32 2147483647, %v1636
        %vm1656 = vcmp.eq.f32.partialorder %v1655, 8.507059e+37
        %v1657 = vand.u32 %v1636, 2147483648
        %v1658 = vor.u32 1.1754944e-38, %v1657
        %v1659 = vsel %vm1656, %v1658, %v1654
        %v1660 = vmul.f32 %v1627, %v1659
        %v1661 = vrcp.pop %v1639
        %v1662 = vmul.f32 %v1639, %v1661
        %v1663 = vsub.f32 1.0, %v1662
        %v1664 = vmul.f32 %v1661, %v1663
        %v1665 = vadd.f32 %v1661, %v1664
        %vm1666 = vweird.f32 %v1639
        %vm1667 = vweird.f32 %v1661
        %vm1668 = vmor %vm1666, %vm1667
        %v1669 = vsel %vm1668, %v1661, %v1665
        %v1670 = vand.u32 2147483647, %v1639
        %vm1671 = vcmp.eq.f32.partialorder %v1670, 8.507059e+37
        %v1672 = vand.u32 %v1639, 2147483648
        %v1673 = vor.u32 1.1754944e-38, %v1672
        %v1674 = vsel %vm1671, %v1673, %v1669
        %v1675 = vmul.f32 %v1629, %v1674
        %v1676 = vrcp.pop %v1642
        %v1677 = vmul.f32 %v1642, %v1676
        %v1678 = vsub.f32 1.0, %v1677
        %v1679 = vmul.f32 %v1676, %v1678
        %v1680 = vadd.f32 %v1676, %v1679
        %vm1681 = vweird.f32 %v1642
        %vm1682 = vweird.f32 %v1676
        %vm1683 = vmor %vm1681, %vm1682
        %v1684 = vsel %vm1683, %v1676, %v1680
        %v1685 = vand.u32 2147483647, %v1642
        %vm1686 = vcmp.eq.f32.partialorder %v1685, 8.507059e+37
        %v1687 = vand.u32 %v1642, 2147483648
        %v1688 = vor.u32 1.1754944e-38, %v1687
        %v1689 = vsel %vm1686, %v1688, %v1684
        %v1690 = vmul.f32 %v1631, %v1689
        %v1691 = vrcp.pop %v1645
        %v1692 = vmul.f32 %v1645, %v1691
        %v1693 = vsub.f32 1.0, %v1692
        %v1694 = vmul.f32 %v1691, %v1693
        %v1695 = vadd.f32 %v1691, %v1694
        %vm1696 = vweird.f32 %v1645
        %vm1697 = vweird.f32 %v1691
        %vm1698 = vmor %vm1696, %vm1697
        %v1699 = vsel %vm1698, %v1691, %v1695
        %v1700 = vand.u32 2147483647, %v1645
        %vm1701 = vcmp.eq.f32.partialorder %v1700, 8.507059e+37
        %v1702 = vand.u32 %v1645, 2147483648
        %v1703 = vor.u32 1.1754944e-38, %v1702
        %v1704 = vsel %vm1701, %v1703, %v1699
        %v1705 = vmul.f32 %v1633, %v1704
        %v1707 = vsel %vm1505, %v1660, 0
        %1709 = vmatpush.msra.mxu0 0.0
        %1710 = vmatpush.msra.mxu0 0.0
        %1711 = vmatpush.msra.mxu0 0.0
        %1712 = vmatpush.msra.mxu0 0.0
        %1713 = vmatpush.msra.mxu0 0.0
        %1714 = vmatpush.msra.mxu0 0.0
        %1715 = vmatpush.msra.mxu0 0.0
        %1716 = vmatpush.msra.mxu0 0.0
        %1717 = vmatpush.msra.mxu0 0.0
        %1718 = vmatpush.msra.mxu0 0.0
        %1719 = vmatpush.msra.mxu0 0.0
        %1720 = vmatpush.msra.mxu0 0.0
        %1721 = vmatpush.msra.mxu0 0.0
        %1722 = vmatpush.msra.mxu0 0.0
        %1723 = vmatpush.msra.mxu0 0.0
        %1724 = vmatpush.msra.mxu0 %v1498
        %1725 = vmatmul.f32.gmra.mxu0 %v1707
        %v1726 = vpop.f32.mrf.mxu0
        %v1727 = vadd.f32 0.0, %v1726
        %1728 = vdwg.mxu0
        %v1730 = vsel %vm1505, %v1675, 0
        %1732 = vmatpush.msra.mxu0 0.0
        %1733 = vmatpush.msra.mxu0 0.0
        %1734 = vmatpush.msra.mxu0 0.0
        %1735 = vmatpush.msra.mxu0 0.0
        %1736 = vmatpush.msra.mxu0 0.0
        %1737 = vmatpush.msra.mxu0 0.0
        %1738 = vmatpush.msra.mxu0 0.0
        %1739 = vmatpush.msra.mxu0 0.0
        %1740 = vmatpush.msra.mxu0 0.0
        %1741 = vmatpush.msra.mxu0 0.0
        %1742 = vmatpush.msra.mxu0 0.0
        %1743 = vmatpush.msra.mxu0 0.0
        %1744 = vmatpush.msra.mxu0 0.0
        %1745 = vmatpush.msra.mxu0 0.0
        %1746 = vmatpush.msra.mxu0 0.0
        %1747 = vmatpush.msra.mxu0 %v1500
        %1748 = vmatmul.f32.gmra.mxu0 %v1730
        %v1749 = vpop.f32.mrf.mxu0
        %v1750 = vadd.f32 0.0, %v1749
        %1751 = vdwg.mxu0
        %v1753 = vsel %vm1505, %v1690, 0
        %1755 = vmatpush.msra.mxu0 0.0
        %1756 = vmatpush.msra.mxu0 0.0
        %1757 = vmatpush.msra.mxu0 0.0
        %1758 = vmatpush.msra.mxu0 0.0
        %1759 = vmatpush.msra.mxu0 0.0
        %1760 = vmatpush.msra.mxu0 0.0
        %1761 = vmatpush.msra.mxu0 0.0
        %1762 = vmatpush.msra.mxu0 0.0
        %1763 = vmatpush.msra.mxu0 0.0
        %1764 = vmatpush.msra.mxu0 0.0
        %1765 = vmatpush.msra.mxu0 0.0
        %1766 = vmatpush.msra.mxu0 0.0
        %1767 = vmatpush.msra.mxu0 0.0
        %1768 = vmatpush.msra.mxu0 0.0
        %1769 = vmatpush.msra.mxu0 0.0
        %1770 = vmatpush.msra.mxu0 %v1502
        %1771 = vmatmul.f32.gmra.mxu0 %v1753
        %v1772 = vpop.f32.mrf.mxu0
        %v1773 = vadd.f32 0.0, %v1772
        %1774 = vdwg.mxu0
        %v1776 = vsel %vm1505, %v1705, 0
        %1778 = vmatpush.msra.mxu0 0.0
        %1779 = vmatpush.msra.mxu0 0.0
        %1780 = vmatpush.msra.mxu0 0.0
        %1781 = vmatpush.msra.mxu0 0.0
        %1782 = vmatpush.msra.mxu0 0.0
        %1783 = vmatpush.msra.mxu0 0.0
        %1784 = vmatpush.msra.mxu0 0.0
        %1785 = vmatpush.msra.mxu0 0.0
        %1786 = vmatpush.msra.mxu0 0.0
        %1787 = vmatpush.msra.mxu0 0.0
        %1788 = vmatpush.msra.mxu0 0.0
        %1789 = vmatpush.msra.mxu0 0.0
        %1790 = vmatpush.msra.mxu0 0.0
        %1791 = vmatpush.msra.mxu0 0.0
        %1792 = vmatpush.msra.mxu0 0.0
        %1793 = vmatpush.msra.mxu0 %v1504
        %1794 = vmatmul.f32.gmra.mxu0 %v1776
        %v1795 = vpop.f32.mrf.mxu0
        %v1796 = vadd.f32 0.0, %v1795
        %1797 = vdwg.mxu0
        %v1798 = vrot.slane %v1773, 4
        %v1799 = vsel %vm1146, %v1798, %v1727
        %v1800 = vrot.slane %v1727, 4
        %v1801 = vsel %vm1146, %v1773, %v1800
        %v1803 = vunpack.c.l.s4 1983009808
        %v1804 = vunpack.c.0.s8 %v1803
        %v1805 = vperm.slane %v1799, %v1804
        %v1807 = vunpack.c.l.s4 1983009808
        %v1808 = vunpack.c.0.s8 %v1807
        %v1809 = vperm.slane %v1801, %v1808
        %v1810 = vrot.slane %v1796, 4
        %v1811 = vsel %vm1146, %v1810, %v1750
        %v1812 = vrot.slane %v1750, 4
        %v1813 = vsel %vm1146, %v1796, %v1812
        %v1815 = vunpack.c.l.s4 1983009808
        %v1816 = vunpack.c.0.s8 %v1815
        %v1817 = vperm.slane %v1811, %v1816
        %v1819 = vunpack.c.l.s4 1983009808
        %v1820 = vunpack.c.0.s8 %v1819
        %v1821 = vperm.slane %v1813, %v1820
        %v1822 = vrot.slane %v1817, 4
        %v1823 = vsel %vm1146, %v1822, %v1805
        %v1824 = vrot.slane %v1805, 4
        %v1825 = vsel %vm1146, %v1817, %v1824
        %v1827 = vunpack.c.l.s4 1934713408
        %v1828 = vunpack.c.0.s8 %v1827
        %v1829 = vperm.slane %v1823, %v1828
        %v1831 = vunpack.c.l.s4 1934713408
        %v1832 = vunpack.c.0.s8 %v1831
        %v1833 = vperm.slane %v1825, %v1832
        %v1834 = vrot.slane %v1821, 4
        %v1835 = vsel %vm1146, %v1834, %v1809
        %v1836 = vrot.slane %v1809, 4
        %v1837 = vsel %vm1146, %v1821, %v1836
        %v1839 = vunpack.c.l.s4 1934713408
        %v1840 = vunpack.c.0.s8 %v1839
        %v1841 = vperm.slane %v1835, %v1840
        %v1843 = vunpack.c.l.s4 1934713408
        %v1844 = vunpack.c.0.s8 %v1843
        %v1845 = vperm.slane %v1837, %v1844
        %v1846 = vrot.slane %v1829, 4
        %v1847 = vsel %vm1146, 0.0, %v1846
        %v1848 = vrot.slane %v1833, 4
        %v1849 = vsel %vm1146, 0.0, %v1848
        %v1850 = vrot.slane %v1841, 4
        %v1851 = vsel %vm1146, 0.0, %v1850
        %v1852 = vrot.slane %v1845, 4
        %v1853 = vsel %vm1146, 0.0, %v1852
        %v1854 = vsel %vm1146, %v1848, %v1829
        %v1856 = vunpack.c.l.s4 1983009808
        %v1857 = vunpack.c.0.s8 %v1856
        %v1858 = vperm.slane %v1854, %v1857
        %v1859 = vrot.slane %v1849, 4
        %v1860 = vsel %vm1146, %v1859, %v1847
        %v1862 = vunpack.c.l.s4 1983009808
        %v1863 = vunpack.c.0.s8 %v1862
        %v1864 = vperm.slane %v1860, %v1863
        %v1865 = vsel %vm1146, %v1852, %v1841
        %v1867 = vunpack.c.l.s4 1983009808
        %v1868 = vunpack.c.0.s8 %v1867
        %v1869 = vperm.slane %v1865, %v1868
        %v1870 = vrot.slane %v1853, 4
        %v1871 = vsel %vm1146, %v1870, %v1851
        %v1873 = vunpack.c.l.s4 1983009808
        %v1874 = vunpack.c.0.s8 %v1873
        %v1875 = vperm.slane %v1871, %v1874
        %v1876 = vrot.slane %v1864, 4
        %v1877 = vsel %vm1146, %v1876, %v1858
        %v1878 = vrot.slane %v1858, 4
        %v1879 = vsel %vm1146, %v1864, %v1878
        %v1881 = vunpack.c.l.s4 1934713408
        %v1882 = vunpack.c.0.s8 %v1881
        %v1883 = vperm.slane %v1877, %v1882
        %v1885 = vunpack.c.l.s4 1934713408
        %v1886 = vunpack.c.0.s8 %v1885
        %v1887 = vperm.slane %v1879, %v1886
        %v1888 = vrot.slane %v1875, 4
        %v1889 = vsel %vm1146, %v1888, %v1869
        %v1890 = vrot.slane %v1869, 4
        %v1891 = vsel %vm1146, %v1875, %v1890
        %v1893 = vunpack.c.l.s4 1934713408
        %v1894 = vunpack.c.0.s8 %v1893
        %v1895 = vperm.slane %v1889, %v1894
        %v1897 = vunpack.c.l.s4 1934713408
        %v1898 = vunpack.c.0.s8 %v1897
        %v1899 = vperm.slane %v1891, %v1898
        %v1900 = vrot.slane %v1895, 4
        %v1901 = vsel %vm1146, %v1900, %v1883
        %v1902 = vrot.slane %v1883, 4
        %v1903 = vsel %vm1146, %v1895, %v1902
        %v1904 = vrot.slane %v1899, 4
        %v1905 = vsel %vm1146, %v1904, %v1887
        %v1906 = vrot.slane %v1887, 4
        %v1907 = vsel %vm1146, %v1899, %v1906
        %1909 = vrot.lane.b32.xlu0 %v1903, 8
        %v1910 = vpop.permute.xlu0 %1909
        %1913 = vrot.lane.b32.xlu0 %v1905, 16
        %v1914 = vpop.permute.xlu0 %1913
        %1917 = vrot.lane.b32.xlu0 %v1907, 24
        %v1918 = vpop.permute.xlu0 %1917
        %v1920 = vsel %vm1505, %v1901, %v1910
        %vm1921 = vcmask 130048
        %v1922 = vsel %vm1921, %v1920, %v1914
        %vm1923 = vcmask 195584
        %v1924 = vsel %vm1923, %v1922, %v1918
        %v1925 = vmul.f32 %v1098, 0.35355338
        %1927 = vrot.lane.b32.xlu0 %v1925, 120
        %v1928 = vpop.permute.xlu0 %1927
        %1930 = vrot.lane.b32.xlu0 %v1925, 112
        %v1931 = vpop.permute.xlu0 %1930
        %1933 = vrot.lane.b32.xlu0 %v1925, 104
        %v1934 = vpop.permute.xlu0 %1933
        %v1936 = vrot.slane %v1931, 4
        %v1937 = vsel %vm1146, %v1936, %v1925
        %v1938 = vrot.slane %v1925, 4
        %v1939 = vsel %vm1146, %v1931, %v1938
        %v1941 = vunpack.c.l.s4 1983009808
        %v1942 = vunpack.c.0.s8 %v1941
        %v1943 = vperm.slane %v1937, %v1942
        %v1945 = vunpack.c.l.s4 1983009808
        %v1946 = vunpack.c.0.s8 %v1945
        %v1947 = vperm.slane %v1939, %v1946
        %v1948 = vrot.slane %v1934, 4
        %v1949 = vsel %vm1146, %v1948, %v1928
        %v1950 = vrot.slane %v1928, 4
        %v1951 = vsel %vm1146, %v1934, %v1950
        %v1953 = vunpack.c.l.s4 1983009808
        %v1954 = vunpack.c.0.s8 %v1953
        %v1955 = vperm.slane %v1949, %v1954
        %v1957 = vunpack.c.l.s4 1983009808
        %v1958 = vunpack.c.0.s8 %v1957
        %v1959 = vperm.slane %v1951, %v1958
        %v1960 = vrot.slane %v1955, 4
        %v1961 = vsel %vm1146, %v1960, %v1943
        %v1962 = vrot.slane %v1943, 4
        %v1963 = vsel %vm1146, %v1955, %v1962
        %v1965 = vunpack.c.l.s4 1934713408
        %v1966 = vunpack.c.0.s8 %v1965
        %v1967 = vperm.slane %v1961, %v1966
        %v1969 = vunpack.c.l.s4 1934713408
        %v1970 = vunpack.c.0.s8 %v1969
        %v1971 = vperm.slane %v1963, %v1970
        %v1972 = vrot.slane %v1959, 4
        %v1973 = vsel %vm1146, %v1972, %v1947
        %v1974 = vrot.slane %v1947, 4
        %v1975 = vsel %vm1146, %v1959, %v1974
        %v1977 = vunpack.c.l.s4 1934713408
        %v1978 = vunpack.c.0.s8 %v1977
        %v1979 = vperm.slane %v1973, %v1978
        %v1981 = vunpack.c.l.s4 1934713408
        %v1982 = vunpack.c.0.s8 %v1981
        %v1983 = vperm.slane %v1975, %v1982
        %v1984 = vrot.slane %v1967, 4
        %v1985 = vsel %vm1146, 0.0, %v1984
        %v1986 = vrot.slane %v1971, 4
        %v1987 = vsel %vm1146, 0.0, %v1986
        %v1988 = vrot.slane %v1979, 4
        %v1989 = vsel %vm1146, 0.0, %v1988
        %v1990 = vrot.slane %v1983, 4
        %v1991 = vsel %vm1146, 0.0, %v1990
        %v1992 = vsel %vm1146, %v1986, %v1967
        %v1994 = vunpack.c.l.s4 1983009808
        %v1995 = vunpack.c.0.s8 %v1994
        %v1996 = vperm.slane %v1992, %v1995
        %v1997 = vrot.slane %v1987, 4
        %v1998 = vsel %vm1146, %v1997, %v1985
        %v2000 = vunpack.c.l.s4 1983009808
        %v2001 = vunpack.c.0.s8 %v2000
        %v2002 = vperm.slane %v1998, %v2001
        %v2003 = vsel %vm1146, %v1990, %v1979
        %v2005 = vunpack.c.l.s4 1983009808
        %v2006 = vunpack.c.0.s8 %v2005
        %v2007 = vperm.slane %v2003, %v2006
        %v2008 = vrot.slane %v1991, 4
        %v2009 = vsel %vm1146, %v2008, %v1989
        %v2011 = vunpack.c.l.s4 1983009808
        %v2012 = vunpack.c.0.s8 %v2011
        %v2013 = vperm.slane %v2009, %v2012
        %v2014 = vrot.slane %v2002, 4
        %v2015 = vsel %vm1146, %v2014, %v1996
        %v2016 = vrot.slane %v1996, 4
        %v2017 = vsel %vm1146, %v2002, %v2016
        %v2019 = vunpack.c.l.s4 1934713408
        %v2020 = vunpack.c.0.s8 %v2019
        %v2021 = vperm.slane %v2015, %v2020
        %v2023 = vunpack.c.l.s4 1934713408
        %v2024 = vunpack.c.0.s8 %v2023
        %v2025 = vperm.slane %v2017, %v2024
        %v2026 = vrot.slane %v2013, 4
        %v2027 = vsel %vm1146, %v2026, %v2007
        %v2028 = vrot.slane %v2007, 4
        %v2029 = vsel %vm1146, %v2013, %v2028
        %v2031 = vunpack.c.l.s4 1934713408
        %v2032 = vunpack.c.0.s8 %v2031
        %v2033 = vperm.slane %v2027, %v2032
        %v2035 = vunpack.c.l.s4 1934713408
        %v2036 = vunpack.c.0.s8 %v2035
        %v2037 = vperm.slane %v2029, %v2036
        %v2038 = vrot.slane %v2033, 4
        %v2039 = vsel %vm1146, %v2038, %v2021
        %v2040 = vrot.slane %v2021, 4
        %v2041 = vsel %vm1146, %v2033, %v2040
        %v2042 = vrot.slane %v2037, 4
        %v2043 = vsel %vm1146, %v2042, %v2025
        %v2044 = vrot.slane %v2025, 4
        %v2045 = vsel %vm1146, %v2037, %v2044
        %2047 = vrot.lane.b32.xlu0 %v1098, 120
        %v2048 = vpop.permute.xlu0 %2047
        %2049 = vrot.lane.b32.xlu0 %v1098, 112
        %v2050 = vpop.permute.xlu0 %2049
        %2051 = vrot.lane.b32.xlu0 %v1098, 104
        %v2052 = vpop.permute.xlu0 %2051
        %2053 = vrot.lane.b32.xlu0 %v1098, 96
        %v2054 = vpop.permute.xlu0 %2053
        %2055 = vrot.lane.b32.xlu0 %v2048, 96
        %v2056 = vpop.permute.xlu0 %2055
        %2057 = vrot.lane.b32.xlu0 %v2050, 96
        %v2058 = vpop.permute.xlu0 %2057
        %2059 = vrot.lane.b32.xlu0 %v2052, 96
        %v2060 = vpop.permute.xlu0 %2059
        %v2065 = vrot.slane %v2058, 4
        %v2066 = vsel %vm1146, %v2065, %v2054
        %v2067 = vrot.slane %v2054, 4
        %v2068 = vsel %vm1146, %v2058, %v2067
        %v2070 = vunpack.c.l.s4 1983009808
        %v2071 = vunpack.c.0.s8 %v2070
        %v2072 = vperm.slane %v2066, %v2071
        %v2074 = vunpack.c.l.s4 1983009808
        %v2075 = vunpack.c.0.s8 %v2074
        %v2076 = vperm.slane %v2068, %v2075
        %v2077 = vrot.slane %v2060, 4
        %v2078 = vsel %vm1146, %v2077, %v2056
        %v2079 = vrot.slane %v2056, 4
        %v2080 = vsel %vm1146, %v2060, %v2079
        %v2082 = vunpack.c.l.s4 1983009808
        %v2083 = vunpack.c.0.s8 %v2082
        %v2084 = vperm.slane %v2078, %v2083
        %v2086 = vunpack.c.l.s4 1983009808
        %v2087 = vunpack.c.0.s8 %v2086
        %v2088 = vperm.slane %v2080, %v2087
        %v2089 = vrot.slane %v2084, 4
        %v2090 = vsel %vm1146, %v2089, %v2072
        %v2091 = vrot.slane %v2072, 4
        %v2092 = vsel %vm1146, %v2084, %v2091
        %v2094 = vunpack.c.l.s4 1934713408
        %v2095 = vunpack.c.0.s8 %v2094
        %v2096 = vperm.slane %v2090, %v2095
        %v2098 = vunpack.c.l.s4 1934713408
        %v2099 = vunpack.c.0.s8 %v2098
        %v2100 = vperm.slane %v2092, %v2099
        %v2101 = vrot.slane %v2088, 4
        %v2102 = vsel %vm1146, %v2101, %v2076
        %v2103 = vrot.slane %v2076, 4
        %v2104 = vsel %vm1146, %v2088, %v2103
        %v2106 = vunpack.c.l.s4 1934713408
        %v2107 = vunpack.c.0.s8 %v2106
        %v2108 = vperm.slane %v2102, %v2107
        %v2110 = vunpack.c.l.s4 1934713408
        %v2111 = vunpack.c.0.s8 %v2110
        %v2112 = vperm.slane %v2104, %v2111
        %v2113 = vrot.slane %v2096, 4
        %v2114 = vsel %vm1146, 0.0, %v2113
        %v2115 = vrot.slane %v2100, 4
        %v2116 = vsel %vm1146, 0.0, %v2115
        %v2117 = vrot.slane %v2108, 4
        %v2118 = vsel %vm1146, 0.0, %v2117
        %v2119 = vrot.slane %v2112, 4
        %v2120 = vsel %vm1146, 0.0, %v2119
        %v2121 = vsel %vm1146, %v2115, %v2096
        %v2123 = vunpack.c.l.s4 1983009808
        %v2124 = vunpack.c.0.s8 %v2123
        %v2125 = vperm.slane %v2121, %v2124
        %v2126 = vrot.slane %v2116, 4
        %v2127 = vsel %vm1146, %v2126, %v2114
        %v2129 = vunpack.c.l.s4 1983009808
        %v2130 = vunpack.c.0.s8 %v2129
        %v2131 = vperm.slane %v2127, %v2130
        %v2132 = vsel %vm1146, %v2119, %v2108
        %v2134 = vunpack.c.l.s4 1983009808
        %v2135 = vunpack.c.0.s8 %v2134
        %v2136 = vperm.slane %v2132, %v2135
        %v2137 = vrot.slane %v2120, 4
        %v2138 = vsel %vm1146, %v2137, %v2118
        %v2140 = vunpack.c.l.s4 1983009808
        %v2141 = vunpack.c.0.s8 %v2140
        %v2142 = vperm.slane %v2138, %v2141
        %v2143 = vrot.slane %v2131, 4
        %v2144 = vsel %vm1146, %v2143, %v2125
        %v2145 = vrot.slane %v2125, 4
        %v2146 = vsel %vm1146, %v2131, %v2145
        %v2148 = vunpack.c.l.s4 1934713408
        %v2149 = vunpack.c.0.s8 %v2148
        %v2150 = vperm.slane %v2144, %v2149
        %v2152 = vunpack.c.l.s4 1934713408
        %v2153 = vunpack.c.0.s8 %v2152
        %v2154 = vperm.slane %v2146, %v2153
        %v2155 = vrot.slane %v2142, 4
        %v2156 = vsel %vm1146, %v2155, %v2136
        %v2157 = vrot.slane %v2136, 4
        %v2158 = vsel %vm1146, %v2142, %v2157
        %v2160 = vunpack.c.l.s4 1934713408
        %v2161 = vunpack.c.0.s8 %v2160
        %v2162 = vperm.slane %v2156, %v2161
        %v2164 = vunpack.c.l.s4 1934713408
        %v2165 = vunpack.c.0.s8 %v2164
        %v2166 = vperm.slane %v2158, %v2165
        %v2167 = vrot.slane %v2162, 4
        %v2168 = vsel %vm1146, %v2167, %v2150
        %v2169 = vrot.slane %v2150, 4
        %v2170 = vsel %vm1146, %v2162, %v2169
        %v2171 = vrot.slane %v2166, 4
        %v2172 = vsel %vm1146, %v2171, %v2154
        %v2173 = vrot.slane %v2154, 4
        %v2174 = vsel %vm1146, %v2166, %v2173
        %2176 = vrot.lane.b32.xlu0 %v1132, 120
        %v2177 = vpop.permute.xlu0 %2176
        %2179 = vrot.lane.b32.xlu0 %v1132, 112
        %v2180 = vpop.permute.xlu0 %2179
        %2182 = vrot.lane.b32.xlu0 %v1132, 104
        %v2183 = vpop.permute.xlu0 %2182
        %v2185 = vrot.slane %v2180, 4
        %v2186 = vsel %vm1146, %v2185, %v1132
        %v2187 = vrot.slane %v1132, 4
        %v2188 = vsel %vm1146, %v2180, %v2187
        %v2190 = vunpack.c.l.s4 1983009808
        %v2191 = vunpack.c.0.s8 %v2190
        %v2192 = vperm.slane %v2186, %v2191
        %v2194 = vunpack.c.l.s4 1983009808
        %v2195 = vunpack.c.0.s8 %v2194
        %v2196 = vperm.slane %v2188, %v2195
        %v2197 = vrot.slane %v2183, 4
        %v2198 = vsel %vm1146, %v2197, %v2177
        %v2199 = vrot.slane %v2177, 4
        %v2200 = vsel %vm1146, %v2183, %v2199
        %v2202 = vunpack.c.l.s4 1983009808
        %v2203 = vunpack.c.0.s8 %v2202
        %v2204 = vperm.slane %v2198, %v2203
        %v2206 = vunpack.c.l.s4 1983009808
        %v2207 = vunpack.c.0.s8 %v2206
        %v2208 = vperm.slane %v2200, %v2207
        %v2209 = vrot.slane %v2204, 4
        %v2210 = vsel %vm1146, %v2209, %v2192
        %v2211 = vrot.slane %v2192, 4
        %v2212 = vsel %vm1146, %v2204, %v2211
        %v2214 = vunpack.c.l.s4 1934713408
        %v2215 = vunpack.c.0.s8 %v2214
        %v2216 = vperm.slane %v2210, %v2215
        %v2218 = vunpack.c.l.s4 1934713408
        %v2219 = vunpack.c.0.s8 %v2218
        %v2220 = vperm.slane %v2212, %v2219
        %v2221 = vrot.slane %v2208, 4
        %v2222 = vsel %vm1146, %v2221, %v2196
        %v2223 = vrot.slane %v2196, 4
        %v2224 = vsel %vm1146, %v2208, %v2223
        %v2226 = vunpack.c.l.s4 1934713408
        %v2227 = vunpack.c.0.s8 %v2226
        %v2228 = vperm.slane %v2222, %v2227
        %v2230 = vunpack.c.l.s4 1934713408
        %v2231 = vunpack.c.0.s8 %v2230
        %v2232 = vperm.slane %v2224, %v2231
        %v2233 = vrot.slane %v2216, 4
        %v2234 = vsel %vm1146, 0.0, %v2233
        %v2235 = vrot.slane %v2220, 4
        %v2236 = vsel %vm1146, 0.0, %v2235
        %v2237 = vrot.slane %v2228, 4
        %v2238 = vsel %vm1146, 0.0, %v2237
        %v2239 = vrot.slane %v2232, 4
        %v2240 = vsel %vm1146, 0.0, %v2239
        %v2241 = vsel %vm1146, %v2235, %v2216
        %v2243 = vunpack.c.l.s4 1983009808
        %v2244 = vunpack.c.0.s8 %v2243
        %v2245 = vperm.slane %v2241, %v2244
        %v2246 = vrot.slane %v2236, 4
        %v2247 = vsel %vm1146, %v2246, %v2234
        %v2249 = vunpack.c.l.s4 1983009808
        %v2250 = vunpack.c.0.s8 %v2249
        %v2251 = vperm.slane %v2247, %v2250
        %v2252 = vsel %vm1146, %v2239, %v2228
        %v2254 = vunpack.c.l.s4 1983009808
        %v2255 = vunpack.c.0.s8 %v2254
        %v2256 = vperm.slane %v2252, %v2255
        %v2257 = vrot.slane %v2240, 4
        %v2258 = vsel %vm1146, %v2257, %v2238
        %v2260 = vunpack.c.l.s4 1983009808
        %v2261 = vunpack.c.0.s8 %v2260
        %v2262 = vperm.slane %v2258, %v2261
        %v2263 = vrot.slane %v2251, 4
        %v2264 = vsel %vm1146, %v2263, %v2245
        %v2265 = vrot.slane %v2245, 4
        %v2266 = vsel %vm1146, %v2251, %v2265
        %v2268 = vunpack.c.l.s4 1934713408
        %v2269 = vunpack.c.0.s8 %v2268
        %v2270 = vperm.slane %v2264, %v2269
        %v2272 = vunpack.c.l.s4 1934713408
        %v2273 = vunpack.c.0.s8 %v2272
        %v2274 = vperm.slane %v2266, %v2273
        %v2275 = vrot.slane %v2262, 4
        %v2276 = vsel %vm1146, %v2275, %v2256
        %v2277 = vrot.slane %v2256, 4
        %v2278 = vsel %vm1146, %v2262, %v2277
        %v2280 = vunpack.c.l.s4 1934713408
        %v2281 = vunpack.c.0.s8 %v2280
        %v2282 = vperm.slane %v2276, %v2281
        %v2284 = vunpack.c.l.s4 1934713408
        %v2285 = vunpack.c.0.s8 %v2284
        %v2286 = vperm.slane %v2278, %v2285
        %v2287 = vrot.slane %v2282, 4
        %v2288 = vsel %vm1146, %v2287, %v2270
        %v2289 = vrot.slane %v2270, 4
        %v2290 = vsel %vm1146, %v2282, %v2289
        %v2291 = vrot.slane %v2286, 4
        %v2292 = vsel %vm1146, %v2291, %v2274
        %v2293 = vrot.slane %v2274, 4
        %v2294 = vsel %vm1146, %v2286, %v2293
        %v2296 = vsel %vm1505, %v2039, 0
        %v2299 = vsel %vm1505, %v2168, 0
        %2301 = vmatpush.xpose.msra.mxu0 0.0
        %2302 = vmatpush.xpose.msra.mxu0 0.0
        %2303 = vmatpush.xpose.msra.mxu0 0.0
        %2304 = vmatpush.xpose.msra.mxu0 0.0
        %2305 = vmatpush.xpose.msra.mxu0 0.0
        %2306 = vmatpush.xpose.msra.mxu0 0.0
        %2307 = vmatpush.xpose.msra.mxu0 0.0
        %2308 = vmatpush.xpose.msra.mxu0 0.0
        %2309 = vmatpush.xpose.msra.mxu0 0.0
        %2310 = vmatpush.xpose.msra.mxu0 0.0
        %2311 = vmatpush.xpose.msra.mxu0 0.0
        %2312 = vmatpush.xpose.msra.mxu0 0.0
        %2313 = vmatpush.xpose.msra.mxu0 0.0
        %2314 = vmatpush.xpose.msra.mxu0 0.0
        %2315 = vmatpush.xpose.msra.mxu0 0.0
        %2316 = vmatpush.xpose.msra.mxu0 %v2299
        %2317 = vmatmul.f32.gmra.mxu0 %v2296
        %v2318 = vpop.f32.mrf.mxu0
        %v2319 = vadd.f32 %v1055, %v2318
        %2320 = vdwg.mxu0
        %v2322 = vsel %vm1505, %v2041, 0
        %v2325 = vsel %vm1505, %v2170, 0
        %2327 = vmatpush.xpose.msra.mxu0 0.0
        %2328 = vmatpush.xpose.msra.mxu0 0.0
        %2329 = vmatpush.xpose.msra.mxu0 0.0
        %2330 = vmatpush.xpose.msra.mxu0 0.0
        %2331 = vmatpush.xpose.msra.mxu0 0.0
        %2332 = vmatpush.xpose.msra.mxu0 0.0
        %2333 = vmatpush.xpose.msra.mxu0 0.0
        %2334 = vmatpush.xpose.msra.mxu0 0.0
        %2335 = vmatpush.xpose.msra.mxu0 0.0
        %2336 = vmatpush.xpose.msra.mxu0 0.0
        %2337 = vmatpush.xpose.msra.mxu0 0.0
        %2338 = vmatpush.xpose.msra.mxu0 0.0
        %2339 = vmatpush.xpose.msra.mxu0 0.0
        %2340 = vmatpush.xpose.msra.mxu0 0.0
        %2341 = vmatpush.xpose.msra.mxu0 0.0
        %2342 = vmatpush.xpose.msra.mxu0 %v2325
        %2343 = vmatmul.f32.gmra.mxu0 %v2322
        %v2344 = vpop.f32.mrf.mxu0
        %v2345 = vadd.f32 %v1056, %v2344
        %2346 = vdwg.mxu0
        %v2348 = vsel %vm1505, %v2043, 0
        %v2351 = vsel %vm1505, %v2172, 0
        %2353 = vmatpush.xpose.msra.mxu0 0.0
        %2354 = vmatpush.xpose.msra.mxu0 0.0
        %2355 = vmatpush.xpose.msra.mxu0 0.0
        %2356 = vmatpush.xpose.msra.mxu0 0.0
        %2357 = vmatpush.xpose.msra.mxu0 0.0
        %2358 = vmatpush.xpose.msra.mxu0 0.0
        %2359 = vmatpush.xpose.msra.mxu0 0.0
        %2360 = vmatpush.xpose.msra.mxu0 0.0
        %2361 = vmatpush.xpose.msra.mxu0 0.0
        %2362 = vmatpush.xpose.msra.mxu0 0.0
        %2363 = vmatpush.xpose.msra.mxu0 0.0
        %2364 = vmatpush.xpose.msra.mxu0 0.0
        %2365 = vmatpush.xpose.msra.mxu0 0.0
        %2366 = vmatpush.xpose.msra.mxu0 0.0
        %2367 = vmatpush.xpose.msra.mxu0 0.0
        %2368 = vmatpush.xpose.msra.mxu0 %v2351
        %2369 = vmatmul.f32.gmra.mxu0 %v2348
        %v2370 = vpop.f32.mrf.mxu0
        %v2371 = vadd.f32 %v1057, %v2370
        %2372 = vdwg.mxu0
        %v2374 = vsel %vm1505, %v2045, 0
        %v2377 = vsel %vm1505, %v2174, 0
        %2379 = vmatpush.xpose.msra.mxu0 0.0
        %2380 = vmatpush.xpose.msra.mxu0 0.0
        %2381 = vmatpush.xpose.msra.mxu0 0.0
        %2382 = vmatpush.xpose.msra.mxu0 0.0
        %2383 = vmatpush.xpose.msra.mxu0 0.0
        %2384 = vmatpush.xpose.msra.mxu0 0.0
        %2385 = vmatpush.xpose.msra.mxu0 0.0
        %2386 = vmatpush.xpose.msra.mxu0 0.0
        %2387 = vmatpush.xpose.msra.mxu0 0.0
        %2388 = vmatpush.xpose.msra.mxu0 0.0
        %2389 = vmatpush.xpose.msra.mxu0 0.0
        %2390 = vmatpush.xpose.msra.mxu0 0.0
        %2391 = vmatpush.xpose.msra.mxu0 0.0
        %2392 = vmatpush.xpose.msra.mxu0 0.0
        %2393 = vmatpush.xpose.msra.mxu0 0.0
        %2394 = vmatpush.xpose.msra.mxu0 %v2377
        %2395 = vmatmul.f32.gmra.mxu0 %v2374
        %v2396 = vpop.f32.mrf.mxu0
        %v2397 = vadd.f32 %v1058, %v2396
        %2398 = vdwg.mxu0
        %v2399 = vsel %vm1505, %v2319, -inf
        %2400 = vmax.xlane.f32.xlu0 %v2399
        %v2401 = vpop.xlane.xlu0 %2400
        %v2402 = vsel %vm1505, %v2345, -inf
        %2403 = vmax.xlane.f32.xlu0 %v2402
        %v2404 = vpop.xlane.xlu0 %2403
        %v2405 = vsel %vm1505, %v2371, -inf
        %2406 = vmax.xlane.f32.xlu0 %v2405
        %v2407 = vpop.xlane.xlu0 %2406
        %v2408 = vsel %vm1505, %v2397, -inf
        %2409 = vmax.xlane.f32.xlu0 %v2408
        %v2410 = vpop.xlane.xlu0 %2409
        %v2411 = vsub.f32 %v2319, %v2401
        %v2412 = vsub.f32 %v2345, %v2404
        %v2413 = vsub.f32 %v2371, %v2407
        %v2414 = vsub.f32 %v2397, %v2410
        %v2415 = vmul.f32 %v2411, 1.442695
        %v2416 = vpow.pop %v2415
        %v2417 = vmul.f32 %v2412, 1.442695
        %v2418 = vpow.pop %v2417
        %v2419 = vmul.f32 %v2413, 1.442695
        %v2420 = vpow.pop %v2419
        %v2421 = vmul.f32 %v2414, 1.442695
        %v2422 = vpow.pop %v2421
        %v2423 = vsel %vm1505, %v2416, 0.0
        %2424 = vadd.xlane.f32.xlu0 %v2423
        %v2425 = vpop.xlane.xlu0 %2424
        %v2426 = vsel %vm1505, %v2418, 0.0
        %2427 = vadd.xlane.f32.xlu0 %v2426
        %v2428 = vpop.xlane.xlu0 %2427
        %v2429 = vsel %vm1505, %v2420, 0.0
        %2430 = vadd.xlane.f32.xlu0 %v2429
        %v2431 = vpop.xlane.xlu0 %2430
        %v2432 = vsel %vm1505, %v2422, 0.0
        %2433 = vadd.xlane.f32.xlu0 %v2432
        %v2434 = vpop.xlane.xlu0 %2433
        %v2435 = vrcp.pop %v2425
        %v2436 = vmul.f32 %v2425, %v2435
        %v2437 = vsub.f32 1.0, %v2436
        %v2438 = vmul.f32 %v2435, %v2437
        %v2439 = vadd.f32 %v2435, %v2438
        %vm2440 = vweird.f32 %v2425
        %vm2441 = vweird.f32 %v2435
        %vm2442 = vmor %vm2440, %vm2441
        %v2443 = vsel %vm2442, %v2435, %v2439
        %v2444 = vand.u32 2147483647, %v2425
        %vm2445 = vcmp.eq.f32.partialorder %v2444, 8.507059e+37
        %v2446 = vand.u32 %v2425, 2147483648
        %v2447 = vor.u32 1.1754944e-38, %v2446
        %v2448 = vsel %vm2445, %v2447, %v2443
        %v2449 = vmul.f32 %v2416, %v2448
        %v2450 = vrcp.pop %v2428
        %v2451 = vmul.f32 %v2428, %v2450
        %v2452 = vsub.f32 1.0, %v2451
        %v2453 = vmul.f32 %v2450, %v2452
        %v2454 = vadd.f32 %v2450, %v2453
        %vm2455 = vweird.f32 %v2428
        %vm2456 = vweird.f32 %v2450
        %vm2457 = vmor %vm2455, %vm2456
        %v2458 = vsel %vm2457, %v2450, %v2454
        %v2459 = vand.u32 2147483647, %v2428
        %vm2460 = vcmp.eq.f32.partialorder %v2459, 8.507059e+37
        %v2461 = vand.u32 %v2428, 2147483648
        %v2462 = vor.u32 1.1754944e-38, %v2461
        %v2463 = vsel %vm2460, %v2462, %v2458
        %v2464 = vmul.f32 %v2418, %v2463
        %v2465 = vrcp.pop %v2431
        %v2466 = vmul.f32 %v2431, %v2465
        %v2467 = vsub.f32 1.0, %v2466
        %v2468 = vmul.f32 %v2465, %v2467
        %v2469 = vadd.f32 %v2465, %v2468
        %vm2470 = vweird.f32 %v2431
        %vm2471 = vweird.f32 %v2465
        %vm2472 = vmor %vm2470, %vm2471
        %v2473 = vsel %vm2472, %v2465, %v2469
        %v2474 = vand.u32 2147483647, %v2431
        %vm2475 = vcmp.eq.f32.partialorder %v2474, 8.507059e+37
        %v2476 = vand.u32 %v2431, 2147483648
        %v2477 = vor.u32 1.1754944e-38, %v2476
        %v2478 = vsel %vm2475, %v2477, %v2473
        %v2479 = vmul.f32 %v2420, %v2478
        %v2480 = vrcp.pop %v2434
        %v2481 = vmul.f32 %v2434, %v2480
        %v2482 = vsub.f32 1.0, %v2481
        %v2483 = vmul.f32 %v2480, %v2482
        %v2484 = vadd.f32 %v2480, %v2483
        %vm2485 = vweird.f32 %v2434
        %vm2486 = vweird.f32 %v2480
        %vm2487 = vmor %vm2485, %vm2486
        %v2488 = vsel %vm2487, %v2480, %v2484
        %v2489 = vand.u32 2147483647, %v2434
        %vm2490 = vcmp.eq.f32.partialorder %v2489, 8.507059e+37
        %v2491 = vand.u32 %v2434, 2147483648
        %v2492 = vor.u32 1.1754944e-38, %v2491
        %v2493 = vsel %vm2490, %v2492, %v2488
        %v2494 = vmul.f32 %v2422, %v2493
        %v2496 = vsel %vm1505, %v2449, 0
        %2498 = vmatpush.msra.mxu0 0.0
        %2499 = vmatpush.msra.mxu0 0.0
        %2500 = vmatpush.msra.mxu0 0.0
        %2501 = vmatpush.msra.mxu0 0.0
        %2502 = vmatpush.msra.mxu0 0.0
        %2503 = vmatpush.msra.mxu0 0.0
        %2504 = vmatpush.msra.mxu0 0.0
        %2505 = vmatpush.msra.mxu0 0.0
        %2506 = vmatpush.msra.mxu0 0.0
        %2507 = vmatpush.msra.mxu0 0.0
        %2508 = vmatpush.msra.mxu0 0.0
        %2509 = vmatpush.msra.mxu0 0.0
        %2510 = vmatpush.msra.mxu0 0.0
        %2511 = vmatpush.msra.mxu0 0.0
        %2512 = vmatpush.msra.mxu0 0.0
        %2513 = vmatpush.msra.mxu0 %v2288
        %2514 = vmatmul.f32.gmra.mxu0 %v2496
        %v2515 = vpop.f32.mrf.mxu0
        %v2516 = vadd.f32 0.0, %v2515
        %2517 = vdwg.mxu0
        %v2519 = vsel %vm1505, %v2464, 0
        %2521 = vmatpush.msra.mxu0 0.0
        %2522 = vmatpush.msra.mxu0 0.0
        %2523 = vmatpush.msra.mxu0 0.0
        %2524 = vmatpush.msra.mxu0 0.0
        %2525 = vmatpush.msra.mxu0 0.0
        %2526 = vmatpush.msra.mxu0 0.0
        %2527 = vmatpush.msra.mxu0 0.0
        %2528 = vmatpush.msra.mxu0 0.0
        %2529 = vmatpush.msra.mxu0 0.0
        %2530 = vmatpush.msra.mxu0 0.0
        %2531 = vmatpush.msra.mxu0 0.0
        %2532 = vmatpush.msra.mxu0 0.0
        %2533 = vmatpush.msra.mxu0 0.0
        %2534 = vmatpush.msra.mxu0 0.0
        %2535 = vmatpush.msra.mxu0 0.0
        %2536 = vmatpush.msra.mxu0 %v2290
        %2537 = vmatmul.f32.gmra.mxu0 %v2519
        %v2538 = vpop.f32.mrf.mxu0
        %v2539 = vadd.f32 0.0, %v2538
        %2540 = vdwg.mxu0
        %v2542 = vsel %vm1505, %v2479, 0
        %2544 = vmatpush.msra.mxu0 0.0
        %2545 = vmatpush.msra.mxu0 0.0
        %2546 = vmatpush.msra.mxu0 0.0
        %2547 = vmatpush.msra.mxu0 0.0
        %2548 = vmatpush.msra.mxu0 0.0
        %2549 = vmatpush.msra.mxu0 0.0
        %2550 = vmatpush.msra.mxu0 0.0
        %2551 = vmatpush.msra.mxu0 0.0
        %2552 = vmatpush.msra.mxu0 0.0
        %2553 = vmatpush.msra.mxu0 0.0
        %2554 = vmatpush.msra.mxu0 0.0
        %2555 = vmatpush.msra.mxu0 0.0
        %2556 = vmatpush.msra.mxu0 0.0
        %2557 = vmatpush.msra.mxu0 0.0
        %2558 = vmatpush.msra.mxu0 0.0
        %2559 = vmatpush.msra.mxu0 %v2292
        %2560 = vmatmul.f32.gmra.mxu0 %v2542
        %v2561 = vpop.f32.mrf.mxu0
        %v2562 = vadd.f32 0.0, %v2561
        %2563 = vdwg.mxu0
        %v2565 = vsel %vm1505, %v2494, 0
        %2567 = vmatpush.msra.mxu0 0.0
        %2568 = vmatpush.msra.mxu0 0.0
        %2569 = vmatpush.msra.mxu0 0.0
        %2570 = vmatpush.msra.mxu0 0.0
        %2571 = vmatpush.msra.mxu0 0.0
        %2572 = vmatpush.msra.mxu0 0.0
        %2573 = vmatpush.msra.mxu0 0.0
        %2574 = vmatpush.msra.mxu0 0.0
        %2575 = vmatpush.msra.mxu0 0.0
        %2576 = vmatpush.msra.mxu0 0.0
        %2577 = vmatpush.msra.mxu0 0.0
        %2578 = vmatpush.msra.mxu0 0.0
        %2579 = vmatpush.msra.mxu0 0.0
        %2580 = vmatpush.msra.mxu0 0.0
        %2581 = vmatpush.msra.mxu0 0.0
        %2582 = vmatpush.msra.mxu0 %v2294
        %2583 = vmatmul.f32.gmra.mxu0 %v2565
        %v2584 = vpop.f32.mrf.mxu0
        %v2585 = vadd.f32 0.0, %v2584
        %2586 = vdwg.mxu0
        %v2587 = vrot.slane %v2562, 4
        %v2588 = vsel %vm1146, %v2587, %v2516
        %v2589 = vrot.slane %v2516, 4
        %v2590 = vsel %vm1146, %v2562, %v2589
        %v2592 = vunpack.c.l.s4 1983009808
        %v2593 = vunpack.c.0.s8 %v2592
        %v2594 = vperm.slane %v2588, %v2593
        %v2596 = vunpack.c.l.s4 1983009808
        %v2597 = vunpack.c.0.s8 %v2596
        %v2598 = vperm.slane %v2590, %v2597
        %v2599 = vrot.slane %v2585, 4
        %v2600 = vsel %vm1146, %v2599, %v2539
        %v2601 = vrot.slane %v2539, 4
        %v2602 = vsel %vm1146, %v2585, %v2601
        %v2604 = vunpack.c.l.s4 1983009808
        %v2605 = vunpack.c.0.s8 %v2604
        %v2606 = vperm.slane %v2600, %v2605
        %v2608 = vunpack.c.l.s4 1983009808
        %v2609 = vunpack.c.0.s8 %v2608
        %v2610 = vperm.slane %v2602, %v2609
        %v2611 = vrot.slane %v2606, 4
        %v2612 = vsel %vm1146, %v2611, %v2594
        %v2613 = vrot.slane %v2594, 4
        %v2614 = vsel %vm1146, %v2606, %v2613
        %v2616 = vunpack.c.l.s4 1934713408
        %v2617 = vunpack.c.0.s8 %v2616
        %v2618 = vperm.slane %v2612, %v2617
        %v2620 = vunpack.c.l.s4 1934713408
        %v2621 = vunpack.c.0.s8 %v2620
        %v2622 = vperm.slane %v2614, %v2621
        %v2623 = vrot.slane %v2610, 4
        %v2624 = vsel %vm1146, %v2623, %v2598
        %v2625 = vrot.slane %v2598, 4
        %v2626 = vsel %vm1146, %v2610, %v2625
        %v2628 = vunpack.c.l.s4 1934713408
        %v2629 = vunpack.c.0.s8 %v2628
        %v2630 = vperm.slane %v2624, %v2629
        %v2632 = vunpack.c.l.s4 1934713408
        %v2633 = vunpack.c.0.s8 %v2632
        %v2634 = vperm.slane %v2626, %v2633
        %v2635 = vrot.slane %v2618, 4
        %v2636 = vsel %vm1146, 0.0, %v2635
        %v2637 = vrot.slane %v2622, 4
        %v2638 = vsel %vm1146, 0.0, %v2637
        %v2639 = vrot.slane %v2630, 4
        %v2640 = vsel %vm1146, 0.0, %v2639
        %v2641 = vrot.slane %v2634, 4
        %v2642 = vsel %vm1146, 0.0, %v2641
        %v2643 = vsel %vm1146, %v2637, %v2618
        %v2645 = vunpack.c.l.s4 1983009808
        %v2646 = vunpack.c.0.s8 %v2645
        %v2647 = vperm.slane %v2643, %v2646
        %v2648 = vrot.slane %v2638, 4
        %v2649 = vsel %vm1146, %v2648, %v2636
        %v2651 = vunpack.c.l.s4 1983009808
        %v2652 = vunpack.c.0.s8 %v2651
        %v2653 = vperm.slane %v2649, %v2652
        %v2654 = vsel %vm1146, %v2641, %v2630
        %v2656 = vunpack.c.l.s4 1983009808
        %v2657 = vunpack.c.0.s8 %v2656
        %v2658 = vperm.slane %v2654, %v2657
        %v2659 = vrot.slane %v2642, 4
        %v2660 = vsel %vm1146, %v2659, %v2640
        %v2662 = vunpack.c.l.s4 1983009808
        %v2663 = vunpack.c.0.s8 %v2662
        %v2664 = vperm.slane %v2660, %v2663
        %v2665 = vrot.slane %v2653, 4
        %v2666 = vsel %vm1146, %v2665, %v2647
        %v2667 = vrot.slane %v2647, 4
        %v2668 = vsel %vm1146, %v2653, %v2667
        %v2670 = vunpack.c.l.s4 1934713408
        %v2671 = vunpack.c.0.s8 %v2670
        %v2672 = vperm.slane %v2666, %v2671
        %v2674 = vunpack.c.l.s4 1934713408
        %v2675 = vunpack.c.0.s8 %v2674
        %v2676 = vperm.slane %v2668, %v2675
        %v2677 = vrot.slane %v2664, 4
        %v2678 = vsel %vm1146, %v2677, %v2658
        %v2679 = vrot.slane %v2658, 4
        %v2680 = vsel %vm1146, %v2664, %v2679
        %v2682 = vunpack.c.l.s4 1934713408
        %v2683 = vunpack.c.0.s8 %v2682
        %v2684 = vperm.slane %v2678, %v2683
        %v2686 = vunpack.c.l.s4 1934713408
        %v2687 = vunpack.c.0.s8 %v2686
        %v2688 = vperm.slane %v2680, %v2687
        %v2689 = vrot.slane %v2684, 4
        %v2690 = vsel %vm1146, %v2689, %v2672
        %v2691 = vrot.slane %v2672, 4
        %v2692 = vsel %vm1146, %v2684, %v2691
        %v2693 = vrot.slane %v2688, 4
        %v2694 = vsel %vm1146, %v2693, %v2676
        %v2695 = vrot.slane %v2676, 4
        %v2696 = vsel %vm1146, %v2688, %v2695
        %2698 = vrot.lane.b32.xlu0 %v2692, 8
        %v2699 = vpop.permute.xlu0 %2698
        %2702 = vrot.lane.b32.xlu0 %v2694, 16
        %v2703 = vpop.permute.xlu0 %2702
        %2706 = vrot.lane.b32.xlu0 %v2696, 24
        %v2707 = vpop.permute.xlu0 %2706
        %v2709 = vsel %vm1505, %v2690, %v2699
        %v2710 = vsel %vm1921, %v2709, %v2703
        %v2711 = vsel %vm1923, %v2710, %v2707
        %v2712 = vld [vmem:[%s949] sm:$0xff]
        %v2713 = vld [vmem:[%s949 + $0x8] sm:$0xff]
        %v2714 = vld [vmem:[%s949 + $0x10] sm:$0xff]
        %v2715 = vld [vmem:[%s949 + $0x18] sm:$0xff]
        %v2716 = vperm.slane %v1059, 1
        %v2718 = vsel %vm1070, %v1924, 0
        %v2721 = vsel %vm1070, %v2711, 0
        %2723 = vmatpush.msra.mxu0 0.0
        %2724 = vmatpush.msra.mxu0 0.0
        %2725 = vmatpush.msra.mxu0 0.0
        %2726 = vmatpush.msra.mxu0 0.0
        %2727 = vmatpush.msra.mxu0 0.0
        %2728 = vmatpush.msra.mxu0 0.0
        %2729 = vmatpush.msra.mxu0 0.0
        %2730 = vmatpush.msra.mxu0 0.0
        %2731 = vmatpush.msra.mxu0 0.0
        %2732 = vmatpush.msra.mxu0 0.0
        %2733 = vmatpush.msra.mxu0 0.0
        %2734 = vmatpush.msra.mxu0 0.0
        %2735 = vmatpush.msra.mxu0 %v2715
        %2736 = vmatpush.msra.mxu0 %v2714
        %2737 = vmatpush.msra.mxu0 %v2713
        %2738 = vmatpush.msra.mxu0 %v2712
        %2739 = vmatmul.f32.gmra.mxu0 %v2718
        %v2740 = vpop.f32.mrf.mxu0
        %v2741 = vadd.f32 %v2716, %v2740
        %2742 = vmatmul.f32.gmra.mxu0 %v2721
        %v2743 = vpop.f32.mrf.mxu0
        %v2744 = vadd.f32 %v2716, %v2743
        %2745 = vdwg.mxu0
        %v2746 = vadd.f32 %v1048, %v2741
        %v2747 = vadd.f32 %v1049, %v2744
        %v2748 = vsel %vm1070, %v2746, 0.0
        %2749 = vadd.xlane.f32.xlu0 %v2748
        %v2750 = vpop.xlane.xlu0 %2749
        %v2751 = vsel %vm1070, %v2747, 0.0
        %2752 = vadd.xlane.f32.xlu0 %v2751
        %v2753 = vpop.xlane.xlu0 %2752
        %v2754 = vrcp.pop 32.0
        %v2755 = vmul.f32 32.0, %v2754
        %v2756 = vsub.f32 1.0, %v2755
        %v2757 = vmul.f32 %v2754, %v2756
        %v2758 = vadd.f32 %v2754, %v2757
        %vm2759 = vweird.f32 %v2754
        %v2760 = vsel %vm2759, %v2754, %v2758
        %v2761 = vmul.f32 %v2750, %v2760
        %v2762 = vmul.f32 %v2753, %v2760
        %v2763 = vsub.f32 %v2746, %v2761
        %v2764 = vsub.f32 %v2747, %v2762
        %v2765 = vmul.f32 %v2763, %v2763
        %v2766 = vmul.f32 %v2764, %v2764
        %v2767 = vsel %vm1070, %v2765, 0.0
        %2768 = vadd.xlane.f32.xlu0 %v2767
        %v2769 = vpop.xlane.xlu0 %2768
        %v2770 = vsel %vm1070, %v2766, 0.0
        %2771 = vadd.xlane.f32.xlu0 %v2770
        %v2772 = vpop.xlane.xlu0 %2771
        %v2773 = vmul.f32 %v2769, %v2760
        %v2774 = vmul.f32 %v2772, %v2760
        %v2775 = vadd.f32 %v2773, 1e-05
        %v2776 = vadd.f32 %v2774, 1e-05
        %v2777 = vrsqrt.pop %v2775
        %v2778 = vmul.f32 %v2777, %v2775
        %v2779 = vmul.f32 %v2778, %v2777
        %v2780 = vmul.f32 0.5, %v2779
        %v2781 = vsub.f32 1.5, %v2780
        %v2782 = vmul.f32 %v2777, %v2781
        %vm2783 = vweird.f32 %v2775
        %vm2784 = vweird.f32 %v2777
        %vm2785 = vmor %vm2783, %vm2784
        %v2786 = vsel %vm2785, %v2777, %v2782
        %v2787 = vrsqrt.pop %v2776
        %v2788 = vmul.f32 %v2787, %v2776
        %v2789 = vmul.f32 %v2788, %v2787
        %v2790 = vmul.f32 0.5, %v2789
        %v2791 = vsub.f32 1.5, %v2790
        %v2792 = vmul.f32 %v2787, %v2791
        %vm2793 = vweird.f32 %v2776
        %vm2794 = vweird.f32 %v2787
        %vm2795 = vmor %vm2793, %vm2794
        %v2796 = vsel %vm2795, %v2787, %v2792
        %v2797 = vmul.f32 %v2763, %v2786
        %v2798 = vmul.f32 %v2764, %v2796
        %v2799 = vperm.slane %v1059, 5
        %v2800 = vmul.f32 %v2797, %v2799
        %v2801 = vmul.f32 %v2798, %v2799
        %v2802 = vperm.slane %v1059, 6
        %v2803 = vadd.f32 %v2800, %v2802
        %v2804 = vadd.f32 %v2801, %v2802
        %v2805 = vadd.f32 %v2803, %v1050
        %v2806 = vadd.f32 %v2804, %v1050
        %v2807 = vld [vmem:[%s954] sm:$0xff]
        %v2808 = vld [vmem:[%s954 + $0x8] sm:$0xff]
        %v2809 = vld [vmem:[%s954 + $0x10] sm:$0xff]
        %v2810 = vld [vmem:[%s954 + $0x18] sm:$0xff]
        %v2811 = vperm.slane %v1059, 2
        %v2813 = vsel %vm1070, %v2805, 0
        %v2816 = vsel %vm1070, %v2806, 0
        %2818 = vmatpush.msra.mxu0 0.0
        %2819 = vmatpush.msra.mxu0 0.0
        %2820 = vmatpush.msra.mxu0 0.0
        %2821 = vmatpush.msra.mxu0 0.0
        %2822 = vmatpush.msra.mxu0 0.0
        %2823 = vmatpush.msra.mxu0 0.0
        %2824 = vmatpush.msra.mxu0 0.0
        %2825 = vmatpush.msra.mxu0 0.0
        %2826 = vmatpush.msra.mxu0 0.0
        %2827 = vmatpush.msra.mxu0 0.0
        %2828 = vmatpush.msra.mxu0 0.0
        %2829 = vmatpush.msra.mxu0 0.0
        %2830 = vmatpush.msra.mxu0 %v2810
        %2831 = vmatpush.msra.mxu0 %v2809
        %2832 = vmatpush.msra.mxu0 %v2808
        %2833 = vmatpush.msra.mxu0 %v2807
        %2834 = vmatmul.f32.gmra.mxu0 %v2813
        %v2835 = vpop.f32.mrf.mxu0
        %v2836 = vadd.f32 %v2811, %v2835
        %2837 = vmatmul.f32.gmra.mxu0 %v2816
        %v2838 = vpop.f32.mrf.mxu0
        %v2839 = vadd.f32 %v2811, %v2838
        %2840 = vdwg.mxu0
        %v2841 = vld [vmem:[#allocation4] sm:$0xff]
        %v2842 = vld [vmem:[#allocation4 + $0x8] sm:$0xff]
        %v2843 = vld [vmem:[#allocation4 + $0x10] sm:$0xff]
        %v2844 = vld [vmem:[#allocation4 + $0x18] sm:$0xff]
        %v2845 = vld [vmem:[%s959] sm:$0xff]
        %v2846 = vld [vmem:[%s959 + $0x8] sm:$0xff]
        %v2847 = vld [vmem:[%s959 + $0x10] sm:$0xff]
        %v2848 = vld [vmem:[%s959 + $0x18] sm:$0xff]
        %v2849 = vperm.slane %v1061, 1
        %v2851 = vsel %vm1070, %v2841, 0
        %v2854 = vsel %vm1070, %v2842, 0
        %v2857 = vsel %vm1070, %v2843, 0
        %v2860 = vsel %vm1070, %v2844, 0
        %2862 = vmatpush.msra.mxu0 0.0
        %2863 = vmatpush.msra.mxu0 0.0
        %2864 = vmatpush.msra.mxu0 0.0
        %2865 = vmatpush.msra.mxu0 0.0
        %2866 = vmatpush.msra.mxu0 0.0
        %2867 = vmatpush.msra.mxu0 0.0
        %2868 = vmatpush.msra.mxu0 0.0
        %2869 = vmatpush.msra.mxu0 0.0
        %2870 = vmatpush.msra.mxu0 0.0
        %2871 = vmatpush.msra.mxu0 0.0
        %2872 = vmatpush.msra.mxu0 0.0
        %2873 = vmatpush.msra.mxu0 0.0
        %2874 = vmatpush.msra.mxu0 %v2848
        %2875 = vmatpush.msra.mxu0 %v2847
        %2876 = vmatpush.msra.mxu0 %v2846
        %2877 = vmatpush.msra.mxu0 %v2845
        %2878 = vmatmul.f32.gmra.mxu0 %v2851
        %v2879 = vpop.f32.mrf.mxu0
        %v2880 = vadd.f32 %v2849, %v2879
        %2881 = vmatmul.f32.gmra.mxu0 %v2854
        %v2882 = vpop.f32.mrf.mxu0
        %v2883 = vadd.f32 %v2849, %v2882
        %2884 = vmatmul.f32.gmra.mxu0 %v2857
        %v2885 = vpop.f32.mrf.mxu0
        %v2886 = vadd.f32 %v2849, %v2885
        %2887 = vmatmul.f32.gmra.mxu0 %v2860
        %v2888 = vpop.f32.mrf.mxu0
        %v2889 = vadd.f32 %v2849, %v2888
        %2890 = vdwg.mxu0
        %v2891 = vmul.f32 %v2836, 0.35355338
        %2893 = vrot.lane.b32.xlu0 %v2891, 120
        %v2894 = vpop.permute.xlu0 %2893
        %2896 = vrot.lane.b32.xlu0 %v2891, 112
        %v2897 = vpop.permute.xlu0 %2896
        %2899 = vrot.lane.b32.xlu0 %v2891, 104
        %v2900 = vpop.permute.xlu0 %2899
        %v2902 = vrot.slane %v2897, 4
        %v2903 = vsel %vm1146, %v2902, %v2891
        %v2904 = vrot.slane %v2891, 4
        %v2905 = vsel %vm1146, %v2897, %v2904
        %v2907 = vunpack.c.l.s4 1983009808
        %v2908 = vunpack.c.0.s8 %v2907
        %v2909 = vperm.slane %v2903, %v2908
        %v2911 = vunpack.c.l.s4 1983009808
        %v2912 = vunpack.c.0.s8 %v2911
        %v2913 = vperm.slane %v2905, %v2912
        %v2914 = vrot.slane %v2900, 4
        %v2915 = vsel %vm1146, %v2914, %v2894
        %v2916 = vrot.slane %v2894, 4
        %v2917 = vsel %vm1146, %v2900, %v2916
        %v2919 = vunpack.c.l.s4 1983009808
        %v2920 = vunpack.c.0.s8 %v2919
        %v2921 = vperm.slane %v2915, %v2920
        %v2923 = vunpack.c.l.s4 1983009808
        %v2924 = vunpack.c.0.s8 %v2923
        %v2925 = vperm.slane %v2917, %v2924
        %v2926 = vrot.slane %v2921, 4
        %v2927 = vsel %vm1146, %v2926, %v2909
        %v2928 = vrot.slane %v2909, 4
        %v2929 = vsel %vm1146, %v2921, %v2928
        %v2931 = vunpack.c.l.s4 1934713408
        %v2932 = vunpack.c.0.s8 %v2931
        %v2933 = vperm.slane %v2927, %v2932
        %v2935 = vunpack.c.l.s4 1934713408
        %v2936 = vunpack.c.0.s8 %v2935
        %v2937 = vperm.slane %v2929, %v2936
        %v2938 = vrot.slane %v2925, 4
        %v2939 = vsel %vm1146, %v2938, %v2913
        %v2940 = vrot.slane %v2913, 4
        %v2941 = vsel %vm1146, %v2925, %v2940
        %v2943 = vunpack.c.l.s4 1934713408
        %v2944 = vunpack.c.0.s8 %v2943
        %v2945 = vperm.slane %v2939, %v2944
        %v2947 = vunpack.c.l.s4 1934713408
        %v2948 = vunpack.c.0.s8 %v2947
        %v2949 = vperm.slane %v2941, %v2948
        %v2950 = vrot.slane %v2933, 4
        %v2951 = vsel %vm1146, 0.0, %v2950
        %v2952 = vrot.slane %v2937, 4
        %v2953 = vsel %vm1146, 0.0, %v2952
        %v2954 = vrot.slane %v2945, 4
        %v2955 = vsel %vm1146, 0.0, %v2954
        %v2956 = vrot.slane %v2949, 4
        %v2957 = vsel %vm1146, 0.0, %v2956
        %v2958 = vsel %vm1146, %v2952, %v2933
        %v2960 = vunpack.c.l.s4 1983009808
        %v2961 = vunpack.c.0.s8 %v2960
        %v2962 = vperm.slane %v2958, %v2961
        %v2963 = vrot.slane %v2953, 4
        %v2964 = vsel %vm1146, %v2963, %v2951
        %v2966 = vunpack.c.l.s4 1983009808
        %v2967 = vunpack.c.0.s8 %v2966
        %v2968 = vperm.slane %v2964, %v2967
        %v2969 = vsel %vm1146, %v2956, %v2945
        %v2971 = vunpack.c.l.s4 1983009808
        %v2972 = vunpack.c.0.s8 %v2971
        %v2973 = vperm.slane %v2969, %v2972
        %v2974 = vrot.slane %v2957, 4
        %v2975 = vsel %vm1146, %v2974, %v2955
        %v2977 = vunpack.c.l.s4 1983009808
        %v2978 = vunpack.c.0.s8 %v2977
        %v2979 = vperm.slane %v2975, %v2978
        %v2980 = vrot.slane %v2968, 4
        %v2981 = vsel %vm1146, %v2980, %v2962
        %v2982 = vrot.slane %v2962, 4
        %v2983 = vsel %vm1146, %v2968, %v2982
        %v2985 = vunpack.c.l.s4 1934713408
        %v2986 = vunpack.c.0.s8 %v2985
        %v2987 = vperm.slane %v2981, %v2986
        %v2989 = vunpack.c.l.s4 1934713408
        %v2990 = vunpack.c.0.s8 %v2989
        %v2991 = vperm.slane %v2983, %v2990
        %v2992 = vrot.slane %v2979, 4
        %v2993 = vsel %vm1146, %v2992, %v2973
        %v2994 = vrot.slane %v2973, 4
        %v2995 = vsel %vm1146, %v2979, %v2994
        %v2997 = vunpack.c.l.s4 1934713408
        %v2998 = vunpack.c.0.s8 %v2997
        %v2999 = vperm.slane %v2993, %v2998
        %v3001 = vunpack.c.l.s4 1934713408
        %v3002 = vunpack.c.0.s8 %v3001
        %v3003 = vperm.slane %v2995, %v3002
        %v3004 = vrot.slane %v2999, 4
        %v3005 = vsel %vm1146, %v3004, %v2987
        %v3006 = vrot.slane %v2987, 4
        %v3007 = vsel %vm1146, %v2999, %v3006
        %v3008 = vrot.slane %v3003, 4
        %v3009 = vsel %vm1146, %v3008, %v2991
        %v3010 = vrot.slane %v2991, 4
        %v3011 = vsel %vm1146, %v3003, %v3010
        %3014 = vrot.lane.b32.xlu0 %v2880, 120
        %v3015 = vpop.permute.xlu0 %3014
        %3016 = vrot.lane.b32.xlu0 %v2883, 120
        %v3017 = vpop.permute.xlu0 %3016
        %3020 = vrot.lane.b32.xlu0 %v2880, 112
        %v3021 = vpop.permute.xlu0 %3020
        %3022 = vrot.lane.b32.xlu0 %v2883, 112
        %v3023 = vpop.permute.xlu0 %3022
        %3026 = vrot.lane.b32.xlu0 %v2880, 104
        %v3027 = vpop.permute.xlu0 %3026
        %3028 = vrot.lane.b32.xlu0 %v2883, 104
        %v3029 = vpop.permute.xlu0 %3028
        %v3032 = vrot.slane %v3021, 4
        %v3033 = vsel %vm1146, %v3032, %v2880
        %v3034 = vrot.slane %v2880, 4
        %v3035 = vsel %vm1146, %v3021, %v3034
        %v3037 = vunpack.c.l.s4 1983009808
        %v3038 = vunpack.c.0.s8 %v3037
        %v3039 = vperm.slane %v3033, %v3038
        %v3041 = vunpack.c.l.s4 1983009808
        %v3042 = vunpack.c.0.s8 %v3041
        %v3043 = vperm.slane %v3035, %v3042
        %v3044 = vrot.slane %v3027, 4
        %v3045 = vsel %vm1146, %v3044, %v3015
        %v3046 = vrot.slane %v3015, 4
        %v3047 = vsel %vm1146, %v3027, %v3046
        %v3049 = vunpack.c.l.s4 1983009808
        %v3050 = vunpack.c.0.s8 %v3049
        %v3051 = vperm.slane %v3045, %v3050
        %v3053 = vunpack.c.l.s4 1983009808
        %v3054 = vunpack.c.0.s8 %v3053
        %v3055 = vperm.slane %v3047, %v3054
        %v3056 = vrot.slane %v3051, 4
        %v3057 = vsel %vm1146, %v3056, %v3039
        %v3058 = vrot.slane %v3039, 4
        %v3059 = vsel %vm1146, %v3051, %v3058
        %v3061 = vunpack.c.l.s4 1934713408
        %v3062 = vunpack.c.0.s8 %v3061
        %v3063 = vperm.slane %v3057, %v3062
        %v3065 = vunpack.c.l.s4 1934713408
        %v3066 = vunpack.c.0.s8 %v3065
        %v3067 = vperm.slane %v3059, %v3066
        %v3068 = vrot.slane %v3055, 4
        %v3069 = vsel %vm1146, %v3068, %v3043
        %v3070 = vrot.slane %v3043, 4
        %v3071 = vsel %vm1146, %v3055, %v3070
        %v3073 = vunpack.c.l.s4 1934713408
        %v3074 = vunpack.c.0.s8 %v3073
        %v3075 = vperm.slane %v3069, %v3074
        %v3077 = vunpack.c.l.s4 1934713408
        %v3078 = vunpack.c.0.s8 %v3077
        %v3079 = vperm.slane %v3071, %v3078
        %v3080 = vrot.slane %v3063, 4
        %v3081 = vsel %vm1146, 0.0, %v3080
        %v3082 = vrot.slane %v3067, 4
        %v3083 = vsel %vm1146, 0.0, %v3082
        %v3084 = vrot.slane %v3075, 4
        %v3085 = vsel %vm1146, 0.0, %v3084
        %v3086 = vrot.slane %v3079, 4
        %v3087 = vsel %vm1146, 0.0, %v3086
        %v3088 = vrot.slane %v3023, 4
        %v3089 = vsel %vm1146, %v3088, %v2883
        %v3090 = vrot.slane %v2883, 4
        %v3091 = vsel %vm1146, %v3023, %v3090
        %v3093 = vunpack.c.l.s4 1983009808
        %v3094 = vunpack.c.0.s8 %v3093
        %v3095 = vperm.slane %v3089, %v3094
        %v3097 = vunpack.c.l.s4 1983009808
        %v3098 = vunpack.c.0.s8 %v3097
        %v3099 = vperm.slane %v3091, %v3098
        %v3100 = vrot.slane %v3029, 4
        %v3101 = vsel %vm1146, %v3100, %v3017
        %v3102 = vrot.slane %v3017, 4
        %v3103 = vsel %vm1146, %v3029, %v3102
        %v3105 = vunpack.c.l.s4 1983009808
        %v3106 = vunpack.c.0.s8 %v3105
        %v3107 = vperm.slane %v3101, %v3106
        %v3109 = vunpack.c.l.s4 1983009808
        %v3110 = vunpack.c.0.s8 %v3109
        %v3111 = vperm.slane %v3103, %v3110
        %v3112 = vrot.slane %v3107, 4
        %v3113 = vsel %vm1146, %v3112, %v3095
        %v3114 = vrot.slane %v3095, 4
        %v3115 = vsel %vm1146, %v3107, %v3114
        %v3117 = vunpack.c.l.s4 1934713408
        %v3118 = vunpack.c.0.s8 %v3117
        %v3119 = vperm.slane %v3113, %v3118
        %v3121 = vunpack.c.l.s4 1934713408
        %v3122 = vunpack.c.0.s8 %v3121
        %v3123 = vperm.slane %v3115, %v3122
        %v3124 = vrot.slane %v3111, 4
        %v3125 = vsel %vm1146, %v3124, %v3099
        %v3126 = vrot.slane %v3099, 4
        %v3127 = vsel %vm1146, %v3111, %v3126
        %v3129 = vunpack.c.l.s4 1934713408
        %v3130 = vunpack.c.0.s8 %v3129
        %v3131 = vperm.slane %v3125, %v3130
        %v3133 = vunpack.c.l.s4 1934713408
        %v3134 = vunpack.c.0.s8 %v3133
        %v3135 = vperm.slane %v3127, %v3134
        %v3136 = vrot.slane %v3119, 4
        %v3137 = vsel %vm1146, 0.0, %v3136
        %v3138 = vrot.slane %v3123, 4
        %v3139 = vsel %vm1146, 0.0, %v3138
        %v3140 = vrot.slane %v3131, 4
        %v3141 = vsel %vm1146, 0.0, %v3140
        %v3142 = vrot.slane %v3135, 4
        %v3143 = vsel %vm1146, 0.0, %v3142
        %v3144 = vsel %vm1146, %v3082, %v3063
        %v3146 = vunpack.c.l.s4 1983009808
        %v3147 = vunpack.c.0.s8 %v3146
        %v3148 = vperm.slane %v3144, %v3147
        %v3149 = vrot.slane %v3083, 4
        %v3150 = vsel %vm1146, %v3149, %v3081
        %v3152 = vunpack.c.l.s4 1983009808
        %v3153 = vunpack.c.0.s8 %v3152
        %v3154 = vperm.slane %v3150, %v3153
        %v3155 = vsel %vm1146, %v3086, %v3075
        %v3157 = vunpack.c.l.s4 1983009808
        %v3158 = vunpack.c.0.s8 %v3157
        %v3159 = vperm.slane %v3155, %v3158
        %v3160 = vrot.slane %v3087, 4
        %v3161 = vsel %vm1146, %v3160, %v3085
        %v3163 = vunpack.c.l.s4 1983009808
        %v3164 = vunpack.c.0.s8 %v3163
        %v3165 = vperm.slane %v3161, %v3164
        %v3166 = vrot.slane %v3154, 4
        %v3167 = vsel %vm1146, %v3166, %v3148
        %v3168 = vrot.slane %v3148, 4
        %v3169 = vsel %vm1146, %v3154, %v3168
        %v3171 = vunpack.c.l.s4 1934713408
        %v3172 = vunpack.c.0.s8 %v3171
        %v3173 = vperm.slane %v3167, %v3172
        %v3175 = vunpack.c.l.s4 1934713408
        %v3176 = vunpack.c.0.s8 %v3175
        %v3177 = vperm.slane %v3169, %v3176
        %v3178 = vrot.slane %v3165, 4
        %v3179 = vsel %vm1146, %v3178, %v3159
        %v3180 = vrot.slane %v3159, 4
        %v3181 = vsel %vm1146, %v3165, %v3180
        %v3183 = vunpack.c.l.s4 1934713408
        %v3184 = vunpack.c.0.s8 %v3183
        %v3185 = vperm.slane %v3179, %v3184
        %v3187 = vunpack.c.l.s4 1934713408
        %v3188 = vunpack.c.0.s8 %v3187
        %v3189 = vperm.slane %v3181, %v3188
        %v3190 = vrot.slane %v3185, 4
        %v3191 = vsel %vm1146, %v3190, %v3173
        %v3192 = vrot.slane %v3173, 4
        %v3193 = vsel %vm1146, %v3185, %v3192
        %v3194 = vrot.slane %v3189, 4
        %v3195 = vsel %vm1146, %v3194, %v3177
        %v3196 = vrot.slane %v3177, 4
        %v3197 = vsel %vm1146, %v3189, %v3196
        %v3198 = vsel %vm1146, %v3138, %v3119
        %v3200 = vunpack.c.l.s4 1983009808
        %v3201 = vunpack.c.0.s8 %v3200
        %v3202 = vperm.slane %v3198, %v3201
        %v3203 = vrot.slane %v3139, 4
        %v3204 = vsel %vm1146, %v3203, %v3137
        %v3206 = vunpack.c.l.s4 1983009808
        %v3207 = vunpack.c.0.s8 %v3206
        %v3208 = vperm.slane %v3204, %v3207
        %v3209 = vsel %vm1146, %v3142, %v3131
        %v3211 = vunpack.c.l.s4 1983009808
        %v3212 = vunpack.c.0.s8 %v3211
        %v3213 = vperm.slane %v3209, %v3212
        %v3214 = vrot.slane %v3143, 4
        %v3215 = vsel %vm1146, %v3214, %v3141
        %v3217 = vunpack.c.l.s4 1983009808
        %v3218 = vunpack.c.0.s8 %v3217
        %v3219 = vperm.slane %v3215, %v3218
        %v3220 = vrot.slane %v3208, 4
        %v3221 = vsel %vm1146, %v3220, %v3202
        %v3222 = vrot.slane %v3202, 4
        %v3223 = vsel %vm1146, %v3208, %v3222
        %v3225 = vunpack.c.l.s4 1934713408
        %v3226 = vunpack.c.0.s8 %v3225
        %v3227 = vperm.slane %v3221, %v3226
        %v3229 = vunpack.c.l.s4 1934713408
        %v3230 = vunpack.c.0.s8 %v3229
        %v3231 = vperm.slane %v3223, %v3230
        %v3232 = vrot.slane %v3219, 4
        %v3233 = vsel %vm1146, %v3232, %v3213
        %v3234 = vrot.slane %v3213, 4
        %v3235 = vsel %vm1146, %v3219, %v3234
        %v3237 = vunpack.c.l.s4 1934713408
        %v3238 = vunpack.c.0.s8 %v3237
        %v3239 = vperm.slane %v3233, %v3238
        %v3241 = vunpack.c.l.s4 1934713408
        %v3242 = vunpack.c.0.s8 %v3241
        %v3243 = vperm.slane %v3235, %v3242
        %v3244 = vrot.slane %v3239, 4
        %v3245 = vsel %vm1146, %v3244, %v3227
        %v3246 = vrot.slane %v3227, 4
        %v3247 = vsel %vm1146, %v3239, %v3246
        %v3248 = vrot.slane %v3243, 4
        %v3249 = vsel %vm1146, %v3248, %v3231
        %v3250 = vrot.slane %v3231, 4
        %v3251 = vsel %vm1146, %v3243, %v3250
        %3252 = vrot.lane.b32.xlu0 %v2880, 96
        %v3253 = vpop.permute.xlu0 %3252
        %3254 = vrot.lane.b32.xlu0 %v2883, 96
        %v3255 = vpop.permute.xlu0 %3254
        %3256 = vrot.lane.b32.xlu0 %v3015, 96
        %v3257 = vpop.permute.xlu0 %3256
        %3258 = vrot.lane.b32.xlu0 %v3017, 96
        %v3259 = vpop.permute.xlu0 %3258
        %3260 = vrot.lane.b32.xlu0 %v3021, 96
        %v3261 = vpop.permute.xlu0 %3260
        %3262 = vrot.lane.b32.xlu0 %v3023, 96
        %v3263 = vpop.permute.xlu0 %3262
        %3264 = vrot.lane.b32.xlu0 %v3027, 96
        %v3265 = vpop.permute.xlu0 %3264
        %3266 = vrot.lane.b32.xlu0 %v3029, 96
        %v3267 = vpop.permute.xlu0 %3266
        %v3276 = vrot.slane %v3261, 4
        %v3277 = vsel %vm1146, %v3276, %v3253
        %v3278 = vrot.slane %v3253, 4
        %v3279 = vsel %vm1146, %v3261, %v3278
        %v3281 = vunpack.c.l.s4 1983009808
        %v3282 = vunpack.c.0.s8 %v3281
        %v3283 = vperm.slane %v3277, %v3282
        %v3285 = vunpack.c.l.s4 1983009808
        %v3286 = vunpack.c.0.s8 %v3285
        %v3287 = vperm.slane %v3279, %v3286
        %v3288 = vrot.slane %v3265, 4
        %v3289 = vsel %vm1146, %v3288, %v3257
        %v3290 = vrot.slane %v3257, 4
        %v3291 = vsel %vm1146, %v3265, %v3290
        %v3293 = vunpack.c.l.s4 1983009808
        %v3294 = vunpack.c.0.s8 %v3293
        %v3295 = vperm.slane %v3289, %v3294
        %v3297 = vunpack.c.l.s4 1983009808
        %v3298 = vunpack.c.0.s8 %v3297
        %v3299 = vperm.slane %v3291, %v3298
        %v3300 = vrot.slane %v3295, 4
        %v3301 = vsel %vm1146, %v3300, %v3283
        %v3302 = vrot.slane %v3283, 4
        %v3303 = vsel %vm1146, %v3295, %v3302
        %v3305 = vunpack.c.l.s4 1934713408
        %v3306 = vunpack.c.0.s8 %v3305
        %v3307 = vperm.slane %v3301, %v3306
        %v3309 = vunpack.c.l.s4 1934713408
        %v3310 = vunpack.c.0.s8 %v3309
        %v3311 = vperm.slane %v3303, %v3310
        %v3312 = vrot.slane %v3299, 4
        %v3313 = vsel %vm1146, %v3312, %v3287
        %v3314 = vrot.slane %v3287, 4
        %v3315 = vsel %vm1146, %v3299, %v3314
        %v3317 = vunpack.c.l.s4 1934713408
        %v3318 = vunpack.c.0.s8 %v3317
        %v3319 = vperm.slane %v3313, %v3318
        %v3321 = vunpack.c.l.s4 1934713408
        %v3322 = vunpack.c.0.s8 %v3321
        %v3323 = vperm.slane %v3315, %v3322
        %v3324 = vrot.slane %v3307, 4
        %v3325 = vsel %vm1146, 0.0, %v3324
        %v3326 = vrot.slane %v3311, 4
        %v3327 = vsel %vm1146, 0.0, %v3326
        %v3328 = vrot.slane %v3319, 4
        %v3329 = vsel %vm1146, 0.0, %v3328
        %v3330 = vrot.slane %v3323, 4
        %v3331 = vsel %vm1146, 0.0, %v3330
        %v3332 = vrot.slane %v3263, 4
        %v3333 = vsel %vm1146, %v3332, %v3255
        %v3334 = vrot.slane %v3255, 4
        %v3335 = vsel %vm1146, %v3263, %v3334
        %v3337 = vunpack.c.l.s4 1983009808
        %v3338 = vunpack.c.0.s8 %v3337
        %v3339 = vperm.slane %v3333, %v3338
        %v3341 = vunpack.c.l.s4 1983009808
        %v3342 = vunpack.c.0.s8 %v3341
        %v3343 = vperm.slane %v3335, %v3342
        %v3344 = vrot.slane %v3267, 4
        %v3345 = vsel %vm1146, %v3344, %v3259
        %v3346 = vrot.slane %v3259, 4
        %v3347 = vsel %vm1146, %v3267, %v3346
        %v3349 = vunpack.c.l.s4 1983009808
        %v3350 = vunpack.c.0.s8 %v3349
        %v3351 = vperm.slane %v3345, %v3350
        %v3353 = vunpack.c.l.s4 1983009808
        %v3354 = vunpack.c.0.s8 %v3353
        %v3355 = vperm.slane %v3347, %v3354
        %v3356 = vrot.slane %v3351, 4
        %v3357 = vsel %vm1146, %v3356, %v3339
        %v3358 = vrot.slane %v3339, 4
        %v3359 = vsel %vm1146, %v3351, %v3358
        %v3361 = vunpack.c.l.s4 1934713408
        %v3362 = vunpack.c.0.s8 %v3361
        %v3363 = vperm.slane %v3357, %v3362
        %v3365 = vunpack.c.l.s4 1934713408
        %v3366 = vunpack.c.0.s8 %v3365
        %v3367 = vperm.slane %v3359, %v3366
        %v3368 = vrot.slane %v3355, 4
        %v3369 = vsel %vm1146, %v3368, %v3343
        %v3370 = vrot.slane %v3343, 4
        %v3371 = vsel %vm1146, %v3355, %v3370
        %v3373 = vunpack.c.l.s4 1934713408
        %v3374 = vunpack.c.0.s8 %v3373
        %v3375 = vperm.slane %v3369, %v3374
        %v3377 = vunpack.c.l.s4 1934713408
        %v3378 = vunpack.c.0.s8 %v3377
        %v3379 = vperm.slane %v3371, %v3378
        %v3380 = vrot.slane %v3363, 4
        %v3381 = vsel %vm1146, 0.0, %v3380
        %v3382 = vrot.slane %v3367, 4
        %v3383 = vsel %vm1146, 0.0, %v3382
        %v3384 = vrot.slane %v3375, 4
        %v3385 = vsel %vm1146, 0.0, %v3384
        %v3386 = vrot.slane %v3379, 4
        %v3387 = vsel %vm1146, 0.0, %v3386
        %v3388 = vsel %vm1146, %v3326, %v3307
        %v3390 = vunpack.c.l.s4 1983009808
        %v3391 = vunpack.c.0.s8 %v3390
        %v3392 = vperm.slane %v3388, %v3391
        %v3393 = vrot.slane %v3327, 4
        %v3394 = vsel %vm1146, %v3393, %v3325
        %v3396 = vunpack.c.l.s4 1983009808
        %v3397 = vunpack.c.0.s8 %v3396
        %v3398 = vperm.slane %v3394, %v3397
        %v3399 = vsel %vm1146, %v3330, %v3319
        %v3401 = vunpack.c.l.s4 1983009808
        %v3402 = vunpack.c.0.s8 %v3401
        %v3403 = vperm.slane %v3399, %v3402
        %v3404 = vrot.slane %v3331, 4
        %v3405 = vsel %vm1146, %v3404, %v3329
        %v3407 = vunpack.c.l.s4 1983009808
        %v3408 = vunpack.c.0.s8 %v3407
        %v3409 = vperm.slane %v3405, %v3408
        %v3410 = vrot.slane %v3398, 4
        %v3411 = vsel %vm1146, %v3410, %v3392
        %v3412 = vrot.slane %v3392, 4
        %v3413 = vsel %vm1146, %v3398, %v3412
        %v3415 = vunpack.c.l.s4 1934713408
        %v3416 = vunpack.c.0.s8 %v3415
        %v3417 = vperm.slane %v3411, %v3416
        %v3419 = vunpack.c.l.s4 1934713408
        %v3420 = vunpack.c.0.s8 %v3419
        %v3421 = vperm.slane %v3413, %v3420
        %v3422 = vrot.slane %v3409, 4
        %v3423 = vsel %vm1146, %v3422, %v3403
        %v3424 = vrot.slane %v3403, 4
        %v3425 = vsel %vm1146, %v3409, %v3424
        %v3427 = vunpack.c.l.s4 1934713408
        %v3428 = vunpack.c.0.s8 %v3427
        %v3429 = vperm.slane %v3423, %v3428
        %v3431 = vunpack.c.l.s4 1934713408
        %v3432 = vunpack.c.0.s8 %v3431
        %v3433 = vperm.slane %v3425, %v3432
        %v3434 = vrot.slane %v3429, 4
        %v3435 = vsel %vm1146, %v3434, %v3417
        %v3436 = vrot.slane %v3417, 4
        %v3437 = vsel %vm1146, %v3429, %v3436
        %v3438 = vrot.slane %v3433, 4
        %v3439 = vsel %vm1146, %v3438, %v3421
        %v3440 = vrot.slane %v3421, 4
        %v3441 = vsel %vm1146, %v3433, %v3440
        %v3442 = vsel %vm1146, %v3382, %v3363
        %v3444 = vunpack.c.l.s4 1983009808
        %v3445 = vunpack.c.0.s8 %v3444
        %v3446 = vperm.slane %v3442, %v3445
        %v3447 = vrot.slane %v3383, 4
        %v3448 = vsel %vm1146, %v3447, %v3381
        %v3450 = vunpack.c.l.s4 1983009808
        %v3451 = vunpack.c.0.s8 %v3450
        %v3452 = vperm.slane %v3448, %v3451
        %v3453 = vsel %vm1146, %v3386, %v3375
        %v3455 = vunpack.c.l.s4 1983009808
        %v3456 = vunpack.c.0.s8 %v3455
        %v3457 = vperm.slane %v3453, %v3456
        %v3458 = vrot.slane %v3387, 4
        %v3459 = vsel %vm1146, %v3458, %v3385
        %v3461 = vunpack.c.l.s4 1983009808
        %v3462 = vunpack.c.0.s8 %v3461
        %v3463 = vperm.slane %v3459, %v3462
        %v3464 = vrot.slane %v3452, 4
        %v3465 = vsel %vm1146, %v3464, %v3446
        %v3466 = vrot.slane %v3446, 4
        %v3467 = vsel %vm1146, %v3452, %v3466
        %v3469 = vunpack.c.l.s4 1934713408
        %v3470 = vunpack.c.0.s8 %v3469
        %v3471 = vperm.slane %v3465, %v3470
        %v3473 = vunpack.c.l.s4 1934713408
        %v3474 = vunpack.c.0.s8 %v3473
        %v3475 = vperm.slane %v3467, %v3474
        %v3476 = vrot.slane %v3463, 4
        %v3477 = vsel %vm1146, %v3476, %v3457
        %v3478 = vrot.slane %v3457, 4
        %v3479 = vsel %vm1146, %v3463, %v3478
        %v3481 = vunpack.c.l.s4 1934713408
        %v3482 = vunpack.c.0.s8 %v3481
        %v3483 = vperm.slane %v3477, %v3482
        %v3485 = vunpack.c.l.s4 1934713408
        %v3486 = vunpack.c.0.s8 %v3485
        %v3487 = vperm.slane %v3479, %v3486
        %v3488 = vrot.slane %v3483, 4
        %v3489 = vsel %vm1146, %v3488, %v3471
        %v3490 = vrot.slane %v3471, 4
        %v3491 = vsel %vm1146, %v3483, %v3490
        %v3492 = vrot.slane %v3487, 4
        %v3493 = vsel %vm1146, %v3492, %v3475
        %v3494 = vrot.slane %v3475, 4
        %v3495 = vsel %vm1146, %v3487, %v3494
        %v3497 = vsel %vm1505, %v3005, 0
        %v3500 = vsel %vm1505, %v3191, 0
        %v3503 = vsel %vm1505, %v3245, 0
        %3505 = vmatpush.xpose.msra.mxu0 0.0
        %3506 = vmatpush.xpose.msra.mxu0 0.0
        %3507 = vmatpush.xpose.msra.mxu0 0.0
        %3508 = vmatpush.xpose.msra.mxu0 0.0
        %3509 = vmatpush.xpose.msra.mxu0 0.0
        %3510 = vmatpush.xpose.msra.mxu0 0.0
        %3511 = vmatpush.xpose.msra.mxu0 0.0
        %3512 = vmatpush.xpose.msra.mxu0 0.0
        %3513 = vmatpush.xpose.msra.mxu0 0.0
        %3514 = vmatpush.xpose.msra.mxu0 0.0
        %3515 = vmatpush.xpose.msra.mxu0 0.0
        %3516 = vmatpush.xpose.msra.mxu0 0.0
        %3517 = vmatpush.xpose.msra.mxu0 0.0
        %3518 = vmatpush.xpose.msra.mxu0 0.0
        %3519 = vmatpush.xpose.msra.mxu0 %v3503
        %3520 = vmatpush.xpose.msra.mxu0 %v3500
        %3521 = vmatmul.f32.gmra.mxu0 %v3497
        %v3522 = vpop.f32.mrf.mxu0
        %v3523 = vadd.f32 0.0, %v3522
        %3524 = vdwg.mxu0
        %v3526 = vsel %vm1505, %v3007, 0
        %v3529 = vsel %vm1505, %v3193, 0
        %v3532 = vsel %vm1505, %v3247, 0
        %3534 = vmatpush.xpose.msra.mxu0 0.0
        %3535 = vmatpush.xpose.msra.mxu0 0.0
        %3536 = vmatpush.xpose.msra.mxu0 0.0
        %3537 = vmatpush.xpose.msra.mxu0 0.0
        %3538 = vmatpush.xpose.msra.mxu0 0.0
        %3539 = vmatpush.xpose.msra.mxu0 0.0
        %3540 = vmatpush.xpose.msra.mxu0 0.0
        %3541 = vmatpush.xpose.msra.mxu0 0.0
        %3542 = vmatpush.xpose.msra.mxu0 0.0
        %3543 = vmatpush.xpose.msra.mxu0 0.0
        %3544 = vmatpush.xpose.msra.mxu0 0.0
        %3545 = vmatpush.xpose.msra.mxu0 0.0
        %3546 = vmatpush.xpose.msra.mxu0 0.0
        %3547 = vmatpush.xpose.msra.mxu0 0.0
        %3548 = vmatpush.xpose.msra.mxu0 %v3532
        %3549 = vmatpush.xpose.msra.mxu0 %v3529
        %3550 = vmatmul.f32.gmra.mxu0 %v3526
        %v3551 = vpop.f32.mrf.mxu0
        %v3552 = vadd.f32 0.0, %v3551
        %3553 = vdwg.mxu0
        %v3555 = vsel %vm1505, %v3009, 0
        %v3558 = vsel %vm1505, %v3195, 0
        %v3561 = vsel %vm1505, %v3249, 0
        %3563 = vmatpush.xpose.msra.mxu0 0.0
        %3564 = vmatpush.xpose.msra.mxu0 0.0
        %3565 = vmatpush.xpose.msra.mxu0 0.0
        %3566 = vmatpush.xpose.msra.mxu0 0.0
        %3567 = vmatpush.xpose.msra.mxu0 0.0
        %3568 = vmatpush.xpose.msra.mxu0 0.0
        %3569 = vmatpush.xpose.msra.mxu0 0.0
        %3570 = vmatpush.xpose.msra.mxu0 0.0
        %3571 = vmatpush.xpose.msra.mxu0 0.0
        %3572 = vmatpush.xpose.msra.mxu0 0.0
        %3573 = vmatpush.xpose.msra.mxu0 0.0
        %3574 = vmatpush.xpose.msra.mxu0 0.0
        %3575 = vmatpush.xpose.msra.mxu0 0.0
        %3576 = vmatpush.xpose.msra.mxu0 0.0
        %3577 = vmatpush.xpose.msra.mxu0 %v3561
        %3578 = vmatpush.xpose.msra.mxu0 %v3558
        %3579 = vmatmul.f32.gmra.mxu0 %v3555
        %v3580 = vpop.f32.mrf.mxu0
        %v3581 = vadd.f32 0.0, %v3580
        %3582 = vdwg.mxu0
        %v3584 = vsel %vm1505, %v3011, 0
        %v3587 = vsel %vm1505, %v3197, 0
        %v3590 = vsel %vm1505, %v3251, 0
        %3592 = vmatpush.xpose.msra.mxu0 0.0
        %3593 = vmatpush.xpose.msra.mxu0 0.0
        %3594 = vmatpush.xpose.msra.mxu0 0.0
        %3595 = vmatpush.xpose.msra.mxu0 0.0
        %3596 = vmatpush.xpose.msra.mxu0 0.0
        %3597 = vmatpush.xpose.msra.mxu0 0.0
        %3598 = vmatpush.xpose.msra.mxu0 0.0
        %3599 = vmatpush.xpose.msra.mxu0 0.0
        %3600 = vmatpush.xpose.msra.mxu0 0.0
        %3601 = vmatpush.xpose.msra.mxu0 0.0
        %3602 = vmatpush.xpose.msra.mxu0 0.0
        %3603 = vmatpush.xpose.msra.mxu0 0.0
        %3604 = vmatpush.xpose.msra.mxu0 0.0
        %3605 = vmatpush.xpose.msra.mxu0 0.0
        %3606 = vmatpush.xpose.msra.mxu0 %v3590
        %3607 = vmatpush.xpose.msra.mxu0 %v3587
        %3608 = vmatmul.f32.gmra.mxu0 %v3584
        %v3609 = vpop.f32.mrf.mxu0
        %v3610 = vadd.f32 0.0, %v3609
        %3611 = vdwg.mxu0
        %v3612 = vsel %vm1921, %v3523, -inf
        %3613 = vmax.xlane.f32.xlu0 %v3612
        %v3614 = vpop.xlane.xlu0 %3613
        %v3615 = vsel %vm1921, %v3552, -inf
        %3616 = vmax.xlane.f32.xlu0 %v3615
        %v3617 = vpop.xlane.xlu0 %3616
        %v3618 = vsel %vm1921, %v3581, -inf
        %3619 = vmax.xlane.f32.xlu0 %v3618
        %v3620 = vpop.xlane.xlu0 %3619
        %v3621 = vsel %vm1921, %v3610, -inf
        %3622 = vmax.xlane.f32.xlu0 %v3621
        %v3623 = vpop.xlane.xlu0 %3622
        %v3624 = vsub.f32 %v3523, %v3614
        %v3625 = vsub.f32 %v3552, %v3617
        %v3626 = vsub.f32 %v3581, %v3620
        %v3627 = vsub.f32 %v3610, %v3623
        %v3628 = vmul.f32 %v3624, 1.442695
        %v3629 = vpow.pop %v3628
        %v3630 = vmul.f32 %v3625, 1.442695
        %v3631 = vpow.pop %v3630
        %v3632 = vmul.f32 %v3626, 1.442695
        %v3633 = vpow.pop %v3632
        %v3634 = vmul.f32 %v3627, 1.442695
        %v3635 = vpow.pop %v3634
        %v3636 = vsel %vm1921, %v3629, 0.0
        %3637 = vadd.xlane.f32.xlu0 %v3636
        %v3638 = vpop.xlane.xlu0 %3637
        %v3639 = vsel %vm1921, %v3631, 0.0
        %3640 = vadd.xlane.f32.xlu0 %v3639
        %v3641 = vpop.xlane.xlu0 %3640
        %v3642 = vsel %vm1921, %v3633, 0.0
        %3643 = vadd.xlane.f32.xlu0 %v3642
        %v3644 = vpop.xlane.xlu0 %3643
        %v3645 = vsel %vm1921, %v3635, 0.0
        %3646 = vadd.xlane.f32.xlu0 %v3645
        %v3647 = vpop.xlane.xlu0 %3646
        %v3648 = vrcp.pop %v3638
        %v3649 = vmul.f32 %v3638, %v3648
        %v3650 = vsub.f32 1.0, %v3649
        %v3651 = vmul.f32 %v3648, %v3650
        %v3652 = vadd.f32 %v3648, %v3651
        %vm3653 = vweird.f32 %v3638
        %vm3654 = vweird.f32 %v3648
        %vm3655 = vmor %vm3653, %vm3654
        %v3656 = vsel %vm3655, %v3648, %v3652
        %v3657 = vand.u32 2147483647, %v3638
        %vm3658 = vcmp.eq.f32.partialorder %v3657, 8.507059e+37
        %v3659 = vand.u32 %v3638, 2147483648
        %v3660 = vor.u32 1.1754944e-38, %v3659
        %v3661 = vsel %vm3658, %v3660, %v3656
        %v3662 = vmul.f32 %v3629, %v3661
        %v3663 = vrcp.pop %v3641
        %v3664 = vmul.f32 %v3641, %v3663
        %v3665 = vsub.f32 1.0, %v3664
        %v3666 = vmul.f32 %v3663, %v3665
        %v3667 = vadd.f32 %v3663, %v3666
        %vm3668 = vweird.f32 %v3641
        %vm3669 = vweird.f32 %v3663
        %vm3670 = vmor %vm3668, %vm3669
        %v3671 = vsel %vm3670, %v3663, %v3667
        %v3672 = vand.u32 2147483647, %v3641
        %vm3673 = vcmp.eq.f32.partialorder %v3672, 8.507059e+37
        %v3674 = vand.u32 %v3641, 2147483648
        %v3675 = vor.u32 1.1754944e-38, %v3674
        %v3676 = vsel %vm3673, %v3675, %v3671
        %v3677 = vmul.f32 %v3631, %v3676
        %v3678 = vrcp.pop %v3644
        %v3679 = vmul.f32 %v3644, %v3678
        %v3680 = vsub.f32 1.0, %v3679
        %v3681 = vmul.f32 %v3678, %v3680
        %v3682 = vadd.f32 %v3678, %v3681
        %vm3683 = vweird.f32 %v3644
        %vm3684 = vweird.f32 %v3678
        %vm3685 = vmor %vm3683, %vm3684
        %v3686 = vsel %vm3685, %v3678, %v3682
        %v3687 = vand.u32 2147483647, %v3644
        %vm3688 = vcmp.eq.f32.partialorder %v3687, 8.507059e+37
        %v3689 = vand.u32 %v3644, 2147483648
        %v3690 = vor.u32 1.1754944e-38, %v3689
        %v3691 = vsel %vm3688, %v3690, %v3686
        %v3692 = vmul.f32 %v3633, %v3691
        %v3693 = vrcp.pop %v3647
        %v3694 = vmul.f32 %v3647, %v3693
        %v3695 = vsub.f32 1.0, %v3694
        %v3696 = vmul.f32 %v3693, %v3695
        %v3697 = vadd.f32 %v3693, %v3696
        %vm3698 = vweird.f32 %v3647
        %vm3699 = vweird.f32 %v3693
        %vm3700 = vmor %vm3698, %vm3699
        %v3701 = vsel %vm3700, %v3693, %v3697
        %v3702 = vand.u32 2147483647, %v3647
        %vm3703 = vcmp.eq.f32.partialorder %v3702, 8.507059e+37
        %v3704 = vand.u32 %v3647, 2147483648
        %v3705 = vor.u32 1.1754944e-38, %v3704
        %v3706 = vsel %vm3703, %v3705, %v3701
        %v3707 = vmul.f32 %v3635, %v3706
        %v3709 = vsel %vm1921, %v3662, 0
        %3711 = vmatpush.msra.mxu0 0.0
        %3712 = vmatpush.msra.mxu0 0.0
        %3713 = vmatpush.msra.mxu0 0.0
        %3714 = vmatpush.msra.mxu0 0.0
        %3715 = vmatpush.msra.mxu0 0.0
        %3716 = vmatpush.msra.mxu0 0.0
        %3717 = vmatpush.msra.mxu0 0.0
        %3718 = vmatpush.msra.mxu0 0.0
        %3719 = vmatpush.msra.mxu0 0.0
        %3720 = vmatpush.msra.mxu0 0.0
        %3721 = vmatpush.msra.mxu0 0.0
        %3722 = vmatpush.msra.mxu0 0.0
        %3723 = vmatpush.msra.mxu0 0.0
        %3724 = vmatpush.msra.mxu0 0.0
        %3725 = vmatpush.msra.mxu0 %v3489
        %3726 = vmatpush.msra.mxu0 %v3435
        %3727 = vmatmul.f32.gmra.mxu0 %v3709
        %v3728 = vpop.f32.mrf.mxu0
        %v3729 = vadd.f32 0.0, %v3728
        %3730 = vdwg.mxu0
        %v3732 = vsel %vm1921, %v3677, 0
        %3734 = vmatpush.msra.mxu0 0.0
        %3735 = vmatpush.msra.mxu0 0.0
        %3736 = vmatpush.msra.mxu0 0.0
        %3737 = vmatpush.msra.mxu0 0.0
        %3738 = vmatpush.msra.mxu0 0.0
        %3739 = vmatpush.msra.mxu0 0.0
        %3740 = vmatpush.msra.mxu0 0.0
        %3741 = vmatpush.msra.mxu0 0.0
        %3742 = vmatpush.msra.mxu0 0.0
        %3743 = vmatpush.msra.mxu0 0.0
        %3744 = vmatpush.msra.mxu0 0.0
        %3745 = vmatpush.msra.mxu0 0.0
        %3746 = vmatpush.msra.mxu0 0.0
        %3747 = vmatpush.msra.mxu0 0.0
        %3748 = vmatpush.msra.mxu0 %v3491
        %3749 = vmatpush.msra.mxu0 %v3437
        %3750 = vmatmul.f32.gmra.mxu0 %v3732
        %v3751 = vpop.f32.mrf.mxu0
        %v3752 = vadd.f32 0.0, %v3751
        %3753 = vdwg.mxu0
        %v3755 = vsel %vm1921, %v3692, 0
        %3757 = vmatpush.msra.mxu0 0.0
        %3758 = vmatpush.msra.mxu0 0.0
        %3759 = vmatpush.msra.mxu0 0.0
        %3760 = vmatpush.msra.mxu0 0.0
        %3761 = vmatpush.msra.mxu0 0.0
        %3762 = vmatpush.msra.mxu0 0.0
        %3763 = vmatpush.msra.mxu0 0.0
        %3764 = vmatpush.msra.mxu0 0.0
        %3765 = vmatpush.msra.mxu0 0.0
        %3766 = vmatpush.msra.mxu0 0.0
        %3767 = vmatpush.msra.mxu0 0.0
        %3768 = vmatpush.msra.mxu0 0.0
        %3769 = vmatpush.msra.mxu0 0.0
        %3770 = vmatpush.msra.mxu0 0.0
        %3771 = vmatpush.msra.mxu0 %v3493
        %3772 = vmatpush.msra.mxu0 %v3439
        %3773 = vmatmul.f32.gmra.mxu0 %v3755
        %v3774 = vpop.f32.mrf.mxu0
        %v3775 = vadd.f32 0.0, %v3774
        %3776 = vdwg.mxu0
        %v3778 = vsel %vm1921, %v3707, 0
        %3780 = vmatpush.msra.mxu0 0.0
        %3781 = vmatpush.msra.mxu0 0.0
        %3782 = vmatpush.msra.mxu0 0.0
        %3783 = vmatpush.msra.mxu0 0.0
        %3784 = vmatpush.msra.mxu0 0.0
        %3785 = vmatpush.msra.mxu0 0.0
        %3786 = vmatpush.msra.mxu0 0.0
        %3787 = vmatpush.msra.mxu0 0.0
        %3788 = vmatpush.msra.mxu0 0.0
        %3789 = vmatpush.msra.mxu0 0.0
        %3790 = vmatpush.msra.mxu0 0.0
        %3791 = vmatpush.msra.mxu0 0.0
        %3792 = vmatpush.msra.mxu0 0.0
        %3793 = vmatpush.msra.mxu0 0.0
        %3794 = vmatpush.msra.mxu0 %v3495
        %3795 = vmatpush.msra.mxu0 %v3441
        %3796 = vmatmul.f32.gmra.mxu0 %v3778
        %v3797 = vpop.f32.mrf.mxu0
        %v3798 = vadd.f32 0.0, %v3797
        %3799 = vdwg.mxu0
        %v3800 = vrot.slane %v3775, 4
        %v3801 = vsel %vm1146, %v3800, %v3729
        %v3802 = vrot.slane %v3729, 4
        %v3803 = vsel %vm1146, %v3775, %v3802
        %v3805 = vunpack.c.l.s4 1983009808
        %v3806 = vunpack.c.0.s8 %v3805
        %v3807 = vperm.slane %v3801, %v3806
        %v3809 = vunpack.c.l.s4 1983009808
        %v3810 = vunpack.c.0.s8 %v3809
        %v3811 = vperm.slane %v3803, %v3810
        %v3812 = vrot.slane %v3798, 4
        %v3813 = vsel %vm1146, %v3812, %v3752
        %v3814 = vrot.slane %v3752, 4
        %v3815 = vsel %vm1146, %v3798, %v3814
        %v3817 = vunpack.c.l.s4 1983009808
        %v3818 = vunpack.c.0.s8 %v3817
        %v3819 = vperm.slane %v3813, %v3818
        %v3821 = vunpack.c.l.s4 1983009808
        %v3822 = vunpack.c.0.s8 %v3821
        %v3823 = vperm.slane %v3815, %v3822
        %v3824 = vrot.slane %v3819, 4
        %v3825 = vsel %vm1146, %v3824, %v3807
        %v3826 = vrot.slane %v3807, 4
        %v3827 = vsel %vm1146, %v3819, %v3826
        %v3829 = vunpack.c.l.s4 1934713408
        %v3830 = vunpack.c.0.s8 %v3829
        %v3831 = vperm.slane %v3825, %v3830
        %v3833 = vunpack.c.l.s4 1934713408
        %v3834 = vunpack.c.0.s8 %v3833
        %v3835 = vperm.slane %v3827, %v3834
        %v3836 = vrot.slane %v3823, 4
        %v3837 = vsel %vm1146, %v3836, %v3811
        %v3838 = vrot.slane %v3811, 4
        %v3839 = vsel %vm1146, %v3823, %v3838
        %v3841 = vunpack.c.l.s4 1934713408
        %v3842 = vunpack.c.0.s8 %v3841
        %v3843 = vperm.slane %v3837, %v3842
        %v3845 = vunpack.c.l.s4 1934713408
        %v3846 = vunpack.c.0.s8 %v3845
        %v3847 = vperm.slane %v3839, %v3846
        %v3848 = vrot.slane %v3831, 4
        %v3849 = vsel %vm1146, 0.0, %v3848
        %v3850 = vrot.slane %v3835, 4
        %v3851 = vsel %vm1146, 0.0, %v3850
        %v3852 = vrot.slane %v3843, 4
        %v3853 = vsel %vm1146, 0.0, %v3852
        %v3854 = vrot.slane %v3847, 4
        %v3855 = vsel %vm1146, 0.0, %v3854
        %v3856 = vsel %vm1146, %v3850, %v3831
        %v3858 = vunpack.c.l.s4 1983009808
        %v3859 = vunpack.c.0.s8 %v3858
        %v3860 = vperm.slane %v3856, %v3859
        %v3861 = vrot.slane %v3851, 4
        %v3862 = vsel %vm1146, %v3861, %v3849
        %v3864 = vunpack.c.l.s4 1983009808
        %v3865 = vunpack.c.0.s8 %v3864
        %v3866 = vperm.slane %v3862, %v3865
        %v3867 = vsel %vm1146, %v3854, %v3843
        %v3869 = vunpack.c.l.s4 1983009808
        %v3870 = vunpack.c.0.s8 %v3869
        %v3871 = vperm.slane %v3867, %v3870
        %v3872 = vrot.slane %v3855, 4
        %v3873 = vsel %vm1146, %v3872, %v3853
        %v3875 = vunpack.c.l.s4 1983009808
        %v3876 = vunpack.c.0.s8 %v3875
        %v3877 = vperm.slane %v3873, %v3876
        %v3878 = vrot.slane %v3866, 4
        %v3879 = vsel %vm1146, %v3878, %v3860
        %v3880 = vrot.slane %v3860, 4
        %v3881 = vsel %vm1146, %v3866, %v3880
        %v3883 = vunpack.c.l.s4 1934713408
        %v3884 = vunpack.c.0.s8 %v3883
        %v3885 = vperm.slane %v3879, %v3884
        %v3887 = vunpack.c.l.s4 1934713408
        %v3888 = vunpack.c.0.s8 %v3887
        %v3889 = vperm.slane %v3881, %v3888
        %v3890 = vrot.slane %v3877, 4
        %v3891 = vsel %vm1146, %v3890, %v3871
        %v3892 = vrot.slane %v3871, 4
        %v3893 = vsel %vm1146, %v3877, %v3892
        %v3895 = vunpack.c.l.s4 1934713408
        %v3896 = vunpack.c.0.s8 %v3895
        %v3897 = vperm.slane %v3891, %v3896
        %v3899 = vunpack.c.l.s4 1934713408
        %v3900 = vunpack.c.0.s8 %v3899
        %v3901 = vperm.slane %v3893, %v3900
        %v3902 = vrot.slane %v3897, 4
        %v3903 = vsel %vm1146, %v3902, %v3885
        %v3904 = vrot.slane %v3885, 4
        %v3905 = vsel %vm1146, %v3897, %v3904
        %v3906 = vrot.slane %v3901, 4
        %v3907 = vsel %vm1146, %v3906, %v3889
        %v3908 = vrot.slane %v3889, 4
        %v3909 = vsel %vm1146, %v3901, %v3908
        %3911 = vrot.lane.b32.xlu0 %v3905, 8
        %v3912 = vpop.permute.xlu0 %3911
        %3915 = vrot.lane.b32.xlu0 %v3907, 16
        %v3916 = vpop.permute.xlu0 %3915
        %3919 = vrot.lane.b32.xlu0 %v3909, 24
        %v3920 = vpop.permute.xlu0 %3919
        %v3922 = vsel %vm1505, %v3903, %v3912
        %v3923 = vsel %vm1921, %v3922, %v3916
        %v3924 = vsel %vm1923, %v3923, %v3920
        %v3925 = vmul.f32 %v2839, 0.35355338
        %3927 = vrot.lane.b32.xlu0 %v3925, 120
        %v3928 = vpop.permute.xlu0 %3927
        %3930 = vrot.lane.b32.xlu0 %v3925, 112
        %v3931 = vpop.permute.xlu0 %3930
        %3933 = vrot.lane.b32.xlu0 %v3925, 104
        %v3934 = vpop.permute.xlu0 %3933
        %v3936 = vrot.slane %v3931, 4
        %v3937 = vsel %vm1146, %v3936, %v3925
        %v3938 = vrot.slane %v3925, 4
        %v3939 = vsel %vm1146, %v3931, %v3938
        %v3941 = vunpack.c.l.s4 1983009808
        %v3942 = vunpack.c.0.s8 %v3941
        %v3943 = vperm.slane %v3937, %v3942
        %v3945 = vunpack.c.l.s4 1983009808
        %v3946 = vunpack.c.0.s8 %v3945
        %v3947 = vperm.slane %v3939, %v3946
        %v3948 = vrot.slane %v3934, 4
        %v3949 = vsel %vm1146, %v3948, %v3928
        %v3950 = vrot.slane %v3928, 4
        %v3951 = vsel %vm1146, %v3934, %v3950
        %v3953 = vunpack.c.l.s4 1983009808
        %v3954 = vunpack.c.0.s8 %v3953
        %v3955 = vperm.slane %v3949, %v3954
        %v3957 = vunpack.c.l.s4 1983009808
        %v3958 = vunpack.c.0.s8 %v3957
        %v3959 = vperm.slane %v3951, %v3958
        %v3960 = vrot.slane %v3955, 4
        %v3961 = vsel %vm1146, %v3960, %v3943
        %v3962 = vrot.slane %v3943, 4
        %v3963 = vsel %vm1146, %v3955, %v3962
        %v3965 = vunpack.c.l.s4 1934713408
        %v3966 = vunpack.c.0.s8 %v3965
        %v3967 = vperm.slane %v3961, %v3966
        %v3969 = vunpack.c.l.s4 1934713408
        %v3970 = vunpack.c.0.s8 %v3969
        %v3971 = vperm.slane %v3963, %v3970
        %v3972 = vrot.slane %v3959, 4
        %v3973 = vsel %vm1146, %v3972, %v3947
        %v3974 = vrot.slane %v3947, 4
        %v3975 = vsel %vm1146, %v3959, %v3974
        %v3977 = vunpack.c.l.s4 1934713408
        %v3978 = vunpack.c.0.s8 %v3977
        %v3979 = vperm.slane %v3973, %v3978
        %v3981 = vunpack.c.l.s4 1934713408
        %v3982 = vunpack.c.0.s8 %v3981
        %v3983 = vperm.slane %v3975, %v3982
        %v3984 = vrot.slane %v3967, 4
        %v3985 = vsel %vm1146, 0.0, %v3984
        %v3986 = vrot.slane %v3971, 4
        %v3987 = vsel %vm1146, 0.0, %v3986
        %v3988 = vrot.slane %v3979, 4
        %v3989 = vsel %vm1146, 0.0, %v3988
        %v3990 = vrot.slane %v3983, 4
        %v3991 = vsel %vm1146, 0.0, %v3990
        %v3992 = vsel %vm1146, %v3986, %v3967
        %v3994 = vunpack.c.l.s4 1983009808
        %v3995 = vunpack.c.0.s8 %v3994
        %v3996 = vperm.slane %v3992, %v3995
        %v3997 = vrot.slane %v3987, 4
        %v3998 = vsel %vm1146, %v3997, %v3985
        %v4000 = vunpack.c.l.s4 1983009808
        %v4001 = vunpack.c.0.s8 %v4000
        %v4002 = vperm.slane %v3998, %v4001
        %v4003 = vsel %vm1146, %v3990, %v3979
        %v4005 = vunpack.c.l.s4 1983009808
        %v4006 = vunpack.c.0.s8 %v4005
        %v4007 = vperm.slane %v4003, %v4006
        %v4008 = vrot.slane %v3991, 4
        %v4009 = vsel %vm1146, %v4008, %v3989
        %v4011 = vunpack.c.l.s4 1983009808
        %v4012 = vunpack.c.0.s8 %v4011
        %v4013 = vperm.slane %v4009, %v4012
        %v4014 = vrot.slane %v4002, 4
        %v4015 = vsel %vm1146, %v4014, %v3996
        %v4016 = vrot.slane %v3996, 4
        %v4017 = vsel %vm1146, %v4002, %v4016
        %v4019 = vunpack.c.l.s4 1934713408
        %v4020 = vunpack.c.0.s8 %v4019
        %v4021 = vperm.slane %v4015, %v4020
        %v4023 = vunpack.c.l.s4 1934713408
        %v4024 = vunpack.c.0.s8 %v4023
        %v4025 = vperm.slane %v4017, %v4024
        %v4026 = vrot.slane %v4013, 4
        %v4027 = vsel %vm1146, %v4026, %v4007
        %v4028 = vrot.slane %v4007, 4
        %v4029 = vsel %vm1146, %v4013, %v4028
        %v4031 = vunpack.c.l.s4 1934713408
        %v4032 = vunpack.c.0.s8 %v4031
        %v4033 = vperm.slane %v4027, %v4032
        %v4035 = vunpack.c.l.s4 1934713408
        %v4036 = vunpack.c.0.s8 %v4035
        %v4037 = vperm.slane %v4029, %v4036
        %v4038 = vrot.slane %v4033, 4
        %v4039 = vsel %vm1146, %v4038, %v4021
        %v4040 = vrot.slane %v4021, 4
        %v4041 = vsel %vm1146, %v4033, %v4040
        %v4042 = vrot.slane %v4037, 4
        %v4043 = vsel %vm1146, %v4042, %v4025
        %v4044 = vrot.slane %v4025, 4
        %v4045 = vsel %vm1146, %v4037, %v4044
        %4048 = vrot.lane.b32.xlu0 %v2886, 120
        %v4049 = vpop.permute.xlu0 %4048
        %4050 = vrot.lane.b32.xlu0 %v2889, 120
        %v4051 = vpop.permute.xlu0 %4050
        %4054 = vrot.lane.b32.xlu0 %v2886, 112
        %v4055 = vpop.permute.xlu0 %4054
        %4056 = vrot.lane.b32.xlu0 %v2889, 112
        %v4057 = vpop.permute.xlu0 %4056
        %4060 = vrot.lane.b32.xlu0 %v2886, 104
        %v4061 = vpop.permute.xlu0 %4060
        %4062 = vrot.lane.b32.xlu0 %v2889, 104
        %v4063 = vpop.permute.xlu0 %4062
        %v4066 = vrot.slane %v4055, 4
        %v4067 = vsel %vm1146, %v4066, %v2886
        %v4068 = vrot.slane %v2886, 4
        %v4069 = vsel %vm1146, %v4055, %v4068
        %v4071 = vunpack.c.l.s4 1983009808
        %v4072 = vunpack.c.0.s8 %v4071
        %v4073 = vperm.slane %v4067, %v4072
        %v4075 = vunpack.c.l.s4 1983009808
        %v4076 = vunpack.c.0.s8 %v4075
        %v4077 = vperm.slane %v4069, %v4076
        %v4078 = vrot.slane %v4061, 4
        %v4079 = vsel %vm1146, %v4078, %v4049
        %v4080 = vrot.slane %v4049, 4
        %v4081 = vsel %vm1146, %v4061, %v4080
        %v4083 = vunpack.c.l.s4 1983009808
        %v4084 = vunpack.c.0.s8 %v4083
        %v4085 = vperm.slane %v4079, %v4084
        %v4087 = vunpack.c.l.s4 1983009808
        %v4088 = vunpack.c.0.s8 %v4087
        %v4089 = vperm.slane %v4081, %v4088
        %v4090 = vrot.slane %v4085, 4
        %v4091 = vsel %vm1146, %v4090, %v4073
        %v4092 = vrot.slane %v4073, 4
        %v4093 = vsel %vm1146, %v4085, %v4092
        %v4095 = vunpack.c.l.s4 1934713408
        %v4096 = vunpack.c.0.s8 %v4095
        %v4097 = vperm.slane %v4091, %v4096
        %v4099 = vunpack.c.l.s4 1934713408
        %v4100 = vunpack.c.0.s8 %v4099
        %v4101 = vperm.slane %v4093, %v4100
        %v4102 = vrot.slane %v4089, 4
        %v4103 = vsel %vm1146, %v4102, %v4077
        %v4104 = vrot.slane %v4077, 4
        %v4105 = vsel %vm1146, %v4089, %v4104
        %v4107 = vunpack.c.l.s4 1934713408
        %v4108 = vunpack.c.0.s8 %v4107
        %v4109 = vperm.slane %v4103, %v4108
        %v4111 = vunpack.c.l.s4 1934713408
        %v4112 = vunpack.c.0.s8 %v4111
        %v4113 = vperm.slane %v4105, %v4112
        %v4114 = vrot.slane %v4097, 4
        %v4115 = vsel %vm1146, 0.0, %v4114
        %v4116 = vrot.slane %v4101, 4
        %v4117 = vsel %vm1146, 0.0, %v4116
        %v4118 = vrot.slane %v4109, 4
        %v4119 = vsel %vm1146, 0.0, %v4118
        %v4120 = vrot.slane %v4113, 4
        %v4121 = vsel %vm1146, 0.0, %v4120
        %v4122 = vrot.slane %v4057, 4
        %v4123 = vsel %vm1146, %v4122, %v2889
        %v4124 = vrot.slane %v2889, 4
        %v4125 = vsel %vm1146, %v4057, %v4124
        %v4127 = vunpack.c.l.s4 1983009808
        %v4128 = vunpack.c.0.s8 %v4127
        %v4129 = vperm.slane %v4123, %v4128
        %v4131 = vunpack.c.l.s4 1983009808
        %v4132 = vunpack.c.0.s8 %v4131
        %v4133 = vperm.slane %v4125, %v4132
        %v4134 = vrot.slane %v4063, 4
        %v4135 = vsel %vm1146, %v4134, %v4051
        %v4136 = vrot.slane %v4051, 4
        %v4137 = vsel %vm1146, %v4063, %v4136
        %v4139 = vunpack.c.l.s4 1983009808
        %v4140 = vunpack.c.0.s8 %v4139
        %v4141 = vperm.slane %v4135, %v4140
        %v4143 = vunpack.c.l.s4 1983009808
        %v4144 = vunpack.c.0.s8 %v4143
        %v4145 = vperm.slane %v4137, %v4144
        %v4146 = vrot.slane %v4141, 4
        %v4147 = vsel %vm1146, %v4146, %v4129
        %v4148 = vrot.slane %v4129, 4
        %v4149 = vsel %vm1146, %v4141, %v4148
        %v4151 = vunpack.c.l.s4 1934713408
        %v4152 = vunpack.c.0.s8 %v4151
        %v4153 = vperm.slane %v4147, %v4152
        %v4155 = vunpack.c.l.s4 1934713408
        %v4156 = vunpack.c.0.s8 %v4155
        %v4157 = vperm.slane %v4149, %v4156
        %v4158 = vrot.slane %v4145, 4
        %v4159 = vsel %vm1146, %v4158, %v4133
        %v4160 = vrot.slane %v4133, 4
        %v4161 = vsel %vm1146, %v4145, %v4160
        %v4163 = vunpack.c.l.s4 1934713408
        %v4164 = vunpack.c.0.s8 %v4163
        %v4165 = vperm.slane %v4159, %v4164
        %v4167 = vunpack.c.l.s4 1934713408
        %v4168 = vunpack.c.0.s8 %v4167
        %v4169 = vperm.slane %v4161, %v4168
        %v4170 = vrot.slane %v4153, 4
        %v4171 = vsel %vm1146, 0.0, %v4170
        %v4172 = vrot.slane %v4157, 4
        %v4173 = vsel %vm1146, 0.0, %v4172
        %v4174 = vrot.slane %v4165, 4
        %v4175 = vsel %vm1146, 0.0, %v4174
        %v4176 = vrot.slane %v4169, 4
        %v4177 = vsel %vm1146, 0.0, %v4176
        %v4178 = vsel %vm1146, %v4116, %v4097
        %v4180 = vunpack.c.l.s4 1983009808
        %v4181 = vunpack.c.0.s8 %v4180
        %v4182 = vperm.slane %v4178, %v4181
        %v4183 = vrot.slane %v4117, 4
        %v4184 = vsel %vm1146, %v4183, %v4115
        %v4186 = vunpack.c.l.s4 1983009808
        %v4187 = vunpack.c.0.s8 %v4186
        %v4188 = vperm.slane %v4184, %v4187
        %v4189 = vsel %vm1146, %v4120, %v4109
        %v4191 = vunpack.c.l.s4 1983009808
        %v4192 = vunpack.c.0.s8 %v4191
        %v4193 = vperm.slane %v4189, %v4192
        %v4194 = vrot.slane %v4121, 4
        %v4195 = vsel %vm1146, %v4194, %v4119
        %v4197 = vunpack.c.l.s4 1983009808
        %v4198 = vunpack.c.0.s8 %v4197
        %v4199 = vperm.slane %v4195, %v4198
        %v4200 = vrot.slane %v4188, 4
        %v4201 = vsel %vm1146, %v4200, %v4182
        %v4202 = vrot.slane %v4182, 4
        %v4203 = vsel %vm1146, %v4188, %v4202
        %v4205 = vunpack.c.l.s4 1934713408
        %v4206 = vunpack.c.0.s8 %v4205
        %v4207 = vperm.slane %v4201, %v4206
        %v4209 = vunpack.c.l.s4 1934713408
        %v4210 = vunpack.c.0.s8 %v4209
        %v4211 = vperm.slane %v4203, %v4210
        %v4212 = vrot.slane %v4199, 4
        %v4213 = vsel %vm1146, %v4212, %v4193
        %v4214 = vrot.slane %v4193, 4
        %v4215 = vsel %vm1146, %v4199, %v4214
        %v4217 = vunpack.c.l.s4 1934713408
        %v4218 = vunpack.c.0.s8 %v4217
        %v4219 = vperm.slane %v4213, %v4218
        %v4221 = vunpack.c.l.s4 1934713408
        %v4222 = vunpack.c.0.s8 %v4221
        %v4223 = vperm.slane %v4215, %v4222
        %v4224 = vrot.slane %v4219, 4
        %v4225 = vsel %vm1146, %v4224, %v4207
        %v4226 = vrot.slane %v4207, 4
        %v4227 = vsel %vm1146, %v4219, %v4226
        %v4228 = vrot.slane %v4223, 4
        %v4229 = vsel %vm1146, %v4228, %v4211
        %v4230 = vrot.slane %v4211, 4
        %v4231 = vsel %vm1146, %v4223, %v4230
        %v4232 = vsel %vm1146, %v4172, %v4153
        %v4234 = vunpack.c.l.s4 1983009808
        %v4235 = vunpack.c.0.s8 %v4234
        %v4236 = vperm.slane %v4232, %v4235
        %v4237 = vrot.slane %v4173, 4
        %v4238 = vsel %vm1146, %v4237, %v4171
        %v4240 = vunpack.c.l.s4 1983009808
        %v4241 = vunpack.c.0.s8 %v4240
        %v4242 = vperm.slane %v4238, %v4241
        %v4243 = vsel %vm1146, %v4176, %v4165
        %v4245 = vunpack.c.l.s4 1983009808
        %v4246 = vunpack.c.0.s8 %v4245
        %v4247 = vperm.slane %v4243, %v4246
        %v4248 = vrot.slane %v4177, 4
        %v4249 = vsel %vm1146, %v4248, %v4175
        %v4251 = vunpack.c.l.s4 1983009808
        %v4252 = vunpack.c.0.s8 %v4251
        %v4253 = vperm.slane %v4249, %v4252
        %v4254 = vrot.slane %v4242, 4
        %v4255 = vsel %vm1146, %v4254, %v4236
        %v4256 = vrot.slane %v4236, 4
        %v4257 = vsel %vm1146, %v4242, %v4256
        %v4259 = vunpack.c.l.s4 1934713408
        %v4260 = vunpack.c.0.s8 %v4259
        %v4261 = vperm.slane %v4255, %v4260
        %v4263 = vunpack.c.l.s4 1934713408
        %v4264 = vunpack.c.0.s8 %v4263
        %v4265 = vperm.slane %v4257, %v4264
        %v4266 = vrot.slane %v4253, 4
        %v4267 = vsel %vm1146, %v4266, %v4247
        %v4268 = vrot.slane %v4247, 4
        %v4269 = vsel %vm1146, %v4253, %v4268
        %v4271 = vunpack.c.l.s4 1934713408
        %v4272 = vunpack.c.0.s8 %v4271
        %v4273 = vperm.slane %v4267, %v4272
        %v4275 = vunpack.c.l.s4 1934713408
        %v4276 = vunpack.c.0.s8 %v4275
        %v4277 = vperm.slane %v4269, %v4276
        %v4278 = vrot.slane %v4273, 4
        %v4279 = vsel %vm1146, %v4278, %v4261
        %v4280 = vrot.slane %v4261, 4
        %v4281 = vsel %vm1146, %v4273, %v4280
        %v4282 = vrot.slane %v4277, 4
        %v4283 = vsel %vm1146, %v4282, %v4265
        %v4284 = vrot.slane %v4265, 4
        %v4285 = vsel %vm1146, %v4277, %v4284
        %4286 = vrot.lane.b32.xlu0 %v2886, 96
        %v4287 = vpop.permute.xlu0 %4286
        %4288 = vrot.lane.b32.xlu0 %v2889, 96
        %v4289 = vpop.permute.xlu0 %4288
        %4290 = vrot.lane.b32.xlu0 %v4049, 96
        %v4291 = vpop.permute.xlu0 %4290
        %4292 = vrot.lane.b32.xlu0 %v4051, 96
        %v4293 = vpop.permute.xlu0 %4292
        %4294 = vrot.lane.b32.xlu0 %v4055, 96
        %v4295 = vpop.permute.xlu0 %4294
        %4296 = vrot.lane.b32.xlu0 %v4057, 96
        %v4297 = vpop.permute.xlu0 %4296
        %4298 = vrot.lane.b32.xlu0 %v4061, 96
        %v4299 = vpop.permute.xlu0 %4298
        %4300 = vrot.lane.b32.xlu0 %v4063, 96
        %v4301 = vpop.permute.xlu0 %4300
        %v4310 = vrot.slane %v4295, 4
        %v4311 = vsel %vm1146, %v4310, %v4287
        %v4312 = vrot.slane %v4287, 4
        %v4313 = vsel %vm1146, %v4295, %v4312
        %v4315 = vunpack.c.l.s4 1983009808
        %v4316 = vunpack.c.0.s8 %v4315
        %v4317 = vperm.slane %v4311, %v4316
        %v4319 = vunpack.c.l.s4 1983009808
        %v4320 = vunpack.c.0.s8 %v4319
        %v4321 = vperm.slane %v4313, %v4320
        %v4322 = vrot.slane %v4299, 4
        %v4323 = vsel %vm1146, %v4322, %v4291
        %v4324 = vrot.slane %v4291, 4
        %v4325 = vsel %vm1146, %v4299, %v4324
        %v4327 = vunpack.c.l.s4 1983009808
        %v4328 = vunpack.c.0.s8 %v4327
        %v4329 = vperm.slane %v4323, %v4328
        %v4331 = vunpack.c.l.s4 1983009808
        %v4332 = vunpack.c.0.s8 %v4331
        %v4333 = vperm.slane %v4325, %v4332
        %v4334 = vrot.slane %v4329, 4
        %v4335 = vsel %vm1146, %v4334, %v4317
        %v4336 = vrot.slane %v4317, 4
        %v4337 = vsel %vm1146, %v4329, %v4336
        %v4339 = vunpack.c.l.s4 1934713408
        %v4340 = vunpack.c.0.s8 %v4339
        %v4341 = vperm.slane %v4335, %v4340
        %v4343 = vunpack.c.l.s4 1934713408
        %v4344 = vunpack.c.0.s8 %v4343
        %v4345 = vperm.slane %v4337, %v4344
        %v4346 = vrot.slane %v4333, 4
        %v4347 = vsel %vm1146, %v4346, %v4321
        %v4348 = vrot.slane %v4321, 4
        %v4349 = vsel %vm1146, %v4333, %v4348
        %v4351 = vunpack.c.l.s4 1934713408
        %v4352 = vunpack.c.0.s8 %v4351
        %v4353 = vperm.slane %v4347, %v4352
        %v4355 = vunpack.c.l.s4 1934713408
        %v4356 = vunpack.c.0.s8 %v4355
        %v4357 = vperm.slane %v4349, %v4356
        %v4358 = vrot.slane %v4341, 4
        %v4359 = vsel %vm1146, 0.0, %v4358
        %v4360 = vrot.slane %v4345, 4
        %v4361 = vsel %vm1146, 0.0, %v4360
        %v4362 = vrot.slane %v4353, 4
        %v4363 = vsel %vm1146, 0.0, %v4362
        %v4364 = vrot.slane %v4357, 4
        %v4365 = vsel %vm1146, 0.0, %v4364
        %v4366 = vrot.slane %v4297, 4
        %v4367 = vsel %vm1146, %v4366, %v4289
        %v4368 = vrot.slane %v4289, 4
        %v4369 = vsel %vm1146, %v4297, %v4368
        %v4371 = vunpack.c.l.s4 1983009808
        %v4372 = vunpack.c.0.s8 %v4371
        %v4373 = vperm.slane %v4367, %v4372
        %v4375 = vunpack.c.l.s4 1983009808
        %v4376 = vunpack.c.0.s8 %v4375
        %v4377 = vperm.slane %v4369, %v4376
        %v4378 = vrot.slane %v4301, 4
        %v4379 = vsel %vm1146, %v4378, %v4293
        %v4380 = vrot.slane %v4293, 4
        %v4381 = vsel %vm1146, %v4301, %v4380
        %v4383 = vunpack.c.l.s4 1983009808
        %v4384 = vunpack.c.0.s8 %v4383
        %v4385 = vperm.slane %v4379, %v4384
        %v4387 = vunpack.c.l.s4 1983009808
        %v4388 = vunpack.c.0.s8 %v4387
        %v4389 = vperm.slane %v4381, %v4388
        %v4390 = vrot.slane %v4385, 4
        %v4391 = vsel %vm1146, %v4390, %v4373
        %v4392 = vrot.slane %v4373, 4
        %v4393 = vsel %vm1146, %v4385, %v4392
        %v4395 = vunpack.c.l.s4 1934713408
        %v4396 = vunpack.c.0.s8 %v4395
        %v4397 = vperm.slane %v4391, %v4396
        %v4399 = vunpack.c.l.s4 1934713408
        %v4400 = vunpack.c.0.s8 %v4399
        %v4401 = vperm.slane %v4393, %v4400
        %v4402 = vrot.slane %v4389, 4
        %v4403 = vsel %vm1146, %v4402, %v4377
        %v4404 = vrot.slane %v4377, 4
        %v4405 = vsel %vm1146, %v4389, %v4404
        %v4407 = vunpack.c.l.s4 1934713408
        %v4408 = vunpack.c.0.s8 %v4407
        %v4409 = vperm.slane %v4403, %v4408
        %v4411 = vunpack.c.l.s4 1934713408
        %v4412 = vunpack.c.0.s8 %v4411
        %v4413 = vperm.slane %v4405, %v4412
        %v4414 = vrot.slane %v4397, 4
        %v4415 = vsel %vm1146, 0.0, %v4414
        %v4416 = vrot.slane %v4401, 4
        %v4417 = vsel %vm1146, 0.0, %v4416
        %v4418 = vrot.slane %v4409, 4
        %v4419 = vsel %vm1146, 0.0, %v4418
        %v4420 = vrot.slane %v4413, 4
        %v4421 = vsel %vm1146, 0.0, %v4420
        %v4422 = vsel %vm1146, %v4360, %v4341
        %v4424 = vunpack.c.l.s4 1983009808
        %v4425 = vunpack.c.0.s8 %v4424
        %v4426 = vperm.slane %v4422, %v4425
        %v4427 = vrot.slane %v4361, 4
        %v4428 = vsel %vm1146, %v4427, %v4359
        %v4430 = vunpack.c.l.s4 1983009808
        %v4431 = vunpack.c.0.s8 %v4430
        %v4432 = vperm.slane %v4428, %v4431
        %v4433 = vsel %vm1146, %v4364, %v4353
        %v4435 = vunpack.c.l.s4 1983009808
        %v4436 = vunpack.c.0.s8 %v4435
        %v4437 = vperm.slane %v4433, %v4436
        %v4438 = vrot.slane %v4365, 4
        %v4439 = vsel %vm1146, %v4438, %v4363
        %v4441 = vunpack.c.l.s4 1983009808
        %v4442 = vunpack.c.0.s8 %v4441
        %v4443 = vperm.slane %v4439, %v4442
        %v4444 = vrot.slane %v4432, 4
        %v4445 = vsel %vm1146, %v4444, %v4426
        %v4446 = vrot.slane %v4426, 4
        %v4447 = vsel %vm1146, %v4432, %v4446
        %v4449 = vunpack.c.l.s4 1934713408
        %v4450 = vunpack.c.0.s8 %v4449
        %v4451 = vperm.slane %v4445, %v4450
        %v4453 = vunpack.c.l.s4 1934713408
        %v4454 = vunpack.c.0.s8 %v4453
        %v4455 = vperm.slane %v4447, %v4454
        %v4456 = vrot.slane %v4443, 4
        %v4457 = vsel %vm1146, %v4456, %v4437
        %v4458 = vrot.slane %v4437, 4
        %v4459 = vsel %vm1146, %v4443, %v4458
        %v4461 = vunpack.c.l.s4 1934713408
        %v4462 = vunpack.c.0.s8 %v4461
        %v4463 = vperm.slane %v4457, %v4462
        %v4465 = vunpack.c.l.s4 1934713408
        %v4466 = vunpack.c.0.s8 %v4465
        %v4467 = vperm.slane %v4459, %v4466
        %v4468 = vrot.slane %v4463, 4
        %v4469 = vsel %vm1146, %v4468, %v4451
        %v4470 = vrot.slane %v4451, 4
        %v4471 = vsel %vm1146, %v4463, %v4470
        %v4472 = vrot.slane %v4467, 4
        %v4473 = vsel %vm1146, %v4472, %v4455
        %v4474 = vrot.slane %v4455, 4
        %v4475 = vsel %vm1146, %v4467, %v4474
        %v4476 = vsel %vm1146, %v4416, %v4397
        %v4478 = vunpack.c.l.s4 1983009808
        %v4479 = vunpack.c.0.s8 %v4478
        %v4480 = vperm.slane %v4476, %v4479
        %v4481 = vrot.slane %v4417, 4
        %v4482 = vsel %vm1146, %v4481, %v4415
        %v4484 = vunpack.c.l.s4 1983009808
        %v4485 = vunpack.c.0.s8 %v4484
        %v4486 = vperm.slane %v4482, %v4485
        %v4487 = vsel %vm1146, %v4420, %v4409
        %v4489 = vunpack.c.l.s4 1983009808
        %v4490 = vunpack.c.0.s8 %v4489
        %v4491 = vperm.slane %v4487, %v4490
        %v4492 = vrot.slane %v4421, 4
        %v4493 = vsel %vm1146, %v4492, %v4419
        %v4495 = vunpack.c.l.s4 1983009808
        %v4496 = vunpack.c.0.s8 %v4495
        %v4497 = vperm.slane %v4493, %v4496
        %v4498 = vrot.slane %v4486, 4
        %v4499 = vsel %vm1146, %v4498, %v4480
        %v4500 = vrot.slane %v4480, 4
        %v4501 = vsel %vm1146, %v4486, %v4500
        %v4503 = vunpack.c.l.s4 1934713408
        %v4504 = vunpack.c.0.s8 %v4503
        %v4505 = vperm.slane %v4499, %v4504
        %v4507 = vunpack.c.l.s4 1934713408
        %v4508 = vunpack.c.0.s8 %v4507
        %v4509 = vperm.slane %v4501, %v4508
        %v4510 = vrot.slane %v4497, 4
        %v4511 = vsel %vm1146, %v4510, %v4491
        %v4512 = vrot.slane %v4491, 4
        %v4513 = vsel %vm1146, %v4497, %v4512
        %v4515 = vunpack.c.l.s4 1934713408
        %v4516 = vunpack.c.0.s8 %v4515
        %v4517 = vperm.slane %v4511, %v4516
        %v4519 = vunpack.c.l.s4 1934713408
        %v4520 = vunpack.c.0.s8 %v4519
        %v4521 = vperm.slane %v4513, %v4520
        %v4522 = vrot.slane %v4517, 4
        %v4523 = vsel %vm1146, %v4522, %v4505
        %v4524 = vrot.slane %v4505, 4
        %v4525 = vsel %vm1146, %v4517, %v4524
        %v4526 = vrot.slane %v4521, 4
        %v4527 = vsel %vm1146, %v4526, %v4509
        %v4528 = vrot.slane %v4509, 4
        %v4529 = vsel %vm1146, %v4521, %v4528
        %v4531 = vsel %vm1505, %v4039, 0
        %v4534 = vsel %vm1505, %v4225, 0
        %v4537 = vsel %vm1505, %v4279, 0
        %4539 = vmatpush.xpose.msra.mxu0 0.0
        %4540 = vmatpush.xpose.msra.mxu0 0.0
        %4541 = vmatpush.xpose.msra.mxu0 0.0
        %4542 = vmatpush.xpose.msra.mxu0 0.0
        %4543 = vmatpush.xpose.msra.mxu0 0.0
        %4544 = vmatpush.xpose.msra.mxu0 0.0
        %4545 = vmatpush.xpose.msra.mxu0 0.0
        %4546 = vmatpush.xpose.msra.mxu0 0.0
        %4547 = vmatpush.xpose.msra.mxu0 0.0
        %4548 = vmatpush.xpose.msra.mxu0 0.0
        %4549 = vmatpush.xpose.msra.mxu0 0.0
        %4550 = vmatpush.xpose.msra.mxu0 0.0
        %4551 = vmatpush.xpose.msra.mxu0 0.0
        %4552 = vmatpush.xpose.msra.mxu0 0.0
        %4553 = vmatpush.xpose.msra.mxu0 %v4537
        %4554 = vmatpush.xpose.msra.mxu0 %v4534
        %4555 = vmatmul.f32.gmra.mxu0 %v4531
        %v4556 = vpop.f32.mrf.mxu0
        %v4557 = vadd.f32 0.0, %v4556
        %4558 = vdwg.mxu0
        %v4560 = vsel %vm1505, %v4041, 0
        %v4563 = vsel %vm1505, %v4227, 0
        %v4566 = vsel %vm1505, %v4281, 0
        %4568 = vmatpush.xpose.msra.mxu0 0.0
        %4569 = vmatpush.xpose.msra.mxu0 0.0
        %4570 = vmatpush.xpose.msra.mxu0 0.0
        %4571 = vmatpush.xpose.msra.mxu0 0.0
        %4572 = vmatpush.xpose.msra.mxu0 0.0
        %4573 = vmatpush.xpose.msra.mxu0 0.0
        %4574 = vmatpush.xpose.msra.mxu0 0.0
        %4575 = vmatpush.xpose.msra.mxu0 0.0
        %4576 = vmatpush.xpose.msra.mxu0 0.0
        %4577 = vmatpush.xpose.msra.mxu0 0.0
        %4578 = vmatpush.xpose.msra.mxu0 0.0
        %4579 = vmatpush.xpose.msra.mxu0 0.0
        %4580 = vmatpush.xpose.msra.mxu0 0.0
        %4581 = vmatpush.xpose.msra.mxu0 0.0
        %4582 = vmatpush.xpose.msra.mxu0 %v4566
        %4583 = vmatpush.xpose.msra.mxu0 %v4563
        %4584 = vmatmul.f32.gmra.mxu0 %v4560
        %v4585 = vpop.f32.mrf.mxu0
        %v4586 = vadd.f32 0.0, %v4585
        %4587 = vdwg.mxu0
        %v4589 = vsel %vm1505, %v4043, 0
        %v4592 = vsel %vm1505, %v4229, 0
        %v4595 = vsel %vm1505, %v4283, 0
        %4597 = vmatpush.xpose.msra.mxu0 0.0
        %4598 = vmatpush.xpose.msra.mxu0 0.0
        %4599 = vmatpush.xpose.msra.mxu0 0.0
        %4600 = vmatpush.xpose.msra.mxu0 0.0
        %4601 = vmatpush.xpose.msra.mxu0 0.0
        %4602 = vmatpush.xpose.msra.mxu0 0.0
        %4603 = vmatpush.xpose.msra.mxu0 0.0
        %4604 = vmatpush.xpose.msra.mxu0 0.0
        %4605 = vmatpush.xpose.msra.mxu0 0.0
        %4606 = vmatpush.xpose.msra.mxu0 0.0
        %4607 = vmatpush.xpose.msra.mxu0 0.0
        %4608 = vmatpush.xpose.msra.mxu0 0.0
        %4609 = vmatpush.xpose.msra.mxu0 0.0
        %4610 = vmatpush.xpose.msra.mxu0 0.0
        %4611 = vmatpush.xpose.msra.mxu0 %v4595
        %4612 = vmatpush.xpose.msra.mxu0 %v4592
        %4613 = vmatmul.f32.gmra.mxu0 %v4589
        %v4614 = vpop.f32.mrf.mxu0
        %v4615 = vadd.f32 0.0, %v4614
        %4616 = vdwg.mxu0
        %v4618 = vsel %vm1505, %v4045, 0
        %v4621 = vsel %vm1505, %v4231, 0
        %v4624 = vsel %vm1505, %v4285, 0
        %4626 = vmatpush.xpose.msra.mxu0 0.0
        %4627 = vmatpush.xpose.msra.mxu0 0.0
        %4628 = vmatpush.xpose.msra.mxu0 0.0
        %4629 = vmatpush.xpose.msra.mxu0 0.0
        %4630 = vmatpush.xpose.msra.mxu0 0.0
        %4631 = vmatpush.xpose.msra.mxu0 0.0
        %4632 = vmatpush.xpose.msra.mxu0 0.0
        %4633 = vmatpush.xpose.msra.mxu0 0.0
        %4634 = vmatpush.xpose.msra.mxu0 0.0
        %4635 = vmatpush.xpose.msra.mxu0 0.0
        %4636 = vmatpush.xpose.msra.mxu0 0.0
        %4637 = vmatpush.xpose.msra.mxu0 0.0
        %4638 = vmatpush.xpose.msra.mxu0 0.0
        %4639 = vmatpush.xpose.msra.mxu0 0.0
        %4640 = vmatpush.xpose.msra.mxu0 %v4624
        %4641 = vmatpush.xpose.msra.mxu0 %v4621
        %4642 = vmatmul.f32.gmra.mxu0 %v4618
        %v4643 = vpop.f32.mrf.mxu0
        %v4644 = vadd.f32 0.0, %v4643
        %4645 = vdwg.mxu0
        %v4646 = vsel %vm1921, %v4557, -inf
        %4647 = vmax.xlane.f32.xlu0 %v4646
        %v4648 = vpop.xlane.xlu0 %4647
        %v4649 = vsel %vm1921, %v4586, -inf
        %4650 = vmax.xlane.f32.xlu0 %v4649
        %v4651 = vpop.xlane.xlu0 %4650
        %v4652 = vsel %vm1921, %v4615, -inf
        %4653 = vmax.xlane.f32.xlu0 %v4652
        %v4654 = vpop.xlane.xlu0 %4653
        %v4655 = vsel %vm1921, %v4644, -inf
        %4656 = vmax.xlane.f32.xlu0 %v4655
        %v4657 = vpop.xlane.xlu0 %4656
        %v4658 = vsub.f32 %v4557, %v4648
        %v4659 = vsub.f32 %v4586, %v4651
        %v4660 = vsub.f32 %v4615, %v4654
        %v4661 = vsub.f32 %v4644, %v4657
        %v4662 = vmul.f32 %v4658, 1.442695
        %v4663 = vpow.pop %v4662
        %v4664 = vmul.f32 %v4659, 1.442695
        %v4665 = vpow.pop %v4664
        %v4666 = vmul.f32 %v4660, 1.442695
        %v4667 = vpow.pop %v4666
        %v4668 = vmul.f32 %v4661, 1.442695
        %v4669 = vpow.pop %v4668
        %v4670 = vsel %vm1921, %v4663, 0.0
        %4671 = vadd.xlane.f32.xlu0 %v4670
        %v4672 = vpop.xlane.xlu0 %4671
        %v4673 = vsel %vm1921, %v4665, 0.0
        %4674 = vadd.xlane.f32.xlu0 %v4673
        %v4675 = vpop.xlane.xlu0 %4674
        %v4676 = vsel %vm1921, %v4667, 0.0
        %4677 = vadd.xlane.f32.xlu0 %v4676
        %v4678 = vpop.xlane.xlu0 %4677
        %v4679 = vsel %vm1921, %v4669, 0.0
        %4680 = vadd.xlane.f32.xlu0 %v4679
        %v4681 = vpop.xlane.xlu0 %4680
        %v4682 = vrcp.pop %v4672
        %v4683 = vmul.f32 %v4672, %v4682
        %v4684 = vsub.f32 1.0, %v4683
        %v4685 = vmul.f32 %v4682, %v4684
        %v4686 = vadd.f32 %v4682, %v4685
        %vm4687 = vweird.f32 %v4672
        %vm4688 = vweird.f32 %v4682
        %vm4689 = vmor %vm4687, %vm4688
        %v4690 = vsel %vm4689, %v4682, %v4686
        %v4691 = vand.u32 2147483647, %v4672
        %vm4692 = vcmp.eq.f32.partialorder %v4691, 8.507059e+37
        %v4693 = vand.u32 %v4672, 2147483648
        %v4694 = vor.u32 1.1754944e-38, %v4693
        %v4695 = vsel %vm4692, %v4694, %v4690
        %v4696 = vmul.f32 %v4663, %v4695
        %v4697 = vrcp.pop %v4675
        %v4698 = vmul.f32 %v4675, %v4697
        %v4699 = vsub.f32 1.0, %v4698
        %v4700 = vmul.f32 %v4697, %v4699
        %v4701 = vadd.f32 %v4697, %v4700
        %vm4702 = vweird.f32 %v4675
        %vm4703 = vweird.f32 %v4697
        %vm4704 = vmor %vm4702, %vm4703
        %v4705 = vsel %vm4704, %v4697, %v4701
        %v4706 = vand.u32 2147483647, %v4675
        %vm4707 = vcmp.eq.f32.partialorder %v4706, 8.507059e+37
        %v4708 = vand.u32 %v4675, 2147483648
        %v4709 = vor.u32 1.1754944e-38, %v4708
        %v4710 = vsel %vm4707, %v4709, %v4705
        %v4711 = vmul.f32 %v4665, %v4710
        %v4712 = vrcp.pop %v4678
        %v4713 = vmul.f32 %v4678, %v4712
        %v4714 = vsub.f32 1.0, %v4713
        %v4715 = vmul.f32 %v4712, %v4714
        %v4716 = vadd.f32 %v4712, %v4715
        %vm4717 = vweird.f32 %v4678
        %vm4718 = vweird.f32 %v4712
        %vm4719 = vmor %vm4717, %vm4718
        %v4720 = vsel %vm4719, %v4712, %v4716
        %v4721 = vand.u32 2147483647, %v4678
        %vm4722 = vcmp.eq.f32.partialorder %v4721, 8.507059e+37
        %v4723 = vand.u32 %v4678, 2147483648
        %v4724 = vor.u32 1.1754944e-38, %v4723
        %v4725 = vsel %vm4722, %v4724, %v4720
        %v4726 = vmul.f32 %v4667, %v4725
        %v4727 = vrcp.pop %v4681
        %v4728 = vmul.f32 %v4681, %v4727
        %v4729 = vsub.f32 1.0, %v4728
        %v4730 = vmul.f32 %v4727, %v4729
        %v4731 = vadd.f32 %v4727, %v4730
        %vm4732 = vweird.f32 %v4681
        %vm4733 = vweird.f32 %v4727
        %vm4734 = vmor %vm4732, %vm4733
        %v4735 = vsel %vm4734, %v4727, %v4731
        %v4736 = vand.u32 2147483647, %v4681
        %vm4737 = vcmp.eq.f32.partialorder %v4736, 8.507059e+37
        %v4738 = vand.u32 %v4681, 2147483648
        %v4739 = vor.u32 1.1754944e-38, %v4738
        %v4740 = vsel %vm4737, %v4739, %v4735
        %v4741 = vmul.f32 %v4669, %v4740
        %v4743 = vsel %vm1921, %v4696, 0
        %4745 = vmatpush.msra.mxu0 0.0
        %4746 = vmatpush.msra.mxu0 0.0
        %4747 = vmatpush.msra.mxu0 0.0
        %4748 = vmatpush.msra.mxu0 0.0
        %4749 = vmatpush.msra.mxu0 0.0
        %4750 = vmatpush.msra.mxu0 0.0
        %4751 = vmatpush.msra.mxu0 0.0
        %4752 = vmatpush.msra.mxu0 0.0
        %4753 = vmatpush.msra.mxu0 0.0
        %4754 = vmatpush.msra.mxu0 0.0
        %4755 = vmatpush.msra.mxu0 0.0
        %4756 = vmatpush.msra.mxu0 0.0
        %4757 = vmatpush.msra.mxu0 0.0
        %4758 = vmatpush.msra.mxu0 0.0
        %4759 = vmatpush.msra.mxu0 %v4523
        %4760 = vmatpush.msra.mxu0 %v4469
        %4761 = vmatmul.f32.gmra.mxu0 %v4743
        %v4762 = vpop.f32.mrf.mxu0
        %v4763 = vadd.f32 0.0, %v4762
        %4764 = vdwg.mxu0
        %v4766 = vsel %vm1921, %v4711, 0
        %4768 = vmatpush.msra.mxu0 0.0
        %4769 = vmatpush.msra.mxu0 0.0
        %4770 = vmatpush.msra.mxu0 0.0
        %4771 = vmatpush.msra.mxu0 0.0
        %4772 = vmatpush.msra.mxu0 0.0
        %4773 = vmatpush.msra.mxu0 0.0
        %4774 = vmatpush.msra.mxu0 0.0
        %4775 = vmatpush.msra.mxu0 0.0
        %4776 = vmatpush.msra.mxu0 0.0
        %4777 = vmatpush.msra.mxu0 0.0
        %4778 = vmatpush.msra.mxu0 0.0
        %4779 = vmatpush.msra.mxu0 0.0
        %4780 = vmatpush.msra.mxu0 0.0
        %4781 = vmatpush.msra.mxu0 0.0
        %4782 = vmatpush.msra.mxu0 %v4525
        %4783 = vmatpush.msra.mxu0 %v4471
        %4784 = vmatmul.f32.gmra.mxu0 %v4766
        %v4785 = vpop.f32.mrf.mxu0
        %v4786 = vadd.f32 0.0, %v4785
        %4787 = vdwg.mxu0
        %v4789 = vsel %vm1921, %v4726, 0
        %4791 = vmatpush.msra.mxu0 0.0
        %4792 = vmatpush.msra.mxu0 0.0
        %4793 = vmatpush.msra.mxu0 0.0
        %4794 = vmatpush.msra.mxu0 0.0
        %4795 = vmatpush.msra.mxu0 0.0
        %4796 = vmatpush.msra.mxu0 0.0
        %4797 = vmatpush.msra.mxu0 0.0
        %4798 = vmatpush.msra.mxu0 0.0
        %4799 = vmatpush.msra.mxu0 0.0
        %4800 = vmatpush.msra.mxu0 0.0
        %4801 = vmatpush.msra.mxu0 0.0
        %4802 = vmatpush.msra.mxu0 0.0
        %4803 = vmatpush.msra.mxu0 0.0
        %4804 = vmatpush.msra.mxu0 0.0
        %4805 = vmatpush.msra.mxu0 %v4527
        %4806 = vmatpush.msra.mxu0 %v4473
        %4807 = vmatmul.f32.gmra.mxu0 %v4789
        %v4808 = vpop.f32.mrf.mxu0
        %v4809 = vadd.f32 0.0, %v4808
        %4810 = vdwg.mxu0
        %v4812 = vsel %vm1921, %v4741, 0
        %4814 = vmatpush.msra.mxu0 0.0
        %4815 = vmatpush.msra.mxu0 0.0
        %4816 = vmatpush.msra.mxu0 0.0
        %4817 = vmatpush.msra.mxu0 0.0
        %4818 = vmatpush.msra.mxu0 0.0
        %4819 = vmatpush.msra.mxu0 0.0
        %4820 = vmatpush.msra.mxu0 0.0
        %4821 = vmatpush.msra.mxu0 0.0
        %4822 = vmatpush.msra.mxu0 0.0
        %4823 = vmatpush.msra.mxu0 0.0
        %4824 = vmatpush.msra.mxu0 0.0
        %4825 = vmatpush.msra.mxu0 0.0
        %4826 = vmatpush.msra.mxu0 0.0
        %4827 = vmatpush.msra.mxu0 0.0
        %4828 = vmatpush.msra.mxu0 %v4529
        %4829 = vmatpush.msra.mxu0 %v4475
        %4830 = vmatmul.f32.gmra.mxu0 %v4812
        %v4831 = vpop.f32.mrf.mxu0
        %v4832 = vadd.f32 0.0, %v4831
        %4833 = vdwg.mxu0
        %v4834 = vrot.slane %v4809, 4
        %v4835 = vsel %vm1146, %v4834, %v4763
        %v4836 = vrot.slane %v4763, 4
        %v4837 = vsel %vm1146, %v4809, %v4836
        %v4839 = vunpack.c.l.s4 1983009808
        %v4840 = vunpack.c.0.s8 %v4839
        %v4841 = vperm.slane %v4835, %v4840
        %v4843 = vunpack.c.l.s4 1983009808
        %v4844 = vunpack.c.0.s8 %v4843
        %v4845 = vperm.slane %v4837, %v4844
        %v4846 = vrot.slane %v4832, 4
        %v4847 = vsel %vm1146, %v4846, %v4786
        %v4848 = vrot.slane %v4786, 4
        %v4849 = vsel %vm1146, %v4832, %v4848
        %v4851 = vunpack.c.l.s4 1983009808
        %v4852 = vunpack.c.0.s8 %v4851
        %v4853 = vperm.slane %v4847, %v4852
        %v4855 = vunpack.c.l.s4 1983009808
        %v4856 = vunpack.c.0.s8 %v4855
        %v4857 = vperm.slane %v4849, %v4856
        %v4858 = vrot.slane %v4853, 4
        %v4859 = vsel %vm1146, %v4858, %v4841
        %v4860 = vrot.slane %v4841, 4
        %v4861 = vsel %vm1146, %v4853, %v4860
        %v4863 = vunpack.c.l.s4 1934713408
        %v4864 = vunpack.c.0.s8 %v4863
        %v4865 = vperm.slane %v4859, %v4864
        %v4867 = vunpack.c.l.s4 1934713408
        %v4868 = vunpack.c.0.s8 %v4867
        %v4869 = vperm.slane %v4861, %v4868
        %v4870 = vrot.slane %v4857, 4
        %v4871 = vsel %vm1146, %v4870, %v4845
        %v4872 = vrot.slane %v4845, 4
        %v4873 = vsel %vm1146, %v4857, %v4872
        %v4875 = vunpack.c.l.s4 1934713408
        %v4876 = vunpack.c.0.s8 %v4875
        %v4877 = vperm.slane %v4871, %v4876
        %v4879 = vunpack.c.l.s4 1934713408
        %v4880 = vunpack.c.0.s8 %v4879
        %v4881 = vperm.slane %v4873, %v4880
        %v4882 = vrot.slane %v4865, 4
        %v4883 = vsel %vm1146, 0.0, %v4882
        %v4884 = vrot.slane %v4869, 4
        %v4885 = vsel %vm1146, 0.0, %v4884
        %v4886 = vrot.slane %v4877, 4
        %v4887 = vsel %vm1146, 0.0, %v4886
        %v4888 = vrot.slane %v4881, 4
        %v4889 = vsel %vm1146, 0.0, %v4888
        %v4890 = vsel %vm1146, %v4884, %v4865
        %v4892 = vunpack.c.l.s4 1983009808
        %v4893 = vunpack.c.0.s8 %v4892
        %v4894 = vperm.slane %v4890, %v4893
        %v4895 = vrot.slane %v4885, 4
        %v4896 = vsel %vm1146, %v4895, %v4883
        %v4898 = vunpack.c.l.s4 1983009808
        %v4899 = vunpack.c.0.s8 %v4898
        %v4900 = vperm.slane %v4896, %v4899
        %v4901 = vsel %vm1146, %v4888, %v4877
        %v4903 = vunpack.c.l.s4 1983009808
        %v4904 = vunpack.c.0.s8 %v4903
        %v4905 = vperm.slane %v4901, %v4904
        %v4906 = vrot.slane %v4889, 4
        %v4907 = vsel %vm1146, %v4906, %v4887
        %v4909 = vunpack.c.l.s4 1983009808
        %v4910 = vunpack.c.0.s8 %v4909
        %v4911 = vperm.slane %v4907, %v4910
        %v4912 = vrot.slane %v4900, 4
        %v4913 = vsel %vm1146, %v4912, %v4894
        %v4914 = vrot.slane %v4894, 4
        %v4915 = vsel %vm1146, %v4900, %v4914
        %v4917 = vunpack.c.l.s4 1934713408
        %v4918 = vunpack.c.0.s8 %v4917
        %v4919 = vperm.slane %v4913, %v4918
        %v4921 = vunpack.c.l.s4 1934713408
        %v4922 = vunpack.c.0.s8 %v4921
        %v4923 = vperm.slane %v4915, %v4922
        %v4924 = vrot.slane %v4911, 4
        %v4925 = vsel %vm1146, %v4924, %v4905
        %v4926 = vrot.slane %v4905, 4
        %v4927 = vsel %vm1146, %v4911, %v4926
        %v4929 = vunpack.c.l.s4 1934713408
        %v4930 = vunpack.c.0.s8 %v4929
        %v4931 = vperm.slane %v4925, %v4930
        %v4933 = vunpack.c.l.s4 1934713408
        %v4934 = vunpack.c.0.s8 %v4933
        %v4935 = vperm.slane %v4927, %v4934
        %v4936 = vrot.slane %v4931, 4
        %v4937 = vsel %vm1146, %v4936, %v4919
        %v4938 = vrot.slane %v4919, 4
        %v4939 = vsel %vm1146, %v4931, %v4938
        %v4940 = vrot.slane %v4935, 4
        %v4941 = vsel %vm1146, %v4940, %v4923
        %v4942 = vrot.slane %v4923, 4
        %v4943 = vsel %vm1146, %v4935, %v4942
        %4945 = vrot.lane.b32.xlu0 %v4939, 8
        %v4946 = vpop.permute.xlu0 %4945
        %4949 = vrot.lane.b32.xlu0 %v4941, 16
        %v4950 = vpop.permute.xlu0 %4949
        %4953 = vrot.lane.b32.xlu0 %v4943, 24
        %v4954 = vpop.permute.xlu0 %4953
        %v4956 = vsel %vm1505, %v4937, %v4946
        %v4957 = vsel %vm1921, %v4956, %v4950
        %v4958 = vsel %vm1923, %v4957, %v4954
        %v4959 = vld [vmem:[%s964] sm:$0xff]
        %v4960 = vld [vmem:[%s964 + $0x8] sm:$0xff]
        %v4961 = vld [vmem:[%s964 + $0x10] sm:$0xff]
        %v4962 = vld [vmem:[%s964 + $0x18] sm:$0xff]
        %v4963 = vperm.slane %v1059, 3
        %v4965 = vsel %vm1070, %v3924, 0
        %v4968 = vsel %vm1070, %v4958, 0
        %4970 = vmatpush.msra.mxu0 0.0
        %4971 = vmatpush.msra.mxu0 0.0
        %4972 = vmatpush.msra.mxu0 0.0
        %4973 = vmatpush.msra.mxu0 0.0
        %4974 = vmatpush.msra.mxu0 0.0
        %4975 = vmatpush.msra.mxu0 0.0
        %4976 = vmatpush.msra.mxu0 0.0
        %4977 = vmatpush.msra.mxu0 0.0
        %4978 = vmatpush.msra.mxu0 0.0
        %4979 = vmatpush.msra.mxu0 0.0
        %4980 = vmatpush.msra.mxu0 0.0
        %4981 = vmatpush.msra.mxu0 0.0
        %4982 = vmatpush.msra.mxu0 %v4962
        %4983 = vmatpush.msra.mxu0 %v4961
        %4984 = vmatpush.msra.mxu0 %v4960
        %4985 = vmatpush.msra.mxu0 %v4959
        %4986 = vmatmul.f32.gmra.mxu0 %v4965
        %v4987 = vpop.f32.mrf.mxu0
        %v4988 = vadd.f32 %v4963, %v4987
        %4989 = vmatmul.f32.gmra.mxu0 %v4968
        %v4990 = vpop.f32.mrf.mxu0
        %v4991 = vadd.f32 %v4963, %v4990
        %4992 = vdwg.mxu0
        %v4993 = vadd.f32 %v2803, %v4988
        %v4994 = vadd.f32 %v2804, %v4991
        %v4995 = vsel %vm1070, %v4993, 0.0
        %4996 = vadd.xlane.f32.xlu0 %v4995
        %v4997 = vpop.xlane.xlu0 %4996
        %v4998 = vsel %vm1070, %v4994, 0.0
        %4999 = vadd.xlane.f32.xlu0 %v4998
        %v5000 = vpop.xlane.xlu0 %4999
        %v5001 = vmul.f32 %v4997, %v2760
        %v5002 = vmul.f32 %v5000, %v2760
        %v5003 = vsub.f32 %v4993, %v5001
        %v5004 = vsub.f32 %v4994, %v5002
        %v5005 = vmul.f32 %v5003, %v5003
        %v5006 = vmul.f32 %v5004, %v5004
        %v5007 = vsel %vm1070, %v5005, 0.0
        %5008 = vadd.xlane.f32.xlu0 %v5007
        %v5009 = vpop.xlane.xlu0 %5008
        %v5010 = vsel %vm1070, %v5006, 0.0
        %5011 = vadd.xlane.f32.xlu0 %v5010
        %v5012 = vpop.xlane.xlu0 %5011
        %v5013 = vmul.f32 %v5009, %v2760
        %v5014 = vmul.f32 %v5012, %v2760
        %v5015 = vadd.f32 %v5013, 1e-05
        %v5016 = vadd.f32 %v5014, 1e-05
        %v5017 = vrsqrt.pop %v5015
        %v5018 = vmul.f32 %v5017, %v5015
        %v5019 = vmul.f32 %v5018, %v5017
        %v5020 = vmul.f32 0.5, %v5019
        %v5021 = vsub.f32 1.5, %v5020
        %v5022 = vmul.f32 %v5017, %v5021
        %vm5023 = vweird.f32 %v5015
        %vm5024 = vweird.f32 %v5017
        %vm5025 = vmor %vm5023, %vm5024
        %v5026 = vsel %vm5025, %v5017, %v5022
        %v5027 = vrsqrt.pop %v5016
        %v5028 = vmul.f32 %v5027, %v5016
        %v5029 = vmul.f32 %v5028, %v5027
        %v5030 = vmul.f32 0.5, %v5029
        %v5031 = vsub.f32 1.5, %v5030
        %v5032 = vmul.f32 %v5027, %v5031
        %vm5033 = vweird.f32 %v5016
        %vm5034 = vweird.f32 %v5027
        %vm5035 = vmor %vm5033, %vm5034
        %v5036 = vsel %vm5035, %v5027, %v5032
        %v5037 = vmul.f32 %v5003, %v5026
        %v5038 = vmul.f32 %v5004, %v5036
        %v5039 = vperm.slane %v1059, 7
        %v5040 = vmul.f32 %v5037, %v5039
        %v5041 = vmul.f32 %v5038, %v5039
        %v5042 = vperm.slane %v1060, 0
        %v5043 = vadd.f32 %v5040, %v5042
        %v5044 = vadd.f32 %v5041, %v5042
        %v5045 = vld [vmem:[%s969] sm:$0xff]
        %v5046 = vld [vmem:[%s969 + $0x8] sm:$0xff]
        %v5047 = vld [vmem:[%s969 + $0x10] sm:$0xff]
        %v5048 = vld [vmem:[%s969 + $0x18] sm:$0xff]
        %v5050 = vperm.slane %v1062, 0
        %v5053 = vsel %vm1070, %v5043, 0
        %v5056 = vsel %vm1070, %v5044, 0
        %5058 = vmatpush.msra.mxu0 0.0
        %5059 = vmatpush.msra.mxu0 0.0
        %5060 = vmatpush.msra.mxu0 0.0
        %5061 = vmatpush.msra.mxu0 0.0
        %5062 = vmatpush.msra.mxu0 0.0
        %5063 = vmatpush.msra.mxu0 0.0
        %5064 = vmatpush.msra.mxu0 0.0
        %5065 = vmatpush.msra.mxu0 0.0
        %5066 = vmatpush.msra.mxu0 0.0
        %5067 = vmatpush.msra.mxu0 0.0
        %5068 = vmatpush.msra.mxu0 0.0
        %5069 = vmatpush.msra.mxu0 0.0
        %5070 = vmatpush.msra.mxu0 %v5048
        %5071 = vmatpush.msra.mxu0 %v5047
        %5072 = vmatpush.msra.mxu0 %v5046
        %5073 = vmatpush.msra.mxu0 %v5045
        %5074 = vmatmul.f32.gmra.mxu0 %v5053
        %v5075 = vpop.f32.mrf.mxu0
        %v5076 = vadd.f32 %v5050, %v5075
        %5077 = vmatmul.f32.gmra.mxu0 %v5056
        %v5078 = vpop.f32.mrf.mxu0
        %v5079 = vadd.f32 %v5050, %v5078
        %5080 = vdwg.mxu0
        %v5081 = vmax.f32 %v5076, 0.0
        %v5082 = vmax.f32 %v5079, 0.0
        %v5083 = vld [vmem:[%s974] sm:$0xff]
        %v5084 = vld [vmem:[%s974 + $0x8] sm:$0xff]
        %v5085 = vld [vmem:[%s974 + $0x10] sm:$0xff]
        %v5086 = vld [vmem:[%s974 + $0x18] sm:$0xff]
        %v5087 = vld [vmem:[%s974 + $0x20] sm:$0xff]
        %v5088 = vld [vmem:[%s974 + $0x28] sm:$0xff]
        %v5089 = vld [vmem:[%s974 + $0x30] sm:$0xff]
        %v5090 = vld [vmem:[%s974 + $0x38] sm:$0xff]
        %v5091 = vperm.slane %v1059, 4
        %vm5092 = vcmask 523264
        %v5094 = vsel %vm5092, %v5081, 0
        %v5097 = vsel %vm5092, %v5082, 0
        %5099 = vmatpush.msra.mxu0 0.0
        %5100 = vmatpush.msra.mxu0 0.0
        %5101 = vmatpush.msra.mxu0 0.0
        %5102 = vmatpush.msra.mxu0 0.0
        %5103 = vmatpush.msra.mxu0 0.0
        %5104 = vmatpush.msra.mxu0 0.0
        %5105 = vmatpush.msra.mxu0 0.0
        %5106 = vmatpush.msra.mxu0 0.0
        %5107 = vmatpush.msra.mxu0 %v5090
        %5108 = vmatpush.msra.mxu0 %v5089
        %5109 = vmatpush.msra.mxu0 %v5088
        %5110 = vmatpush.msra.mxu0 %v5087
        %5111 = vmatpush.msra.mxu0 %v5086
        %5112 = vmatpush.msra.mxu0 %v5085
        %5113 = vmatpush.msra.mxu0 %v5084
        %5114 = vmatpush.msra.mxu0 %v5083
        %5115 = vmatmul.f32.gmra.mxu0 %v5094
        %v5116 = vpop.f32.mrf.mxu0
        %v5117 = vadd.f32 %v5091, %v5116
        %5118 = vmatmul.f32.gmra.mxu0 %v5097
        %v5119 = vpop.f32.mrf.mxu0
        %v5120 = vadd.f32 %v5091, %v5119
        %5121 = vdwg.mxu0
        %v5122 = vadd.f32 %v5043, %v5117
        %v5123 = vadd.f32 %v5044, %v5120
        %v5124 = vsel %vm1070, %v5122, 0.0
        %5125 = vadd.xlane.f32.xlu0 %v5124
        %v5126 = vpop.xlane.xlu0 %5125
        %v5127 = vsel %vm1070, %v5123, 0.0
        %5128 = vadd.xlane.f32.xlu0 %v5127
        %v5129 = vpop.xlane.xlu0 %5128
        %v5130 = vmul.f32 %v5126, %v2760
        %v5131 = vmul.f32 %v5129, %v2760
        %v5132 = vsub.f32 %v5122, %v5130
        %v5133 = vsub.f32 %v5123, %v5131
        %v5134 = vmul.f32 %v5132, %v5132
        %v5135 = vmul.f32 %v5133, %v5133
        %v5136 = vsel %vm1070, %v5134, 0.0
        %5137 = vadd.xlane.f32.xlu0 %v5136
        %v5138 = vpop.xlane.xlu0 %5137
        %v5139 = vsel %vm1070, %v5135, 0.0
        %5140 = vadd.xlane.f32.xlu0 %v5139
        %v5141 = vpop.xlane.xlu0 %5140
        %v5142 = vmul.f32 %v5138, %v2760
        %v5143 = vmul.f32 %v5141, %v2760
        %v5144 = vadd.f32 %v5142, 1e-05
        %v5145 = vadd.f32 %v5143, 1e-05
        %v5146 = vrsqrt.pop %v5144
        %v5147 = vmul.f32 %v5146, %v5144
        %v5148 = vmul.f32 %v5147, %v5146
        %v5149 = vmul.f32 0.5, %v5148
        %v5150 = vsub.f32 1.5, %v5149
        %v5151 = vmul.f32 %v5146, %v5150
        %vm5152 = vweird.f32 %v5144
        %vm5153 = vweird.f32 %v5146
        %vm5154 = vmor %vm5152, %vm5153
        %v5155 = vsel %vm5154, %v5146, %v5151
        %v5156 = vrsqrt.pop %v5145
        %v5157 = vmul.f32 %v5156, %v5145
        %v5158 = vmul.f32 %v5157, %v5156
        %v5159 = vmul.f32 0.5, %v5158
        %v5160 = vsub.f32 1.5, %v5159
        %v5161 = vmul.f32 %v5156, %v5160
        %vm5162 = vweird.f32 %v5145
        %vm5163 = vweird.f32 %v5156
        %vm5164 = vmor %vm5162, %vm5163
        %v5165 = vsel %vm5164, %v5156, %v5161
        %v5166 = vmul.f32 %v5132, %v5155
        %v5167 = vmul.f32 %v5133, %v5165
        %v5168 = vperm.slane %v1060, 1
        %v5169 = vmul.f32 %v5166, %v5168
        %v5170 = vmul.f32 %v5167, %v5168
        %v5171 = vperm.slane %v1060, 2
        %v5172 = vadd.f32 %v5169, %v5171
        %v5173 = vadd.f32 %v5170, %v5171
        %5174 = vst.msk [vmem:[#allocation2] sm:$0xff] %vm1070, %v5172
        %5175 = vst.msk [vmem:[#allocation2 + $0x8] sm:$0xff] %vm1070, %v5173
        %p5176 = scmp.eq.s32.totalorder %s42, 1
        // Predicated region
        $region129: #{decoder_forward.1} parent=99 // pred_check
          %p5177 = pneg %p5176
        $region130: #{decoder_forward.1} parent=99 // pred_check_branch
          %5179 = sbr.rel (%p5177) target = $region132
        $region131: #{decoder_forward.1} parent=99 // pred_region
          %v5180 = vld [vmem:[#allocation8] sm:$0xf]
          %v5181 = vsel %vm1070, %v5172, 0.0
          %5182 = vadd.xlane.f32.xlu0 %v5181
          %v5183 = vpop.xlane.xlu0 %5182
          %v5184 = vsel %vm1070, %v5173, 0.0
          %5185 = vadd.xlane.f32.xlu0 %v5184
          %v5186 = vpop.xlane.xlu0 %5185
          %v5187 = vmul.f32 %v5183, %v2760
          %v5188 = vmul.f32 %v5186, %v2760
          %v5189 = vsub.f32 %v5172, %v5187
          %v5190 = vsub.f32 %v5173, %v5188
          %v5191 = vmul.f32 %v5189, %v5189
          %v5192 = vmul.f32 %v5190, %v5190
          %v5193 = vsel %vm1070, %v5191, 0.0
          %5194 = vadd.xlane.f32.xlu0 %v5193
          %v5195 = vpop.xlane.xlu0 %5194
          %v5196 = vsel %vm1070, %v5192, 0.0
          %5197 = vadd.xlane.f32.xlu0 %v5196
          %v5198 = vpop.xlane.xlu0 %5197
          %v5199 = vmul.f32 %v5195, %v2760
          %v5200 = vmul.f32 %v5198, %v2760
          %v5201 = vadd.f32 %v5199, 1e-05
          %v5202 = vadd.f32 %v5200, 1e-05
          %v5203 = vrsqrt.pop %v5201
          %v5204 = vmul.f32 %v5203, %v5201
          %v5205 = vmul.f32 %v5204, %v5203
          %v5206 = vmul.f32 0.5, %v5205
          %v5207 = vsub.f32 1.5, %v5206
          %v5208 = vmul.f32 %v5203, %v5207
          %vm5209 = vweird.f32 %v5201
          %vm5210 = vweird.f32 %v5203
          %vm5211 = vmor %vm5209, %vm5210
          %v5212 = vsel %vm5211, %v5203, %v5208
          %v5213 = vrsqrt.pop %v5202
          %v5214 = vmul.f32 %v5213, %v5202
          %v5215 = vmul.f32 %v5214, %v5213
          %v5216 = vmul.f32 0.5, %v5215
          %v5217 = vsub.f32 1.5, %v5216
          %v5218 = vmul.f32 %v5213, %v5217
          %vm5219 = vweird.f32 %v5202
          %vm5220 = vweird.f32 %v5213
          %vm5221 = vmor %vm5219, %vm5220
          %v5222 = vsel %vm5221, %v5213, %v5218
          %v5223 = vmul.f32 %v5189, %v5212
          %v5224 = vmul.f32 %v5190, %v5222
          %v5225 = vperm.slane %v5180, 0
          %v5226 = vmul.f32 %v5223, %v5225
          %v5227 = vmul.f32 %v5224, %v5225
          %v5228 = vperm.slane %v5180, 1
          %v5229 = vadd.f32 %v5226, %v5228
          %v5230 = vadd.f32 %v5227, %v5228
          %v5231 = vld [vmem:[#allocation9] sm:$0xff]
          %v5232 = vld [vmem:[#allocation9 + $0x8] sm:$0xff]
          %v5233 = vld [vmem:[#allocation9 + $0x10] sm:$0xff]
          %v5234 = vld [vmem:[#allocation9 + $0x18] sm:$0xff]
          %v5235 = vperm.slane %v5180, 2
          %v5237 = vsel %vm1070, %v5229, 0
          %v5240 = vsel %vm1070, %v5230, 0
          %5242 = vmatpush.msra.mxu0 0.0
          %5243 = vmatpush.msra.mxu0 0.0
          %5244 = vmatpush.msra.mxu0 0.0
          %5245 = vmatpush.msra.mxu0 0.0
          %5246 = vmatpush.msra.mxu0 0.0
          %5247 = vmatpush.msra.mxu0 0.0
          %5248 = vmatpush.msra.mxu0 0.0
          %5249 = vmatpush.msra.mxu0 0.0
          %5250 = vmatpush.msra.mxu0 0.0
          %5251 = vmatpush.msra.mxu0 0.0
          %5252 = vmatpush.msra.mxu0 0.0
          %5253 = vmatpush.msra.mxu0 0.0
          %5254 = vmatpush.msra.mxu0 %v5234
          %5255 = vmatpush.msra.mxu0 %v5233
          %5256 = vmatpush.msra.mxu0 %v5232
          %5257 = vmatpush.msra.mxu0 %v5231
          %5258 = vmatmul.f32.gmra.mxu0 %v5237
          %v5259 = vpop.f32.mrf.mxu0
          %v5260 = vadd.f32 %v5235, %v5259
          %5261 = vmatmul.f32.gmra.mxu0 %v5240
          %v5262 = vpop.f32.mrf.mxu0
          %v5263 = vadd.f32 %v5235, %v5262
          %5264 = vdwg.mxu0
          %v5265 = vmax.f32 %v5260, 0.0
          %v5266 = vmax.f32 %v5263, 0.0
          %v5267 = vld [vmem:[#allocation11] sm:$0xff]
          %v5268 = vld [vmem:[#allocation11 + $0x8] sm:$0xff]
          %v5269 = vld [vmem:[#allocation11 + $0x10] sm:$0xff]
          %v5270 = vld [vmem:[#allocation11 + $0x18] sm:$0xff]
          %v5271 = vperm.slane %v5180, 3
          %v5273 = vsel %vm1070, %v5265, 0
          %v5276 = vsel %vm1070, %v5266, 0
          %5278 = vmatpush.msra.mxu0 0.0
          %5279 = vmatpush.msra.mxu0 0.0
          %5280 = vmatpush.msra.mxu0 0.0
          %5281 = vmatpush.msra.mxu0 0.0
          %5282 = vmatpush.msra.mxu0 0.0
          %5283 = vmatpush.msra.mxu0 0.0
          %5284 = vmatpush.msra.mxu0 0.0
          %5285 = vmatpush.msra.mxu0 0.0
          %5286 = vmatpush.msra.mxu0 0.0
          %5287 = vmatpush.msra.mxu0 0.0
          %5288 = vmatpush.msra.mxu0 0.0
          %5289 = vmatpush.msra.mxu0 0.0
          %5290 = vmatpush.msra.mxu0 %v5270
          %5291 = vmatpush.msra.mxu0 %v5269
          %5292 = vmatpush.msra.mxu0 %v5268
          %5293 = vmatpush.msra.mxu0 %v5267
          %5294 = vmatmul.f32.gmra.mxu0 %v5273
          %v5295 = vpop.f32.mrf.mxu0
          %v5296 = vadd.f32 %v5271, %v5295
          %5297 = vmatmul.f32.gmra.mxu0 %v5276
          %v5298 = vpop.f32.mrf.mxu0
          %v5299 = vadd.f32 %v5271, %v5298
          %5300 = vdwg.mxu0
          %v5301 = vmax.f32 %v5296, 0.0
          %v5302 = vmax.f32 %v5299, 0.0
          %v5303 = vld [vmem:[#allocation12] sm:$0xff]
          %v5304 = vld [vmem:[#allocation12 + $0x8] sm:$0xff]
          %v5305 = vld [vmem:[#allocation12 + $0x10] sm:$0xff]
          %v5306 = vld [vmem:[#allocation12 + $0x18] sm:$0xff]
          %v5307 = vld [vmem:[%s19] sm:$0x1]
          %v5309 = vperm.slane %v5307, 0
          %v5312 = vsel %vm1070, %v5301, 0
          %v5315 = vsel %vm1070, %v5302, 0
          %5317 = vmatpush.msra.mxu0 0.0
          %5318 = vmatpush.msra.mxu0 0.0
          %5319 = vmatpush.msra.mxu0 0.0
          %5320 = vmatpush.msra.mxu0 0.0
          %5321 = vmatpush.msra.mxu0 0.0
          %5322 = vmatpush.msra.mxu0 0.0
          %5323 = vmatpush.msra.mxu0 0.0
          %5324 = vmatpush.msra.mxu0 0.0
          %5325 = vmatpush.msra.mxu0 0.0
          %5326 = vmatpush.msra.mxu0 0.0
          %5327 = vmatpush.msra.mxu0 0.0
          %5328 = vmatpush.msra.mxu0 0.0
          %5329 = vmatpush.msra.mxu0 %v5306
          %5330 = vmatpush.msra.mxu0 %v5305
          %5331 = vmatpush.msra.mxu0 %v5304
          %5332 = vmatpush.msra.mxu0 %v5303
          %5333 = vmatmul.f32.gmra.mxu0 %v5312
          %v5334 = vpop.f32.mrf.mxu0
          %v5335 = vadd.f32 %v5309, %v5334
          %5336 = vmatmul.f32.gmra.mxu0 %v5315
          %v5337 = vpop.f32.mrf.mxu0
          %v5338 = vadd.f32 %v5309, %v5337
          %5339 = vdwg.mxu0
          %5340 = vst [vmem:[%s988] sm:$0xff] %v5335
          %5341 = vst [vmem:[%s988 + $0x8] sm:$0xff] %v5338
        $region132: #{decoder_forward.1} parent=99 // pred_fallthru
          _
        %s5342 = smul.u32 2, %s41
        %p5343 = scmp.lt.s32.totalorder %s5342, 1
        %s5344 = scalar_select %p5343, %s5342, 1
        %s5345 = smul.addr %s5344, 8
        %s5346 = scalar_lea.vmem %s20, %s5345
        // Predicated region
        $region133: #{decoder_forward.1} parent=99 // pred_check
          %p5347 = pneg %p557
        $region134: #{decoder_forward.1} parent=99 // pred_check_branch
          %5349 = sbr.rel (%p5347) target = $region136
        $region135: #{decoder_forward.1} parent=99 // pred_region
          %s5350 = smul.u32 2, %s41
        $region136: #{decoder_forward.1} parent=99 // pred_fallthru
          _
        // Predicated region
        $region137: #{decoder_forward.1} parent=99 // pred_check
          %p5351 = pneg %p557
        $region138: #{decoder_forward.1} parent=99 // pred_check_branch
          %5353 = sbr.rel (%p5351) target = $region140
        $region139: #{decoder_forward.1} parent=99 // pred_region
          %s5354 = smul.u32 2, %s41
          %p5355 = scmp.lt.s32.totalorder %s5354, 1
          %s5356 = scalar_select %p5355, %s5354, 1
          %s5357 = smul.addr %s5356, 8
          %s5358 = scalar_lea.vmem %s20, %s5357
        $region140: #{decoder_forward.1} parent=99 // pred_fallthru
          _
      $region100: #{decoder_forward.1} parent=5 // pred_fallthru
        _
      %p5359 = scmp.le.s32.totalorder 2, %s32
      // Predicated region
      $region141: #{decoder_forward.1} parent=5 // pred_check
        %p5360 = pneg %p5359
      $region142: #{decoder_forward.1} parent=5 // pred_check_branch
        %5362 = sbr.rel (%p5360) target = $region144
      $region143: #{decoder_forward.1} parent=5 // pred_region
        %s5363 = ssub.s32 %s32, 2
      $region144: #{decoder_forward.1} parent=5 // pred_fallthru
        _
    $region6: #{decoder_forward.1} parent=1 // loop_footer
      %s36 = sadd.s32 1, %s32
    $region7: #{decoder_forward.1} parent=1 // loop_footer_branch
      %31 = sbr.rel target = $region3
    $region8: #{decoder_forward.1} parent=1 // loop_exit
      _
    %5364 = vsyncpa [#allocation5], 1
    %s5365 = scalar_lea.sflag [#allocation5], 1
    %5366 = vsyncpa %s5365, 1
    %5367 = vsyncpa [#allocation7], 1
    %s5368 = scalar_lea.sflag [#allocation7], 1
    %5369 = vsyncpa %s5368, 1
    %5370 = vsyncpa [#allocation10], 1
    %5371 = vsyncpa [#allocation13], 1

</llo_original>
